<compile_context>
chip_gen: v7x
topology: tpu7x:2x2x1
jax: 0.10.0
libtpu: 0.0.40
codegen_flags: <defaults>
</compile_context>

<pallas_src>
import functools

import jax
import jax.numpy as jnp
from jax import lax
from jax.experimental import pallas as pl
from jax.experimental.pallas import tpu as pltpu

EPS = 1e-5          # PyTorch BatchNorm2d default eps
NEG_SLOPE = 0.01    # PyTorch F.leaky_relu default negative_slope
LANE = 128


def _round_up(x, m):
    return (x + m - 1) // m * m


def _leaky(x):
    return jnp.where(x >= 0, x, NEG_SLOPE * x)


def _largest_divisor_leq(n, cap):
    cap = max(1, min(n, cap))
    for d in range(cap, 0, -1):
        if n % d == 0:
            return d
    return 1


def _vmem_capacity():
    """Physical VMEM bytes for the current chip (128 MiB v5e/v6e, 64 MiB v7x)."""
    try:
        info = pltpu.get_tpu_info()
        for name in ("vmem_capacity_bytes", "vmem_bytes", "vmem_size_bytes"):
            v = getattr(info, name, None)
            if v:
                return int(v)
    except Exception:
        pass
    return 64 << 20   # conservative (v7x)


def _vmem_limit(need, cap):
    return int(min(max(need, 16 << 20), int(0.8 * cap)))


# ----------------------------------------------------------------------------
# Pallas kernels
# ----------------------------------------------------------------------------
def _conv_stats_kernel(kh, kw, th, wo,
                       x_ref, w_ref, b_ref, y_ref, s_ref, ss_ref, acc_ref):
    """KHxKW stride-1 'valid' conv over a halo'd row tile, + bias, and
    per-channel sum / sum-of-squares accumulation for BatchNorm."""
    @pl.when(pl.program_id(0) == 0)
    def _init():
        s_ref[...] = jnp.zeros_like(s_ref)
        ss_ref[...] = jnp.zeros_like(ss_ref)

    xt = x_ref[0]                                  # (th+kh-1, ws, cin_p) bf16
    cin_p = xt.shape[-1]
    first = True
    for dy in range(kh):
        for dx in range(kw):
            patch = xt[dy:dy + th, dx:dx + wo, :].reshape(th * wo, cin_p)
            contrib = jnp.dot(patch, w_ref[dy * kw + dx],
                              preferred_element_type=jnp.float32)
            if first:
                acc_ref[...] = contrib
                first = False
            else:
                acc_ref[...] += contrib

    y = acc_ref[...] + b_ref[...]                  # (th*wo, cp) f32
    yb = y.astype(y_ref.dtype)
    y_ref[...] = yb.reshape(y_ref.shape)
    # Stats on the stored (rounded) values so pass-2 normalization is
    # self-consistent with what it normalizes.
    yf = yb.astype(jnp.float32)
    s_ref[...] += jnp.sum(yf, axis=0, keepdims=True)
    ss_ref[...] += jnp.sum(yf * yf, axis=0, keepdims=True)


def _bn_res_act_kernel(y_ref, sc_ref, sh_ref, r_ref, o_ref):
    """BN2 (precomputed scale/shift) + identity residual + leaky_relu."""
    y = y_ref[...].astype(jnp.float32) * sc_ref[...] + sh_ref[...]
    o_ref[...] = _leaky(y + r_ref[...].astype(jnp.float32)).astype(o_ref.dtype)


def _bn_proj_res_act_kernel(y_ref, sc_ref, sh_ref, xs_ref, w3_ref, b3_ref, o_ref):
    """BN2 + fused 1x1-conv shortcut + residual add + leaky_relu."""
    _, th, wo, cp = y_ref.shape
    cin_p = xs_ref.shape[-1]
    xs = xs_ref[0].reshape(th * wo, cin_p)
    res = jnp.dot(xs, w3_ref[...], preferred_element_type=jnp.float32)
    res = res + b3_ref[...]
    y = y_ref[...].astype(jnp.float32) * sc_ref[...] + sh_ref[...]
    o_ref[...] = _leaky(y + res.reshape(1, th, wo, cp)).astype(o_ref.dtype)


# ----------------------------------------------------------------------------
# pallas_call wrappers
# ----------------------------------------------------------------------------
def _conv_stats_pass(x_sd, w_eff, bias, ho, wo, cp, vmem_cap):
    """In-kernel KHxKW stride-1 conv + bias + BN batch-stat accumulation.

    x_sd : (N, Hs, Ws, Cin_p) bf16, spatially prepared (padded / space-to-depth)
    w_eff: (KH, KW, Cin_p, cp)  bf16
    bias : (1, cp) f32
    Returns y (N, Ho, Wo, cp) bf16, sum (1, cp), sumsq (1, cp), th, t.
    """
    n, hs, ws, cin_p = x_sd.shape
    kh, kw = w_eff.shape[0], w_eff.shape[1]

    # Row-tile size: largest divisor of Ho that fits the VMEM budget
    # (resident weights accounted for -- review item for v7x's 64 MiB).
    in_row = ws * cin_p * 2
    out_row = wo * cp * 2
    acc_row = wo * cp * 4
    resident = kh * kw * cin_p * cp * 2 * 2 + 8 * cp * 4
    budget = int(0.4 * vmem_cap)
    cap_rows = max(1, (budget - resident) // (2 * in_row + 2 * out_row + acc_row))
    th = _largest_divisor_leq(ho, cap_rows)
    t = ho // th
    rows_in = th + kh - 1

    if t == 1:
        x_in = x_sd[:, :rows_in]
        g = n
    else:
        # Overlapping (halo'd) row tiles built by a cheap XLA gather; the
        # kernel then uses plain auto-pipelined BlockSpecs.
        idx = jnp.arange(t)[:, None] * th + jnp.arange(rows_in)[None, :]
        x_in = x_sd[:, idx].reshape(n * t, rows_in, ws, cin_p)
        g = n * t

    w2d = w_eff.reshape(kh * kw, cin_p, cp)

    need = (resident + 2 * rows_in * in_row + 2 * th * out_row + th * acc_row
            + (4 << 20))
    kern = functools.partial(_conv_stats_kernel, kh, kw, th, wo)

    y, s_, ss_ = pl.pallas_call(
        kern,
        grid=(g,),
        in_specs=[
            pl.BlockSpec((1, rows_in, ws, cin_p), lambda i: (i, 0, 0, 0)),
            pl.BlockSpec((kh * kw, cin_p, cp), lambda i: (0, 0, 0)),   # resident
            pl.BlockSpec((1, cp), lambda i: (0, 0)),                   # resident
        ],
        out_specs=(
            pl.BlockSpec((1, th, wo, cp), lambda i: (i, 0, 0, 0)),
            pl.BlockSpec((1, cp), lambda i: (0, 0)),                   # sum acc
            pl.BlockSpec((1, cp), lambda i: (0, 0)),                   # sumsq acc
        ),
        out_shape=(
            jax.ShapeDtypeStruct((g, th, wo, cp), jnp.bfloat16),
            jax.ShapeDtypeStruct((1, cp), jnp.float32),
            jax.ShapeDtypeStruct((1, cp), jnp.float32),
        ),
        scratch_shapes=[pltpu.VMEM((th * wo, cp), jnp.float32)],
        compiler_params=pltpu.CompilerParams(
            dimension_semantics=("arbitrary",),
            vmem_limit_bytes=_vmem_limit(need, vmem_cap)),
    )(x_in, w2d, bias)

    return y.reshape(n, ho, wo, cp), s_, ss_, th, t


def _finalize_pass(y_t, sc, sh, res_t, th, wo, cp, vmem_cap, w3=None, b3=None):
    """BN2 + (optional fused 1x1-conv) shortcut + residual add + leaky_relu."""
    g = y_t.shape[0]
    cr = res_t.shape[-1]
    row = wo * (cp * 2 + cr * 2 + cp * 4)
    resident = (0 if w3 is None else w3.size * 2 * 2) + 8 * cp * 4
    need = resident + 2 * th * row + (4 << 20)

    in_specs = [
        pl.BlockSpec((1, th, wo, cp), lambda i: (i, 0, 0, 0)),
        pl.BlockSpec((1, cp), lambda i: (0, 0)),
        pl.BlockSpec((1, cp), lambda i: (0, 0)),
        pl.BlockSpec((1, th, wo, cr), lambda i: (i, 0, 0, 0)),
    ]
    args = [y_t, sc, sh, res_t]
    if w3 is not None:
        in_specs += [pl.BlockSpec((cr, cp), lambda i: (0, 0)),
                     pl.BlockSpec((1, cp), lambda i: (0, 0))]
        args += [w3, b3]
        kern = _bn_proj_res_act_kernel
    else:
        kern = _bn_res_act_kernel

    return pl.pallas_call(
        kern,
        grid=(g,),
        in_specs=in_specs,
        out_specs=pl.BlockSpec((1, th, wo, cp), lambda i: (i, 0, 0, 0)),
        out_shape=jax.ShapeDtypeStruct((g, th, wo, cp), jnp.float32),
        compiler_params=pltpu.CompilerParams(
            dimension_semantics=("parallel",),
            vmem_limit_bytes=_vmem_limit(need, vmem_cap)),
    )(*args)


# ----------------------------------------------------------------------------
# Plain-JAX glue: space-to-depth for strided conv, weight rearrange, BN affine
# ----------------------------------------------------------------------------
def _space_to_depth_conv_input(x, stride):
    """Spatial pad by 1, then stride-phase space-to-depth so a 3x3/stride-s
    conv becomes a (2//s+1)^2 stride-1 'valid' conv over s*s*C channels.
    For stride 1 this is simply the padded input."""
    n, h, w, c = x.shape
    s = stride
    k2 = 2 // s + 1
    xp = jnp.pad(x, ((0, 0), (1, 1), (1, 1), (0, 0)))
    hp, wp = h + 2, w + 2
    hs, ws = -(-hp // s), -(-wp // s)
    xp = jnp.pad(xp, ((0, 0), (0, hs * s - hp), (0, ws * s - wp), (0, 0)))
    if s > 1:
        xp = xp.reshape(n, hs, s, ws, s, c)
        xp = xp.transpose(0, 1, 3, 2, 4, 5).reshape(n, hs, ws, s * s * c)
    ho = (h - 1) // s + 1
    wo = (w - 1) // s + 1
    return xp, k2, ho, wo


def _rearrange_w3x3(w, stride):
    """(3,3,Cin,Cout) 3x3/stride-s weights -> (k2,k2, s*s*Cin, Cout) weights
    of the equivalent stride-1 conv over the space-to-depth input."""
    s = stride
    if s == 1:
        return w
    k2 = 2 // s + 1
    cin, cout = w.shape[2], w.shape[3]
    w_eff = jnp.zeros((k2, k2, s * s * cin, cout), w.dtype)
    for dy in range(3):
        for dx in range(3):
            a, py = divmod(dy, s)
            b, px = divmod(dx, s)
            ch = (py * s + px) * cin
            w_eff = w_eff.at[a, b, ch:ch + cin, :].set(w[dy, dx])
    return w_eff


def _bn_scale_shift(s, ss, m, gamma, beta):
    """Accumulated sum / sumsq -> per-channel affine (computed once)."""
    mean = s / m
    var = jnp.maximum(ss / m - mean * mean, 0.0)   # guard tiny negative values
    scale = gamma * lax.rsqrt(var + EPS)
    shift = beta - mean * scale
    return scale.astype(jnp.float32), shift.astype(jnp.float32)


# ----------------------------------------------------------------------------
# ResUnit forward (Pallas)
# ----------------------------------------------------------------------------
def res_unit_forward_nhwc(x_nhwc, params, *, use_1x1conv, strides):
    x = x_nhwc.astype(jnp.float32)
    n, h, w, cin = x.shape
    cout = params["w1"].shape[-1]
    if not use_1x1conv and (cin != cout or strides != 1):
        raise ValueError("identity shortcut requires Cin == Cout and strides == 1")

    cp = _round_up(cout, LANE)          # lane-dense output channels
    vmem_cap = _vmem_capacity()

    def row(v):
        return jnp.pad(v.astype(jnp.float32), (0, cp - cout)).reshape(1, cp)

    b1, b2 = row(params["b1"]), row(params["b2"])
    g1, be1 = row(params["g1"]), row(params["be1"])
    g2, be2 = row(params["g2"]), row(params["be2"])

    # ---- conv1: stride-s 3x3 -> space-to-depth + in-kernel stride-1 conv -----
    x_sd, _, ho, wo = _space_to_depth_conv_input(x, strides)
    c_sd = x_sd.shape[-1]
    c_sd_p = _round_up(c_sd, LANE)
    x_sd = jnp.pad(x_sd, ((0, 0), (0, 0), (0, 0), (0, c_sd_p - c_sd)))
    x_sd = x_sd.astype(jnp.bfloat16)

    w1e = _rearrange_w3x3(params["w1"].astype(jnp.float32), strides)
    w1e = jnp.pad(w1e, ((0, 0), (0, 0), (0, c_sd_p - c_sd), (0, cp - cout)))
    w1e = w1e.astype(jnp.bfloat16)

    y1, s1, ss1, _, _ = _conv_stats_pass(x_sd, w1e, b1, ho, wo, cp, vmem_cap)
    m = n * ho * wo
    sc1, sh1 = _bn_scale_shift(s1, ss1, m, g1, be1)

    # ---- BN1 apply + leaky + spatial pad (one fused XLA elementwise op) ------
    # TODO(synk): fold this into the conv2 kernel (BN on loaded halo tiles with
    # in-kernel boundary zeroing) to remove this activation round trip too.
    a1 = _leaky(y1.astype(jnp.float32) * sc1.reshape(1, 1, 1, cp)
                + sh1.reshape(1, 1, 1, cp))
    a1 = jnp.pad(a1, ((0, 0), (1, 1), (1, 1), (0, 0))).astype(jnp.bfloat16)

    # ---- conv2: 3x3 stride-1 + batch stats ------------------------------------
    w2 = jnp.pad(params["w2"].astype(jnp.float32),
                 ((0, 0), (0, 0), (0, cp - cout), (0, cp - cout)))
    w2 = w2.astype(jnp.bfloat16)
    y2, s2, ss2, th2, t2 = _conv_stats_pass(a1, w2, b2, ho, wo, cp, vmem_cap)
    sc2, sh2 = _bn_scale_shift(s2, ss2, m, g2, be2)

    # ---- BN2 + shortcut (fused) + residual + leaky_relu -----------------------
    g2n = n * t2
    y2_t = y2.reshape(g2n, th2, wo, cp)
    if use_1x1conv:
        cin_pr = _round_up(cin, LANE)
        xs = x[:, ::strides, ::strides, :]                      # (n, ho, wo, cin)
        xs = jnp.pad(xs, ((0, 0), (0, 0), (0, 0), (0, cin_pr - cin)))
        xs_t = xs.astype(jnp.bfloat16).reshape(g2n, th2, wo, cin_pr)
        w3 = jnp.pad(params["w3"].astype(jnp.float32),
                     ((0, cin_pr - cin), (0, cp - cout))).astype(jnp.bfloat16)
        b3 = row(params["b3"])
        out = _finalize_pass(y2_t, sc2, sh2, xs_t, th2, wo, cp, vmem_cap,
                             w3=w3, b3=b3)
    else:
        r = jnp.pad(x, ((0, 0), (0, 0), (0, 0), (0, cp - cin)))
        r_t = r.astype(jnp.bfloat16).reshape(g2n, th2, wo, cp)
        out = _finalize_pass(y2_t, sc2, sh2, r_t, th2, wo, cp, vmem_cap)

    return out.reshape(n, ho, wo, cp)[..., :cout]


def res_unit_forward(x_nchw, params, *, use_1x1conv, strides):
    # Thin NCHW wrapper matching the PyTorch module; the NHWC entry point above
    # is the transpose-free path.
    x = jnp.transpose(x_nchw, (0, 2, 3, 1))
    y = res_unit_forward_nhwc(x, params, use_1x1conv=use_1x1conv, strides=strides)
    return jnp.transpose(y, (0, 3, 1, 2))


# ----------------------------------------------------------------------------
# Pure-JAX reference (for correctness check)
# ----------------------------------------------------------------------------
def res_unit_reference(x_nchw, params, *, use_1x1conv, strides):
    x = jnp.transpose(x_nchw, (0, 2, 3, 1)).astype(jnp.float32)
    dn = ("NHWC", "HWIO", "NHWC")

    def conv(v, w, b, stride, pad):
        y = jax.lax.conv_general_dilated(v, w, (stride, stride), pad,
                                         dimension_numbers=dn)
        return y + b

    def bn(y, g, bt):
        mu = jnp.mean(y, axis=(0, 1, 2))
        var = jnp.mean((y - mu) ** 2, axis=(0, 1, 2))
        return (y - mu) * jax.lax.rsqrt(var + EPS) * g + bt

    y = _leaky(bn(conv(x, params["w1"], params["b1"], strides,
                       [(1, 1), (1, 1)]), params["g1"], params["be1"]))
    y = bn(conv(y, params["w2"], params["b2"], 1, [(1, 1), (1, 1)]),
           params["g2"], params["be2"])
    if use_1x1conv:
        xr = conv(x, params["w3"][None, None], params["b3"], strides,
                  [(0, 0), (0, 0)])
    else:
        xr = x
    return jnp.transpose(_leaky(y + xr), (0, 3, 1, 2))


# ----------------------------------------------------------------------------
# main
# ----------------------------------------------------------------------------
def init_params(key, cin, cout):
    ks = jax.random.split(key, 10)
    return {
        "w1": jax.random.normal(ks[0], (3, 3, cin, cout), jnp.float32) * 0.1,
        "b1": jax.random.normal(ks[1], (cout,), jnp.float32) * 0.05,
        "w2": jax.random.normal(ks[2], (3, 3, cout, cout), jnp.float32) * 0.1,
        "b2": jax.random.normal(ks[3], (cout,), jnp.float32) * 0.05,
        "w3": jax.random.normal(ks[4], (cin, cout), jnp.float32) * 0.1,
        "b3": jax.random.normal(ks[5], (cout,), jnp.float32) * 0.05,
        "g1": 1.0 + 0.1 * jax.random.normal(ks[6], (cout,), jnp.float32),
        "be1": 0.1 * jax.random.normal(ks[7], (cout,), jnp.float32),
        "g2": 1.0 + 0.1 * jax.random.normal(ks[8], (cout,), jnp.float32),
        "be2": 0.1 * jax.random.normal(ks[9], (cout,), jnp.float32),
    }


if __name__ == "__main__":
    key = jax.random.PRNGKey(0)
    k_x1, k_p1, k_x2, k_p2 = jax.random.split(key, 4)

    # Config 1: projection shortcut (1x1 conv), stride 2 (downsampling block).
    N, Cin, H, W, Cout = 2, 4, 16, 16, 8
    x1 = jax.random.normal(k_x1, (N, Cin, H, W), jnp.float32)
    params1 = init_params(k_p1, Cin, Cout)
    fwd1 = jax.jit(functools.partial(res_unit_forward, use_1x1conv=True, strides=2))
    out1 = jax.block_until_ready(fwd1(x1, params1))
    ref1 = jax.block_until_ready(
        res_unit_reference(x1, params1, use_1x1conv=True, strides=2))
    assert out1.shape == ref1.shape == (N, Cout, H // 2, W // 2)
    err1 = float(jnp.max(jnp.abs(out1 - ref1)))
    # bf16 MXU operands -> loosened tolerance vs the f32 reference (expected).
    assert jnp.allclose(out1, ref1, rtol=5e-2, atol=5e-2), f"max abs diff {err1}"

    # Config 2: identity shortcut, stride 1.
    N2, C2, H2, W2 = 2, 8, 24, 24
    x2 = jax.random.normal(k_x2, (N2, C2, H2, W2), jnp.float32)
    params2 = init_params(k_p2, C2, C2)
    fwd2 = jax.jit(functools.partial(res_unit_forward, use_1x1conv=False, strides=1))
    out2 = jax.block_until_ready(fwd2(x2, params2))
    ref2 = jax.block_until_ready(
        res_unit_reference(x2, params2, use_1x1conv=False, strides=1))
    assert out2.shape == ref2.shape == (N2, C2, H2, W2)
    err2 = float(jnp.max(jnp.abs(out2 - ref2)))
    assert jnp.allclose(out2, ref2, rtol=5e-2, atol=5e-2), f"max abs diff {err2}"

    print("KERNEL_OK")
</pallas_src>

<mosaic_0001>
module attributes {stable_mosaic.version = 11 : i64} {
  func.func @_conv_stats_kernel(%arg0: i32, %arg1: memref<1x9x9x128xbf16, #tpu.memory_space<vmem>>, %arg2: memref<4x128x128xbf16, #tpu.memory_space<vmem>>, %arg3: memref<1x128xf32, #tpu.memory_space<vmem>>, %arg4: memref<1x8x8x128xbf16, #tpu.memory_space<vmem>>, %arg5: memref<1x128xf32, #tpu.memory_space<vmem>>, %arg6: memref<1x128xf32, #tpu.memory_space<vmem>>, %arg7: memref<64x128xf32, #tpu.memory_space<vmem>>) attributes {dimension_semantics = [#tpu.dimension_semantics<arbitrary>], iteration_bounds = array<i64: 2>, scalar_prefetch = 0 : i64, scratch_operands = 1 : i64, tpu.core_type = #tpu.core_type<tc>, window_params = [{transform_indices = @transform_0, window_bounds = array<i64: 1, 9, 9, 128>}, {pipeline_mode = #tpu.pipeline_mode<synchronous>, transform_indices = @transform_1, window_bounds = array<i64: 4, 128, 128>}, {pipeline_mode = #tpu.pipeline_mode<synchronous>, transform_indices = @transform_2, window_bounds = array<i64: 1, 128>}, {transform_indices = @transform_3, window_bounds = array<i64: 1, 8, 8, 128>}, {pipeline_mode = #tpu.pipeline_mode<synchronous>, transform_indices = @transform_4, window_bounds = array<i64: 1, 128>}, {pipeline_mode = #tpu.pipeline_mode<synchronous>, transform_indices = @transform_5, window_bounds = array<i64: 1, 128>}]} {
    %c0_i32 = arith.constant 0 : i32
    %0 = arith.cmpi eq, %arg0, %c0_i32 : i32
    %1 = arith.extui %0 : i1 to i32
    %c0_i32_0 = arith.constant 0 : i32
    %2 = arith.cmpi ne, %1, %c0_i32_0 : i32
    scf.if %2 {
      %cst_48 = arith.constant 0.000000e+00 : f32
      %54 = vector.broadcast %cst_48 : f32 to vector<1x128xf32>
      %c0_49 = arith.constant 0 : index
      %c0_50 = arith.constant 0 : index
      %55 = vector.load %arg5[%c0_49, %c0_50] : memref<1x128xf32, #tpu.memory_space<vmem>>, vector<1x128xf32>
      tpu.vector_store %arg5[%c0_49, %c0_50], %54 {strides = array<i32>} : memref<1x128xf32, #tpu.memory_space<vmem>>, vector<1x128xf32>,
      %cst_51 = arith.constant 0.000000e+00 : f32
      %56 = vector.broadcast %cst_51 : f32 to vector<1x128xf32>
      %c0_52 = arith.constant 0 : index
      %c0_53 = arith.constant 0 : index
      %57 = vector.load %arg6[%c0_52, %c0_53] : memref<1x128xf32, #tpu.memory_space<vmem>>, vector<1x128xf32>
      tpu.vector_store %arg6[%c0_52, %c0_53], %56 {strides = array<i32>} : memref<1x128xf32, #tpu.memory_space<vmem>>, vector<1x128xf32>,
    } else {
    }
    %c0 = arith.constant 0 : index
    %c0_1 = arith.constant 0 : index
    %c0_2 = arith.constant 0 : index
    %c0_3 = arith.constant 0 : index
    %3 = vector.load %arg1[%c0, %c0_1, %c0_2, %c0_3] : memref<1x9x9x128xbf16, #tpu.memory_space<vmem>>, vector<1x9x9x128xbf16>
    %4 = vector.shape_cast %3 : vector<1x9x9x128xbf16> to vector<9x9x128xbf16>
    %5 = vector.extract_strided_slice %4 {offsets = [0, 0, 0], sizes = [8, 8, 128], strides = [1, 1, 1]} : vector<9x9x128xbf16> to vector<8x8x128xbf16>
    %6 = vector.shape_cast %5 : vector<8x8x128xbf16> to vector<64x128xbf16>
    %c0_4 = arith.constant 0 : index
    %c0_5 = arith.constant 0 : index
    %c0_6 = arith.constant 0 : index
    %7 = vector.load %arg2[%c0_4, %c0_5, %c0_6] : memref<4x128x128xbf16, #tpu.memory_space<vmem>>, vector<1x128x128xbf16>
    %8 = vector.shape_cast %7 : vector<1x128x128xbf16> to vector<128x128xbf16>
    %cst = arith.constant dense<0.000000e+00> : vector<64x128xf32>
    %9 = tpu.matmul %6, %8, %cst {dimension_numbers = #tpu.dot_dimension_numbers<[1], [0], [0], [1], [0, 0, 1, 1], [], []>} : vector<64x128xbf16>, vector<128x128xbf16>, vector<64x128xf32> -> vector<64x128xf32>
    %c0_7 = arith.constant 0 : index
    %c0_8 = arith.constant 0 : index
    %10 = vector.load %arg7[%c0_7, %c0_8] : memref<64x128xf32, #tpu.memory_space<vmem>>, vector<64x128xf32>
    tpu.vector_store %arg7[%c0_7, %c0_8], %9 {strides = array<i32>} : memref<64x128xf32, #tpu.memory_space<vmem>>, vector<64x128xf32>,
    %11 = vector.extract_strided_slice %4 {offsets = [0, 1, 0], sizes = [8, 8, 128], strides = [1, 1, 1]} : vector<9x9x128xbf16> to vector<8x8x128xbf16>
    %12 = vector.shape_cast %11 : vector<8x8x128xbf16> to vector<64x128xbf16>
    %c1 = arith.constant 1 : index
    %c0_9 = arith.constant 0 : index
    %c0_10 = arith.constant 0 : index
    %13 = vector.load %arg2[%c1, %c0_9, %c0_10] : memref<4x128x128xbf16, #tpu.memory_space<vmem>>, vector<1x128x128xbf16>
    %14 = vector.shape_cast %13 : vector<1x128x128xbf16> to vector<128x128xbf16>
    %cst_11 = arith.constant dense<0.000000e+00> : vector<64x128xf32>
    %15 = tpu.matmul %12, %14, %cst_11 {dimension_numbers = #tpu.dot_dimension_numbers<[1], [0], [0], [1], [0, 0, 1, 1], [], []>} : vector<64x128xbf16>, vector<128x128xbf16>, vector<64x128xf32> -> vector<64x128xf32>
    %c0_12 = arith.constant 0 : index
    %c0_13 = arith.constant 0 : index
    %16 = vector.load %arg7[%c0_12, %c0_13] : memref<64x128xf32, #tpu.memory_space<vmem>>, vector<64x128xf32>
    %17 = arith.addf %16, %15 : vector<64x128xf32>
    %c0_14 = arith.constant 0 : index
    %c0_15 = arith.constant 0 : index
    %18 = vector.load %arg7[%c0_14, %c0_15] : memref<64x128xf32, #tpu.memory_space<vmem>>, vector<64x128xf32>
    tpu.vector_store %arg7[%c0_14, %c0_15], %17 {strides = array<i32>} : memref<64x128xf32, #tpu.memory_space<vmem>>, vector<64x128xf32>,
    %19 = vector.extract_strided_slice %4 {offsets = [1, 0, 0], sizes = [8, 8, 128], strides = [1, 1, 1]} : vector<9x9x128xbf16> to vector<8x8x128xbf16>
    %20 = vector.shape_cast %19 : vector<8x8x128xbf16> to vector<64x128xbf16>
    %c2 = arith.constant 2 : index
    %c0_16 = arith.constant 0 : index
    %c0_17 = arith.constant 0 : index
    %21 = vector.load %arg2[%c2, %c0_16, %c0_17] : memref<4x128x128xbf16, #tpu.memory_space<vmem>>, vector<1x128x128xbf16>
    %22 = vector.shape_cast %21 : vector<1x128x128xbf16> to vector<128x128xbf16>
    %cst_18 = arith.constant dense<0.000000e+00> : vector<64x128xf32>
    %23 = tpu.matmul %20, %22, %cst_18 {dimension_numbers = #tpu.dot_dimension_numbers<[1], [0], [0], [1], [0, 0, 1, 1], [], []>} : vector<64x128xbf16>, vector<128x128xbf16>, vector<64x128xf32> -> vector<64x128xf32>
    %c0_19 = arith.constant 0 : index
    %c0_20 = arith.constant 0 : index
    %24 = vector.load %arg7[%c0_19, %c0_20] : memref<64x128xf32, #tpu.memory_space<vmem>>, vector<64x128xf32>
    %25 = arith.addf %24, %23 : vector<64x128xf32>
    %c0_21 = arith.constant 0 : index
    %c0_22 = arith.constant 0 : index
    %26 = vector.load %arg7[%c0_21, %c0_22] : memref<64x128xf32, #tpu.memory_space<vmem>>, vector<64x128xf32>
    tpu.vector_store %arg7[%c0_21, %c0_22], %25 {strides = array<i32>} : memref<64x128xf32, #tpu.memory_space<vmem>>, vector<64x128xf32>,
    %27 = vector.extract_strided_slice %4 {offsets = [1, 1, 0], sizes = [8, 8, 128], strides = [1, 1, 1]} : vector<9x9x128xbf16> to vector<8x8x128xbf16>
    %28 = vector.shape_cast %27 : vector<8x8x128xbf16> to vector<64x128xbf16>
    %c3 = arith.constant 3 : index
    %c0_23 = arith.constant 0 : index
    %c0_24 = arith.constant 0 : index
    %29 = vector.load %arg2[%c3, %c0_23, %c0_24] : memref<4x128x128xbf16, #tpu.memory_space<vmem>>, vector<1x128x128xbf16>
    %30 = vector.shape_cast %29 : vector<1x128x128xbf16> to vector<128x128xbf16>
    %cst_25 = arith.constant dense<0.000000e+00> : vector<64x128xf32>
    %31 = tpu.matmul %28, %30, %cst_25 {dimension_numbers = #tpu.dot_dimension_numbers<[1], [0], [0], [1], [0, 0, 1, 1], [], []>} : vector<64x128xbf16>, vector<128x128xbf16>, vector<64x128xf32> -> vector<64x128xf32>
    %c0_26 = arith.constant 0 : index
    %c0_27 = arith.constant 0 : index
    %32 = vector.load %arg7[%c0_26, %c0_27] : memref<64x128xf32, #tpu.memory_space<vmem>>, vector<64x128xf32>
    %33 = arith.addf %32, %31 : vector<64x128xf32>
    %c0_28 = arith.constant 0 : index
    %c0_29 = arith.constant 0 : index
    %34 = vector.load %arg7[%c0_28, %c0_29] : memref<64x128xf32, #tpu.memory_space<vmem>>, vector<64x128xf32>
    tpu.vector_store %arg7[%c0_28, %c0_29], %33 {strides = array<i32>} : memref<64x128xf32, #tpu.memory_space<vmem>>, vector<64x128xf32>,
    %c0_30 = arith.constant 0 : index
    %c0_31 = arith.constant 0 : index
    %35 = vector.load %arg7[%c0_30, %c0_31] : memref<64x128xf32, #tpu.memory_space<vmem>>, vector<64x128xf32>
    %c0_32 = arith.constant 0 : index
    %c0_33 = arith.constant 0 : index
    %36 = vector.load %arg3[%c0_32, %c0_33] : memref<1x128xf32, #tpu.memory_space<vmem>>, vector<1x128xf32>
    %37 = vector.broadcast %36 : vector<1x128xf32> to vector<64x128xf32>
    %38 = arith.addf %35, %37 : vector<64x128xf32>
    %39 = arith.truncf %38 : vector<64x128xf32> to vector<64x128xbf16>
    %40 = vector.shape_cast %39 : vector<64x128xbf16> to vector<1x8x8x128xbf16>
    %c0_34 = arith.constant 0 : index
    %c0_35 = arith.constant 0 : index
    %c0_36 = arith.constant 0 : index
    %c0_37 = arith.constant 0 : index
    %41 = vector.load %arg4[%c0_34, %c0_35, %c0_36, %c0_37] : memref<1x8x8x128xbf16, #tpu.memory_space<vmem>>, vector<1x8x8x128xbf16>
    tpu.vector_store %arg4[%c0_34, %c0_35, %c0_36, %c0_37], %40 {strides = array<i32>} : memref<1x8x8x128xbf16, #tpu.memory_space<vmem>>, vector<1x8x8x128xbf16>,
    %42 = arith.extf %39 : vector<64x128xbf16> to vector<64x128xf32>
    %c0_38 = arith.constant 0 : index
    %c0_39 = arith.constant 0 : index
    %43 = vector.load %arg5[%c0_38, %c0_39] : memref<1x128xf32, #tpu.memory_space<vmem>>, vector<1x128xf32>
    %cst_40 = arith.constant dense<0.000000e+00> : vector<128xf32>
    %44 = vector.multi_reduction <add>, %42, %cst_40 [0] : vector<64x128xf32> to vector<128xf32>
    %45 = vector.shape_cast %44 : vector<128xf32> to vector<1x128xf32>
    %46 = arith.addf %43, %45 : vector<1x128xf32>
    %c0_41 = arith.constant 0 : index
    %c0_42 = arith.constant 0 : index
    %47 = vector.load %arg5[%c0_41, %c0_42] : memref<1x128xf32, #tpu.memory_space<vmem>>, vector<1x128xf32>
    tpu.vector_store %arg5[%c0_41, %c0_42], %46 {strides = array<i32>} : memref<1x128xf32, #tpu.memory_space<vmem>>, vector<1x128xf32>,
    %c0_43 = arith.constant 0 : index
    %c0_44 = arith.constant 0 : index
    %48 = vector.load %arg6[%c0_43, %c0_44] : memref<1x128xf32, #tpu.memory_space<vmem>>, vector<1x128xf32>
    %49 = arith.mulf %42, %42 : vector<64x128xf32>
    %cst_45 = arith.constant dense<0.000000e+00> : vector<128xf32>
    %50 = vector.multi_reduction <add>, %49, %cst_45 [0] : vector<64x128xf32> to vector<128xf32>
    %51 = vector.shape_cast %50 : vector<128xf32> to vector<1x128xf32>
    %52 = arith.addf %48, %51 : vector<1x128xf32>
    %c0_46 = arith.constant 0 : index
    %c0_47 = arith.constant 0 : index
    %53 = vector.load %arg6[%c0_46, %c0_47] : memref<1x128xf32, #tpu.memory_space<vmem>>, vector<1x128xf32>
    tpu.vector_store %arg6[%c0_46, %c0_47], %52 {strides = array<i32>} : memref<1x128xf32, #tpu.memory_space<vmem>>, vector<1x128xf32>,
    return
  }
  func.func @transform_0(%arg0: i32) -> (i32, i32, i32, i32) {
    %c0_i32 = arith.constant 0 : i32
    %c0_i32_0 = arith.constant 0 : i32
    %c0_i32_1 = arith.constant 0 : i32
    %c0_i32_2 = arith.constant 0 : i32
    return %arg0, %c0_i32, %c0_i32_0, %c0_i32_1 : i32, i32, i32, i32
  }
  func.func @transform_1(%arg0: i32) -> (i32, i32, i32) {
    %c0_i32 = arith.constant 0 : i32
    %c0_i32_0 = arith.constant 0 : i32
    %c0_i32_1 = arith.constant 0 : i32
    %c0_i32_2 = arith.constant 0 : i32
    return %c0_i32, %c0_i32_0, %c0_i32_1 : i32, i32, i32
  }
  func.func @transform_2(%arg0: i32) -> (i32, i32) {
    %c0_i32 = arith.constant 0 : i32
    %c0_i32_0 = arith.constant 0 : i32
    %c0_i32_1 = arith.constant 0 : i32
    return %c0_i32, %c0_i32_0 : i32, i32
  }
  func.func @transform_3(%arg0: i32) -> (i32, i32, i32, i32) {
    %c0_i32 = arith.constant 0 : i32
    %c0_i32_0 = arith.constant 0 : i32
    %c0_i32_1 = arith.constant 0 : i32
    %c0_i32_2 = arith.constant 0 : i32
    return %arg0, %c0_i32, %c0_i32_0, %c0_i32_1 : i32, i32, i32, i32
  }
  func.func @transform_4(%arg0: i32) -> (i32, i32) {
    %c0_i32 = arith.constant 0 : i32
    %c0_i32_0 = arith.constant 0 : i32
    %c0_i32_1 = arith.constant 0 : i32
    return %c0_i32, %c0_i32_0 : i32, i32
  }
  func.func @transform_5(%arg0: i32) -> (i32, i32) {
    %c0_i32 = arith.constant 0 : i32
    %c0_i32_0 = arith.constant 0 : i32
    %c0_i32_1 = arith.constant 0 : i32
    return %c0_i32, %c0_i32_0 : i32, i32
  }
}

module attributes {stable_mosaic.version = 11 : i64} {
  func.func @_conv_stats_kernel(%arg0: i32, %arg1: memref<1x10x10x128xbf16, #tpu.memory_space<vmem>>, %arg2: memref<9x128x128xbf16, #tpu.memory_space<vmem>>, %arg3: memref<1x128xf32, #tpu.memory_space<vmem>>, %arg4: memref<1x8x8x128xbf16, #tpu.memory_space<vmem>>, %arg5: memref<1x128xf32, #tpu.memory_space<vmem>>, %arg6: memref<1x128xf32, #tpu.memory_space<vmem>>, %arg7: memref<64x128xf32, #tpu.memory_space<vmem>>) attributes {dimension_semantics = [#tpu.dimension_semantics<arbitrary>], iteration_bounds = array<i64: 2>, scalar_prefetch = 0 : i64, scratch_operands = 1 : i64, tpu.core_type = #tpu.core_type<tc>, window_params = [{transform_indices = @transform_0, window_bounds = array<i64: 1, 10, 10, 128>}, {pipeline_mode = #tpu.pipeline_mode<synchronous>, transform_indices = @transform_1, window_bounds = array<i64: 9, 128, 128>}, {pipeline_mode = #tpu.pipeline_mode<synchronous>, transform_indices = @transform_2, window_bounds = array<i64: 1, 128>}, {transform_indices = @transform_3, window_bounds = array<i64: 1, 8, 8, 128>}, {pipeline_mode = #tpu.pipeline_mode<synchronous>, transform_indices = @transform_4, window_bounds = array<i64: 1, 128>}, {pipeline_mode = #tpu.pipeline_mode<synchronous>, transform_indices = @transform_5, window_bounds = array<i64: 1, 128>}]} {
    %c0_i32 = arith.constant 0 : i32
    %0 = arith.cmpi eq, %arg0, %c0_i32 : i32
    %1 = arith.extui %0 : i1 to i32
    %c0_i32_0 = arith.constant 0 : i32
    %2 = arith.cmpi ne, %1, %c0_i32_0 : i32
    scf.if %2 {
      %cst_83 = arith.constant 0.000000e+00 : f32
      %94 = vector.broadcast %cst_83 : f32 to vector<1x128xf32>
      %c0_84 = arith.constant 0 : index
      %c0_85 = arith.constant 0 : index
      %95 = vector.load %arg5[%c0_84, %c0_85] : memref<1x128xf32, #tpu.memory_space<vmem>>, vector<1x128xf32>
      tpu.vector_store %arg5[%c0_84, %c0_85], %94 {strides = array<i32>} : memref<1x128xf32, #tpu.memory_space<vmem>>, vector<1x128xf32>,
      %cst_86 = arith.constant 0.000000e+00 : f32
      %96 = vector.broadcast %cst_86 : f32 to vector<1x128xf32>
      %c0_87 = arith.constant 0 : index
      %c0_88 = arith.constant 0 : index
      %97 = vector.load %arg6[%c0_87, %c0_88] : memref<1x128xf32, #tpu.memory_space<vmem>>, vector<1x128xf32>
      tpu.vector_store %arg6[%c0_87, %c0_88], %96 {strides = array<i32>} : memref<1x128xf32, #tpu.memory_space<vmem>>, vector<1x128xf32>,
    } else {
    }
    %c0 = arith.constant 0 : index
    %c0_1 = arith.constant 0 : index
    %c0_2 = arith.constant 0 : index
    %c0_3 = arith.constant 0 : index
    %3 = vector.load %arg1[%c0, %c0_1, %c0_2, %c0_3] : memref<1x10x10x128xbf16, #tpu.memory_space<vmem>>, vector<1x10x10x128xbf16>
    %4 = vector.shape_cast %3 : vector<1x10x10x128xbf16> to vector<10x10x128xbf16>
    %5 = vector.extract_strided_slice %4 {offsets = [0, 0, 0], sizes = [8, 8, 128], strides = [1, 1, 1]} : vector<10x10x128xbf16> to vector<8x8x128xbf16>
    %6 = vector.shape_cast %5 : vector<8x8x128xbf16> to vector<64x128xbf16>
    %c0_4 = arith.constant 0 : index
    %c0_5 = arith.constant 0 : index
    %c0_6 = arith.constant 0 : index
    %7 = vector.load %arg2[%c0_4, %c0_5, %c0_6] : memref<9x128x128xbf16, #tpu.memory_space<vmem>>, vector<1x128x128xbf16>
    %8 = vector.shape_cast %7 : vector<1x128x128xbf16> to vector<128x128xbf16>
    %cst = arith.constant dense<0.000000e+00> : vector<64x128xf32>
    %9 = tpu.matmul %6, %8, %cst {dimension_numbers = #tpu.dot_dimension_numbers<[1], [0], [0], [1], [0, 0, 1, 1], [], []>} : vector<64x128xbf16>, vector<128x128xbf16>, vector<64x128xf32> -> vector<64x128xf32>
    %c0_7 = arith.constant 0 : index
    %c0_8 = arith.constant 0 : index
    %10 = vector.load %arg7[%c0_7, %c0_8] : memref<64x128xf32, #tpu.memory_space<vmem>>, vector<64x128xf32>
    tpu.vector_store %arg7[%c0_7, %c0_8], %9 {strides = array<i32>} : memref<64x128xf32, #tpu.memory_space<vmem>>, vector<64x128xf32>,
    %11 = vector.extract_strided_slice %4 {offsets = [0, 1, 0], sizes = [8, 8, 128], strides = [1, 1, 1]} : vector<10x10x128xbf16> to vector<8x8x128xbf16>
    %12 = vector.shape_cast %11 : vector<8x8x128xbf16> to vector<64x128xbf16>
    %c1 = arith.constant 1 : index
    %c0_9 = arith.constant 0 : index
    %c0_10 = arith.constant 0 : index
    %13 = vector.load %arg2[%c1, %c0_9, %c0_10] : memref<9x128x128xbf16, #tpu.memory_space<vmem>>, vector<1x128x128xbf16>
    %14 = vector.shape_cast %13 : vector<1x128x128xbf16> to vector<128x128xbf16>
    %cst_11 = arith.constant dense<0.000000e+00> : vector<64x128xf32>
    %15 = tpu.matmul %12, %14, %cst_11 {dimension_numbers = #tpu.dot_dimension_numbers<[1], [0], [0], [1], [0, 0, 1, 1], [], []>} : vector<64x128xbf16>, vector<128x128xbf16>, vector<64x128xf32> -> vector<64x128xf32>
    %c0_12 = arith.constant 0 : index
    %c0_13 = arith.constant 0 : index
    %16 = vector.load %arg7[%c0_12, %c0_13] : memref<64x128xf32, #tpu.memory_space<vmem>>, vector<64x128xf32>
    %17 = arith.addf %16, %15 : vector<64x128xf32>
    %c0_14 = arith.constant 0 : index
    %c0_15 = arith.constant 0 : index
    %18 = vector.load %arg7[%c0_14, %c0_15] : memref<64x128xf32, #tpu.memory_space<vmem>>, vector<64x128xf32>
    tpu.vector_store %arg7[%c0_14, %c0_15], %17 {strides = array<i32>} : memref<64x128xf32, #tpu.memory_space<vmem>>, vector<64x128xf32>,
    %19 = vector.extract_strided_slice %4 {offsets = [0, 2, 0], sizes = [8, 8, 128], strides = [1, 1, 1]} : vector<10x10x128xbf16> to vector<8x8x128xbf16>
    %20 = vector.shape_cast %19 : vector<8x8x128xbf16> to vector<64x128xbf16>
    %c2 = arith.constant 2 : index
    %c0_16 = arith.constant 0 : index
    %c0_17 = arith.constant 0 : index
    %21 = vector.load %arg2[%c2, %c0_16, %c0_17] : memref<9x128x128xbf16, #tpu.memory_space<vmem>>, vector<1x128x128xbf16>
    %22 = vector.shape_cast %21 : vector<1x128x128xbf16> to vector<128x128xbf16>
    %cst_18 = arith.constant dense<0.000000e+00> : vector<64x128xf32>
    %23 = tpu.matmul %20, %22, %cst_18 {dimension_numbers = #tpu.dot_dimension_numbers<[1], [0], [0], [1], [0, 0, 1, 1], [], []>} : vector<64x128xbf16>, vector<128x128xbf16>, vector<64x128xf32> -> vector<64x128xf32>
    %c0_19 = arith.constant 0 : index
    %c0_20 = arith.constant 0 : index
    %24 = vector.load %arg7[%c0_19, %c0_20] : memref<64x128xf32, #tpu.memory_space<vmem>>, vector<64x128xf32>
    %25 = arith.addf %24, %23 : vector<64x128xf32>
    %c0_21 = arith.constant 0 : index
    %c0_22 = arith.constant 0 : index
    %26 = vector.load %arg7[%c0_21, %c0_22] : memref<64x128xf32, #tpu.memory_space<vmem>>, vector<64x128xf32>
    tpu.vector_store %arg7[%c0_21, %c0_22], %25 {strides = array<i32>} : memref<64x128xf32, #tpu.memory_space<vmem>>, vector<64x128xf32>,
    %27 = vector.extract_strided_slice %4 {offsets = [1, 0, 0], sizes = [8, 8, 128], strides = [1, 1, 1]} : vector<10x10x128xbf16> to vector<8x8x128xbf16>
    %28 = vector.shape_cast %27 : vector<8x8x128xbf16> to vector<64x128xbf16>
    %c3 = arith.constant 3 : index
    %c0_23 = arith.constant 0 : index
    %c0_24 = arith.constant 0 : index
    %29 = vector.load %arg2[%c3, %c0_23, %c0_24] : memref<9x128x128xbf16, #tpu.memory_space<vmem>>, vector<1x128x128xbf16>
    %30 = vector.shape_cast %29 : vector<1x128x128xbf16> to vector<128x128xbf16>
    %cst_25 = arith.constant dense<0.000000e+00> : vector<64x128xf32>
    %31 = tpu.matmul %28, %30, %cst_25 {dimension_numbers = #tpu.dot_dimension_numbers<[1], [0], [0], [1], [0, 0, 1, 1], [], []>} : vector<64x128xbf16>, vector<128x128xbf16>, vector<64x128xf32> -> vector<64x128xf32>
    %c0_26 = arith.constant 0 : index
    %c0_27 = arith.constant 0 : index
    %32 = vector.load %arg7[%c0_26, %c0_27] : memref<64x128xf32, #tpu.memory_space<vmem>>, vector<64x128xf32>
    %33 = arith.addf %32, %31 : vector<64x128xf32>
    %c0_28 = arith.constant 0 : index
    %c0_29 = arith.constant 0 : index
    %34 = vector.load %arg7[%c0_28, %c0_29] : memref<64x128xf32, #tpu.memory_space<vmem>>, vector<64x128xf32>
    tpu.vector_store %arg7[%c0_28, %c0_29], %33 {strides = array<i32>} : memref<64x128xf32, #tpu.memory_space<vmem>>, vector<64x128xf32>,
    %35 = vector.extract_strided_slice %4 {offsets = [1, 1, 0], sizes = [8, 8, 128], strides = [1, 1, 1]} : vector<10x10x128xbf16> to vector<8x8x128xbf16>
    %36 = vector.shape_cast %35 : vector<8x8x128xbf16> to vector<64x128xbf16>
    %c4 = arith.constant 4 : index
    %c0_30 = arith.constant 0 : index
    %c0_31 = arith.constant 0 : index
    %37 = vector.load %arg2[%c4, %c0_30, %c0_31] : memref<9x128x128xbf16, #tpu.memory_space<vmem>>, vector<1x128x128xbf16>
    %38 = vector.shape_cast %37 : vector<1x128x128xbf16> to vector<128x128xbf16>
    %cst_32 = arith.constant dense<0.000000e+00> : vector<64x128xf32>
    %39 = tpu.matmul %36, %38, %cst_32 {dimension_numbers = #tpu.dot_dimension_numbers<[1], [0], [0], [1], [0, 0, 1, 1], [], []>} : vector<64x128xbf16>, vector<128x128xbf16>, vector<64x128xf32> -> vector<64x128xf32>
    %c0_33 = arith.constant 0 : index
    %c0_34 = arith.constant 0 : index
    %40 = vector.load %arg7[%c0_33, %c0_34] : memref<64x128xf32, #tpu.memory_space<vmem>>, vector<64x128xf32>
    %41 = arith.addf %40, %39 : vector<64x128xf32>
    %c0_35 = arith.constant 0 : index
    %c0_36 = arith.constant 0 : index
    %42 = vector.load %arg7[%c0_35, %c0_36] : memref<64x128xf32, #tpu.memory_space<vmem>>, vector<64x128xf32>
    tpu.vector_store %arg7[%c0_35, %c0_36], %41 {strides = array<i32>} : memref<64x128xf32, #tpu.memory_space<vmem>>, vector<64x128xf32>,
    %43 = vector.extract_strided_slice %4 {offsets = [1, 2, 0], sizes = [8, 8, 128], strides = [1, 1, 1]} : vector<10x10x128xbf16> to vector<8x8x128xbf16>
    %44 = vector.shape_cast %43 : vector<8x8x128xbf16> to vector<64x128xbf16>
    %c5 = arith.constant 5 : index
    %c0_37 = arith.constant 0 : index
    %c0_38 = arith.constant 0 : index
    %45 = vector.load %arg2[%c5, %c0_37, %c0_38] : memref<9x128x128xbf16, #tpu.memory_space<vmem>>, vector<1x128x128xbf16>
    %46 = vector.shape_cast %45 : vector<1x128x128xbf16> to vector<128x128xbf16>
    %cst_39 = arith.constant dense<0.000000e+00> : vector<64x128xf32>
    %47 = tpu.matmul %44, %46, %cst_39 {dimension_numbers = #tpu.dot_dimension_numbers<[1], [0], [0], [1], [0, 0, 1, 1], [], []>} : vector<64x128xbf16>, vector<128x128xbf16>, vector<64x128xf32> -> vector<64x128xf32>
    %c0_40 = arith.constant 0 : index
    %c0_41 = arith.constant 0 : index
    %48 = vector.load %arg7[%c0_40, %c0_41] : memref<64x128xf32, #tpu.memory_space<vmem>>, vector<64x128xf32>
    %49 = arith.addf %48, %47 : vector<64x128xf32>
    %c0_42 = arith.constant 0 : index
    %c0_43 = arith.constant 0 : index
    %50 = vector.load %arg7[%c0_42, %c0_43] : memref<64x128xf32, #tpu.memory_space<vmem>>, vector<64x128xf32>
    tpu.vector_store %arg7[%c0_42, %c0_43], %49 {strides = array<i32>} : memref<64x128xf32, #tpu.memory_space<vmem>>, vector<64x128xf32>,
    %51 = vector.extract_strided_slice %4 {offsets = [2, 0, 0], sizes = [8, 8, 128], strides = [1, 1, 1]} : vector<10x10x128xbf16> to vector<8x8x128xbf16>
    %52 = vector.shape_cast %51 : vector<8x8x128xbf16> to vector<64x128xbf16>
    %c6 = arith.constant 6 : index
    %c0_44 = arith.constant 0 : index
    %c0_45 = arith.constant 0 : index
    %53 = vector.load %arg2[%c6, %c0_44, %c0_45] : memref<9x128x128xbf16, #tpu.memory_space<vmem>>, vector<1x128x128xbf16>
    %54 = vector.shape_cast %53 : vector<1x128x128xbf16> to vector<128x128xbf16>
    %cst_46 = arith.constant dense<0.000000e+00> : vector<64x128xf32>
    %55 = tpu.matmul %52, %54, %cst_46 {dimension_numbers = #tpu.dot_dimension_numbers<[1], [0], [0], [1], [0, 0, 1, 1], [], []>} : vector<64x128xbf16>, vector<128x128xbf16>, vector<64x128xf32> -> vector<64x128xf32>
    %c0_47 = arith.constant 0 : index
    %c0_48 = arith.constant 0 : index
    %56 = vector.load %arg7[%c0_47, %c0_48] : memref<64x128xf32, #tpu.memory_space<vmem>>, vector<64x128xf32>
    %57 = arith.addf %56, %55 : vector<64x128xf32>
    %c0_49 = arith.constant 0 : index
    %c0_50 = arith.constant 0 : index
    %58 = vector.load %arg7[%c0_49, %c0_50] : memref<64x128xf32, #tpu.memory_space<vmem>>, vector<64x128xf32>
    tpu.vector_store %arg7[%c0_49, %c0_50], %57 {strides = array<i32>} : memref<64x128xf32, #tpu.memory_space<vmem>>, vector<64x128xf32>,
    %59 = vector.extract_strided_slice %4 {offsets = [2, 1, 0], sizes = [8, 8, 128], strides = [1, 1, 1]} : vector<10x10x128xbf16> to vector<8x8x128xbf16>
    %60 = vector.shape_cast %59 : vector<8x8x128xbf16> to vector<64x128xbf16>
    %c7 = arith.constant 7 : index
    %c0_51 = arith.constant 0 : index
    %c0_52 = arith.constant 0 : index
    %61 = vector.load %arg2[%c7, %c0_51, %c0_52] : memref<9x128x128xbf16, #tpu.memory_space<vmem>>, vector<1x128x128xbf16>
    %62 = vector.shape_cast %61 : vector<1x128x128xbf16> to vector<128x128xbf16>
    %cst_53 = arith.constant dense<0.000000e+00> : vector<64x128xf32>
    %63 = tpu.matmul %60, %62, %cst_53 {dimension_numbers = #tpu.dot_dimension_numbers<[1], [0], [0], [1], [0, 0, 1, 1], [], []>} : vector<64x128xbf16>, vector<128x128xbf16>, vector<64x128xf32> -> vector<64x128xf32>
    %c0_54 = arith.constant 0 : index
    %c0_55 = arith.constant 0 : index
    %64 = vector.load %arg7[%c0_54, %c0_55] : memref<64x128xf32, #tpu.memory_space<vmem>>, vector<64x128xf32>
    %65 = arith.addf %64, %63 : vector<64x128xf32>
    %c0_56 = arith.constant 0 : index
    %c0_57 = arith.constant 0 : index
    %66 = vector.load %arg7[%c0_56, %c0_57] : memref<64x128xf32, #tpu.memory_space<vmem>>, vector<64x128xf32>
    tpu.vector_store %arg7[%c0_56, %c0_57], %65 {strides = array<i32>} : memref<64x128xf32, #tpu.memory_space<vmem>>, vector<64x128xf32>,
    %67 = vector.extract_strided_slice %4 {offsets = [2, 2, 0], sizes = [8, 8, 128], strides = [1, 1, 1]} : vector<10x10x128xbf16> to vector<8x8x128xbf16>
    %68 = vector.shape_cast %67 : vector<8x8x128xbf16> to vector<64x128xbf16>
    %c8 = arith.constant 8 : index
    %c0_58 = arith.constant 0 : index
    %c0_59 = arith.constant 0 : index
    %69 = vector.load %arg2[%c8, %c0_58, %c0_59] : memref<9x128x128xbf16, #tpu.memory_space<vmem>>, vector<1x128x128xbf16>
    %70 = vector.shape_cast %69 : vector<1x128x128xbf16> to vector<128x128xbf16>
    %cst_60 = arith.constant dense<0.000000e+00> : vector<64x128xf32>
    %71 = tpu.matmul %68, %70, %cst_60 {dimension_numbers = #tpu.dot_dimension_numbers<[1], [0], [0], [1], [0, 0, 1, 1], [], []>} : vector<64x128xbf16>, vector<128x128xbf16>, vector<64x128xf32> -> vector<64x128xf32>
    %c0_61 = arith.constant 0 : index
    %c0_62 = arith.constant 0 : index
    %72 = vector.load %arg7[%c0_61, %c0_62] : memref<64x128xf32, #tpu.memory_space<vmem>>, vector<64x128xf32>
    %73 = arith.addf %72, %71 : vector<64x128xf32>
    %c0_63 = arith.constant 0 : index
    %c0_64 = arith.constant 0 : index
    %74 = vector.load %arg7[%c0_63, %c0_64] : memref<64x128xf32, #tpu.memory_space<vmem>>, vector<64x128xf32>
    tpu.vector_store %arg7[%c0_63, %c0_64], %73 {strides = array<i32>} : memref<64x128xf32, #tpu.memory_space<vmem>>, vector<64x128xf32>,
    %c0_65 = arith.constant 0 : index
    %c0_66 = arith.constant 0 : index
    %75 = vector.load %arg7[%c0_65, %c0_66] : memref<64x128xf32, #tpu.memory_space<vmem>>, vector<64x128xf32>
    %c0_67 = arith.constant 0 : index
    %c0_68 = arith.constant 0 : index
    %76 = vector.load %arg3[%c0_67, %c0_68] : memref<1x128xf32, #tpu.memory_space<vmem>>, vector<1x128xf32>
    %77 = vector.broadcast %76 : vector<1x128xf32> to vector<64x128xf32>
    %78 = arith.addf %75, %77 : vector<64x128xf32>
    %79 = arith.truncf %78 : vector<64x128xf32> to vector<64x128xbf16>
    %80 = vector.shape_cast %79 : vector<64x128xbf16> to vector<1x8x8x128xbf16>
    %c0_69 = arith.constant 0 : index
    %c0_70 = arith.constant 0 : index
    %c0_71 = arith.constant 0 : index
    %c0_72 = arith.constant 0 : index
    %81 = vector.load %arg4[%c0_69, %c0_70, %c0_71, %c0_72] : memref<1x8x8x128xbf16, #tpu.memory_space<vmem>>, vector<1x8x8x128xbf16>
    tpu.vector_store %arg4[%c0_69, %c0_70, %c0_71, %c0_72], %80 {strides = array<i32>} : memref<1x8x8x128xbf16, #tpu.memory_space<vmem>>, vector<1x8x8x128xbf16>,
    %82 = arith.extf %79 : vector<64x128xbf16> to vector<64x128xf32>
    %c0_73 = arith.constant 0 : index
    %c0_74 = arith.constant 0 : index
    %83 = vector.load %arg5[%c0_73, %c0_74] : memref<1x128xf32, #tpu.memory_space<vmem>>, vector<1x128xf32>
    %cst_75 = arith.constant dense<0.000000e+00> : vector<128xf32>
    %84 = vector.multi_reduction <add>, %82, %cst_75 [0] : vector<64x128xf32> to vector<128xf32>
    %85 = vector.shape_cast %84 : vector<128xf32> to vector<1x128xf32>
    %86 = arith.addf %83, %85 : vector<1x128xf32>
    %c0_76 = arith.constant 0 : index
    %c0_77 = arith.constant 0 : index
    %87 = vector.load %arg5[%c0_76, %c0_77] : memref<1x128xf32, #tpu.memory_space<vmem>>, vector<1x128xf32>
    tpu.vector_store %arg5[%c0_76, %c0_77], %86 {strides = array<i32>} : memref<1x128xf32, #tpu.memory_space<vmem>>, vector<1x128xf32>,
    %c0_78 = arith.constant 0 : index
    %c0_79 = arith.constant 0 : index
    %88 = vector.load %arg6[%c0_78, %c0_79] : memref<1x128xf32, #tpu.memory_space<vmem>>, vector<1x128xf32>
    %89 = arith.mulf %82, %82 : vector<64x128xf32>
    %cst_80 = arith.constant dense<0.000000e+00> : vector<128xf32>
    %90 = vector.multi_reduction <add>, %89, %cst_80 [0] : vector<64x128xf32> to vector<128xf32>
    %91 = vector.shape_cast %90 : vector<128xf32> to vector<1x128xf32>
    %92 = arith.addf %88, %91 : vector<1x128xf32>
    %c0_81 = arith.constant 0 : index
    %c0_82 = arith.constant 0 : index
    %93 = vector.load %arg6[%c0_81, %c0_82] : memref<1x128xf32, #tpu.memory_space<vmem>>, vector<1x128xf32>
    tpu.vector_store %arg6[%c0_81, %c0_82], %92 {strides = array<i32>} : memref<1x128xf32, #tpu.memory_space<vmem>>, vector<1x128xf32>,
    return
  }
  func.func @transform_0(%arg0: i32) -> (i32, i32, i32, i32) {
    %c0_i32 = arith.constant 0 : i32
    %c0_i32_0 = arith.constant 0 : i32
    %c0_i32_1 = arith.constant 0 : i32
    %c0_i32_2 = arith.constant 0 : i32
    return %arg0, %c0_i32, %c0_i32_0, %c0_i32_1 : i32, i32, i32, i32
  }
  func.func @transform_1(%arg0: i32) -> (i32, i32, i32) {
    %c0_i32 = arith.constant 0 : i32
    %c0_i32_0 = arith.constant 0 : i32
    %c0_i32_1 = arith.constant 0 : i32
    %c0_i32_2 = arith.constant 0 : i32
    return %c0_i32, %c0_i32_0, %c0_i32_1 : i32, i32, i32
  }
  func.func @transform_2(%arg0: i32) -> (i32, i32) {
    %c0_i32 = arith.constant 0 : i32
    %c0_i32_0 = arith.constant 0 : i32
    %c0_i32_1 = arith.constant 0 : i32
    return %c0_i32, %c0_i32_0 : i32, i32
  }
  func.func @transform_3(%arg0: i32) -> (i32, i32, i32, i32) {
    %c0_i32 = arith.constant 0 : i32
    %c0_i32_0 = arith.constant 0 : i32
    %c0_i32_1 = arith.constant 0 : i32
    %c0_i32_2 = arith.constant 0 : i32
    return %arg0, %c0_i32, %c0_i32_0, %c0_i32_1 : i32, i32, i32, i32
  }
  func.func @transform_4(%arg0: i32) -> (i32, i32) {
    %c0_i32 = arith.constant 0 : i32
    %c0_i32_0 = arith.constant 0 : i32
    %c0_i32_1 = arith.constant 0 : i32
    return %c0_i32, %c0_i32_0 : i32, i32
  }
  func.func @transform_5(%arg0: i32) -> (i32, i32) {
    %c0_i32 = arith.constant 0 : i32
    %c0_i32_0 = arith.constant 0 : i32
    %c0_i32_1 = arith.constant 0 : i32
    return %c0_i32, %c0_i32_0 : i32, i32
  }
}

module attributes {stable_mosaic.version = 11 : i64} {
  func.func @_bn_proj_res_act_kernel(%arg0: i32, %arg1: memref<1x8x8x128xbf16, #tpu.memory_space<vmem>>, %arg2: memref<1x128xf32, #tpu.memory_space<vmem>>, %arg3: memref<1x128xf32, #tpu.memory_space<vmem>>, %arg4: memref<1x8x8x128xbf16, #tpu.memory_space<vmem>>, %arg5: memref<128x128xbf16, #tpu.memory_space<vmem>>, %arg6: memref<1x128xf32, #tpu.memory_space<vmem>>, %arg7: memref<1x8x8x128xf32, #tpu.memory_space<vmem>>) attributes {dimension_semantics = [#tpu.dimension_semantics<parallel>], iteration_bounds = array<i64: 2>, scalar_prefetch = 0 : i64, scratch_operands = 0 : i64, tpu.core_type = #tpu.core_type<tc>, window_params = [{transform_indices = @transform_0, window_bounds = array<i64: 1, 8, 8, 128>}, {pipeline_mode = #tpu.pipeline_mode<synchronous>, transform_indices = @transform_1, window_bounds = array<i64: 1, 128>}, {pipeline_mode = #tpu.pipeline_mode<synchronous>, transform_indices = @transform_2, window_bounds = array<i64: 1, 128>}, {transform_indices = @transform_3, window_bounds = array<i64: 1, 8, 8, 128>}, {pipeline_mode = #tpu.pipeline_mode<synchronous>, transform_indices = @transform_4, window_bounds = array<i64: 128, 128>}, {pipeline_mode = #tpu.pipeline_mode<synchronous>, transform_indices = @transform_5, window_bounds = array<i64: 1, 128>}, {transform_indices = @transform_6, window_bounds = array<i64: 1, 8, 8, 128>}]} {
    %c0 = arith.constant 0 : index
    %c0_0 = arith.constant 0 : index
    %c0_1 = arith.constant 0 : index
    %c0_2 = arith.constant 0 : index
    %0 = vector.load %arg4[%c0, %c0_0, %c0_1, %c0_2] : memref<1x8x8x128xbf16, #tpu.memory_space<vmem>>, vector<1x8x8x128xbf16>
    %1 = vector.shape_cast %0 : vector<1x8x8x128xbf16> to vector<8x8x128xbf16>
    %2 = vector.shape_cast %1 : vector<8x8x128xbf16> to vector<64x128xbf16>
    %c0_3 = arith.constant 0 : index
    %c0_4 = arith.constant 0 : index
    %3 = vector.load %arg5[%c0_3, %c0_4] : memref<128x128xbf16, #tpu.memory_space<vmem>>, vector<128x128xbf16>
    %cst = arith.constant dense<0.000000e+00> : vector<64x128xf32>
    %4 = tpu.matmul %2, %3, %cst {dimension_numbers = #tpu.dot_dimension_numbers<[1], [0], [0], [1], [0, 0, 1, 1], [], []>} : vector<64x128xbf16>, vector<128x128xbf16>, vector<64x128xf32> -> vector<64x128xf32>
    %c0_5 = arith.constant 0 : index
    %c0_6 = arith.constant 0 : index
    %5 = vector.load %arg6[%c0_5, %c0_6] : memref<1x128xf32, #tpu.memory_space<vmem>>, vector<1x128xf32>
    %6 = vector.broadcast %5 : vector<1x128xf32> to vector<64x128xf32>
    %7 = arith.addf %4, %6 : vector<64x128xf32>
    %c0_7 = arith.constant 0 : index
    %c0_8 = arith.constant 0 : index
    %c0_9 = arith.constant 0 : index
    %c0_10 = arith.constant 0 : index
    %8 = vector.load %arg1[%c0_7, %c0_8, %c0_9, %c0_10] : memref<1x8x8x128xbf16, #tpu.memory_space<vmem>>, vector<1x8x8x128xbf16>
    %9 = arith.extf %8 : vector<1x8x8x128xbf16> to vector<1x8x8x128xf32>
    %c0_11 = arith.constant 0 : index
    %c0_12 = arith.constant 0 : index
    %10 = vector.load %arg2[%c0_11, %c0_12] : memref<1x128xf32, #tpu.memory_space<vmem>>, vector<1x128xf32>
    %11 = vector.shape_cast %10 : vector<1x128xf32> to vector<1x1x1x128xf32>
    %12 = vector.broadcast %11 : vector<1x1x1x128xf32> to vector<1x8x8x128xf32>
    %13 = arith.mulf %9, %12 : vector<1x8x8x128xf32>
    %c0_13 = arith.constant 0 : index
    %c0_14 = arith.constant 0 : index
    %14 = vector.load %arg3[%c0_13, %c0_14] : memref<1x128xf32, #tpu.memory_space<vmem>>, vector<1x128xf32>
    %15 = vector.shape_cast %14 : vector<1x128xf32> to vector<1x1x1x128xf32>
    %16 = vector.broadcast %15 : vector<1x1x1x128xf32> to vector<1x8x8x128xf32>
    %17 = arith.addf %13, %16 : vector<1x8x8x128xf32>
    %18 = vector.shape_cast %7 : vector<64x128xf32> to vector<1x8x8x128xf32>
    %19 = arith.addf %17, %18 : vector<1x8x8x128xf32>
    %cst_15 = arith.constant 0.000000e+00 : f32
    %20 = vector.broadcast %cst_15 : f32 to vector<1x8x8x128xf32>
    %21 = arith.cmpf oge, %19, %20 : vector<1x8x8x128xf32>
    %cst_16 = arith.constant 0.00999999977 : f32
    %22 = vector.broadcast %cst_16 : f32 to vector<1x8x8x128xf32>
    %23 = arith.mulf %22, %19 : vector<1x8x8x128xf32>
    %24 = arith.select %21, %19, %23 : vector<1x8x8x128xi1>, vector<1x8x8x128xf32>
    %c0_17 = arith.constant 0 : index
    %c0_18 = arith.constant 0 : index
    %c0_19 = arith.constant 0 : index
    %c0_20 = arith.constant 0 : index
    %25 = vector.load %arg7[%c0_17, %c0_18, %c0_19, %c0_20] : memref<1x8x8x128xf32, #tpu.memory_space<vmem>>, vector<1x8x8x128xf32>
    tpu.vector_store %arg7[%c0_17, %c0_18, %c0_19, %c0_20], %24 {strides = array<i32>} : memref<1x8x8x128xf32, #tpu.memory_space<vmem>>, vector<1x8x8x128xf32>,
    return
  }
  func.func @transform_0(%arg0: i32) -> (i32, i32, i32, i32) {
    %c0_i32 = arith.constant 0 : i32
    %c0_i32_0 = arith.constant 0 : i32
    %c0_i32_1 = arith.constant 0 : i32
    %c0_i32_2 = arith.constant 0 : i32
    return %arg0, %c0_i32, %c0_i32_0, %c0_i32_1 : i32, i32, i32, i32
  }
  func.func @transform_1(%arg0: i32) -> (i32, i32) {
    %c0_i32 = arith.constant 0 : i32
    %c0_i32_0 = arith.constant 0 : i32
    %c0_i32_1 = arith.constant 0 : i32
    return %c0_i32, %c0_i32_0 : i32, i32
  }
  func.func @transform_2(%arg0: i32) -> (i32, i32) {
    %c0_i32 = arith.constant 0 : i32
    %c0_i32_0 = arith.constant 0 : i32
    %c0_i32_1 = arith.constant 0 : i32
    return %c0_i32, %c0_i32_0 : i32, i32
  }
  func.func @transform_3(%arg0: i32) -> (i32, i32, i32, i32) {
    %c0_i32 = arith.constant 0 : i32
    %c0_i32_0 = arith.constant 0 : i32
    %c0_i32_1 = arith.constant 0 : i32
    %c0_i32_2 = arith.constant 0 : i32
    return %arg0, %c0_i32, %c0_i32_0, %c0_i32_1 : i32, i32, i32, i32
  }
  func.func @transform_4(%arg0: i32) -> (i32, i32) {
    %c0_i32 = arith.constant 0 : i32
    %c0_i32_0 = arith.constant 0 : i32
    %c0_i32_1 = arith.constant 0 : i32
    return %c0_i32, %c0_i32_0 : i32, i32
  }
  func.func @transform_5(%arg0: i32) -> (i32, i32) {
    %c0_i32 = arith.constant 0 : i32
    %c0_i32_0 = arith.constant 0 : i32
    %c0_i32_1 = arith.constant 0 : i32
    return %c0_i32, %c0_i32_0 : i32, i32
  }
  func.func @transform_6(%arg0: i32) -> (i32, i32, i32, i32) {
    %c0_i32 = arith.constant 0 : i32
    %c0_i32_0 = arith.constant 0 : i32
    %c0_i32_1 = arith.constant 0 : i32
    %c0_i32_2 = arith.constant 0 : i32
    return %arg0, %c0_i32, %c0_i32_0, %c0_i32_1 : i32, i32, i32, i32
  }
}

</mosaic_0001>

<llo_original>
// kernel: res_unit_forward.5
$region0: #{res_unit_forward.5}
  #allocation0 [shape = 'u32[]', space=smem, size = 0x4, offset = 0x4, fixed_abs, tag = 'smem constant byte address 0x4 - core index']
  #allocation1 [shape = 'u32[144,128]{1,0:T(1,128)}', space=vmem, size = 0x12000, scoped, tag = 'internal scratch']
  %s0 = inlined_call_operand.vmem [shape: bf16[2,8,8,128], index: 0, kind: input, shape index: {}]
  %s1 = inlined_call_operand.vmem [shape: f32[1,128], index: 1, kind: input, shape index: {}]
  %s2 = inlined_call_operand.vmem [shape: f32[1,128], index: 2, kind: input, shape index: {}]
  %s3 = inlined_call_operand.vmem [shape: bf16[2,8,8,128], index: 3, kind: input, shape index: {}]
  %s4 = inlined_call_operand.vmem [shape: bf16[128,128], index: 4, kind: input, shape index: {}]
  %s5 = inlined_call_operand.vmem [shape: f32[1,128], index: 5, kind: input, shape index: {}]
  %s6 = inlined_call_operand.vmem [shape: f32[2,8,8,128], index: 6, kind: output, shape index: {}]
  %s7 = sld [smem:[#allocation0]]
  $region57: #{res_unit_forward.5} parent=0
    _
  %s9 = ssub.s32 1, %s7
  %s10 = scalar_select 0, %s9, %s7
  loop: start=0, step=1, limit=4
  $region2: #{res_unit_forward.5} parent=0 // loop_pre_header
    _
  $region3: #{res_unit_forward.5} parent=0 // loop_header
    %s12 = sphi 0, %s16
    %p13 = scmp.ge.s32.totalorder %s12, 4
    %s22 = sphi 0, %s24
    %s25 = sphi 0, %s22
    %s26 = sphi 0, %s25
    %s42 = sphi 0, %s26
    %s46 = sphi 0, %s46
    %s48 = sphi 0, %s46
    %s49 = sphi 0, %s48
    %s63 = sphi 0, %s49
    %s67 = sphi 0, %s67
    %s69 = sphi 0, %s67
    %s70 = sphi 0, %s69
    %s84 = sphi 0, %s70
    %s90 = sphi 0, %s92
    %s93 = sphi 0, %s90
    %s94 = sphi 0, %s93
    %s110 = sphi 0, %s94
    %s114 = sphi 0, %s114
    %s116 = sphi 0, %s114
    %s117 = sphi 0, %s116
    %s131 = sphi 0, %s117
    %s135 = sphi 0, %s135
    %s137 = sphi 0, %s135
    %s138 = sphi 0, %s137
    %s152 = sphi 0, %s138
    %s158 = sphi 0, %s160
    %s161 = sphi 0, %s158
    %s162 = sphi 0, %s161
    %s178 = sphi 0, %s162
  $region4: #{res_unit_forward.5} parent=0 // loop_header_branch
    %15 = sbr.rel (%p13) target = $region8
  $region5: #{res_unit_forward.5} parent=0 // loop_body
    %s17 = ssub.s32 %s12, 1
    %s18 = ssub.s32 %s12, 2
    %s19 = sadd.s32 %s12, 1
    %s20 = ssub.s32 %s12, %s19
    %p21 = scmp.eq.s32.totalorder %s20, 0
    %s23 = sadd.s32 %s22, 1
    %s24 = scalar_select %p21, %s22, %s23
    %p27 = pneg %p21
    %p28 = scmp.eq.s32.totalorder %s12, 1
    %p29 = por %p27, %p28
    %p30 = scmp.ne.s32.totalorder %s22, %s25
    %p31 = scmp.eq.s32.totalorder %s12, 0
    %p32 = por %p30, %p31
    %p33 = scmp.ne.s32.totalorder %s22, %s25
    %p34 = scmp.eq.s32.totalorder %s17, 1
    %p35 = por %p33, %p34
    %p36 = scmp.ne.s32.totalorder %s25, %s26
    %p37 = scmp.eq.s32.totalorder %s17, 0
    %p38 = por %p36, %p37
    %p39 = scmp.ne.s32.totalorder %s25, %s26
    %p40 = scmp.eq.s32.totalorder %s18, 1
    %p41 = por %p39, %p40
    %p43 = scmp.ne.s32.totalorder %s26, %s42
    %p44 = scmp.eq.s32.totalorder %s18, 0
    %p45 = por %p43, %p44
    %s47 = sadd.s32 %s46, 1
    %p50 = scmp.eq.s32.totalorder %s12, 1
    %p51 = scmp.ne.s32.totalorder %s46, %s48
    %p52 = scmp.eq.s32.totalorder %s12, 0
    %p53 = por %p51, %p52
    %p54 = scmp.ne.s32.totalorder %s46, %s48
    %p55 = scmp.eq.s32.totalorder %s17, 1
    %p56 = por %p54, %p55
    %p57 = scmp.ne.s32.totalorder %s48, %s49
    %p58 = scmp.eq.s32.totalorder %s17, 0
    %p59 = por %p57, %p58
    %p60 = scmp.ne.s32.totalorder %s48, %s49
    %p61 = scmp.eq.s32.totalorder %s18, 1
    %p62 = por %p60, %p61
    %p64 = scmp.ne.s32.totalorder %s49, %s63
    %p65 = scmp.eq.s32.totalorder %s18, 0
    %p66 = por %p64, %p65
    %s68 = sadd.s32 %s67, 1
    %p71 = scmp.eq.s32.totalorder %s12, 1
    %p72 = scmp.ne.s32.totalorder %s67, %s69
    %p73 = scmp.eq.s32.totalorder %s12, 0
    %p74 = por %p72, %p73
    %p75 = scmp.ne.s32.totalorder %s67, %s69
    %p76 = scmp.eq.s32.totalorder %s17, 1
    %p77 = por %p75, %p76
    %p78 = scmp.ne.s32.totalorder %s69, %s70
    %p79 = scmp.eq.s32.totalorder %s17, 0
    %p80 = por %p78, %p79
    %p81 = scmp.ne.s32.totalorder %s69, %s70
    %p82 = scmp.eq.s32.totalorder %s18, 1
    %p83 = por %p81, %p82
    %p85 = scmp.ne.s32.totalorder %s70, %s84
    %p86 = scmp.eq.s32.totalorder %s18, 0
    %p87 = por %p85, %p86
    %s88 = ssub.s32 %s12, %s19
    %p89 = scmp.eq.s32.totalorder %s88, 0
    %s91 = sadd.s32 %s90, 1
    %s92 = scalar_select %p89, %s90, %s91
    %p95 = pneg %p89
    %p96 = scmp.eq.s32.totalorder %s12, 1
    %p97 = por %p95, %p96
    %p98 = scmp.ne.s32.totalorder %s90, %s93
    %p99 = scmp.eq.s32.totalorder %s12, 0
    %p100 = por %p98, %p99
    %p101 = scmp.ne.s32.totalorder %s90, %s93
    %p102 = scmp.eq.s32.totalorder %s17, 1
    %p103 = por %p101, %p102
    %p104 = scmp.ne.s32.totalorder %s93, %s94
    %p105 = scmp.eq.s32.totalorder %s17, 0
    %p106 = por %p104, %p105
    %p107 = scmp.ne.s32.totalorder %s93, %s94
    %p108 = scmp.eq.s32.totalorder %s18, 1
    %p109 = por %p107, %p108
    %p111 = scmp.ne.s32.totalorder %s94, %s110
    %p112 = scmp.eq.s32.totalorder %s18, 0
    %p113 = por %p111, %p112
    %s115 = sadd.s32 %s114, 1
    %p118 = scmp.eq.s32.totalorder %s12, 1
    %p119 = scmp.ne.s32.totalorder %s114, %s116
    %p120 = scmp.eq.s32.totalorder %s12, 0
    %p121 = por %p119, %p120
    %p122 = scmp.ne.s32.totalorder %s114, %s116
    %p123 = scmp.eq.s32.totalorder %s17, 1
    %p124 = por %p122, %p123
    %p125 = scmp.ne.s32.totalorder %s116, %s117
    %p126 = scmp.eq.s32.totalorder %s17, 0
    %p127 = por %p125, %p126
    %p128 = scmp.ne.s32.totalorder %s116, %s117
    %p129 = scmp.eq.s32.totalorder %s18, 1
    %p130 = por %p128, %p129
    %p132 = scmp.ne.s32.totalorder %s117, %s131
    %p133 = scmp.eq.s32.totalorder %s18, 0
    %p134 = por %p132, %p133
    %s136 = sadd.s32 %s135, 1
    %p139 = scmp.eq.s32.totalorder %s12, 1
    %p140 = scmp.ne.s32.totalorder %s135, %s137
    %p141 = scmp.eq.s32.totalorder %s12, 0
    %p142 = por %p140, %p141
    %p143 = scmp.ne.s32.totalorder %s135, %s137
    %p144 = scmp.eq.s32.totalorder %s17, 1
    %p145 = por %p143, %p144
    %p146 = scmp.ne.s32.totalorder %s137, %s138
    %p147 = scmp.eq.s32.totalorder %s17, 0
    %p148 = por %p146, %p147
    %p149 = scmp.ne.s32.totalorder %s137, %s138
    %p150 = scmp.eq.s32.totalorder %s18, 1
    %p151 = por %p149, %p150
    %p153 = scmp.ne.s32.totalorder %s138, %s152
    %p154 = scmp.eq.s32.totalorder %s18, 0
    %p155 = por %p153, %p154
    %s156 = ssub.s32 %s12, %s19
    %p157 = scmp.eq.s32.totalorder %s156, 0
    %s159 = sadd.s32 %s158, 1
    %s160 = scalar_select %p157, %s158, %s159
    %p163 = pneg %p157
    %p164 = scmp.eq.s32.totalorder %s12, 1
    %p165 = por %p163, %p164
    %p166 = scmp.ne.s32.totalorder %s158, %s161
    %p167 = scmp.eq.s32.totalorder %s12, 0
    %p168 = por %p166, %p167
    %p169 = scmp.ne.s32.totalorder %s158, %s161
    %p170 = scmp.eq.s32.totalorder %s17, 1
    %p171 = por %p169, %p170
    %p172 = scmp.ne.s32.totalorder %s161, %s162
    %p173 = scmp.eq.s32.totalorder %s17, 0
    %p174 = por %p172, %p173
    %p175 = scmp.ne.s32.totalorder %s161, %s162
    %p176 = scmp.eq.s32.totalorder %s18, 1
    %p177 = por %p175, %p176
    %p179 = scmp.ne.s32.totalorder %s162, %s178
    %p180 = scmp.eq.s32.totalorder %s18, 0
    %p181 = por %p179, %p180
    %p182 = scmp.le.s32.totalorder 1, %s12
    %p183 = scmp.lt.s32.totalorder %s12, 3
    %p184 = pnand %p182, %p183
    %p185 = pneg %p184
    // Predicated region
    $region9: #{res_unit_forward.5} parent=5 // pred_check
      _
    $region10: #{res_unit_forward.5} parent=5 // pred_check_branch
      %187 = sbr.rel (%p184) target = $region12
    $region11: #{res_unit_forward.5} parent=5 // pred_region
      %s188 = ssub.s32 %s12, 1
      // Predicated region
      $region13: #{res_unit_forward.5} parent=11 // pred_check
        %p189 = pneg %p59
      $region14: #{res_unit_forward.5} parent=11 // pred_check_branch
        %191 = sbr.rel (%p189) target = $region16
      $region15: #{res_unit_forward.5} parent=11 // pred_region
        _
      $region16: #{res_unit_forward.5} parent=11 // pred_fallthru
        _
      // Predicated region
      $region17: #{res_unit_forward.5} parent=11 // pred_check
        %p192 = pneg %p80
      $region18: #{res_unit_forward.5} parent=11 // pred_check_branch
        %194 = sbr.rel (%p192) target = $region20
      $region19: #{res_unit_forward.5} parent=11 // pred_region
        _
      $region20: #{res_unit_forward.5} parent=11 // pred_fallthru
        _
      // Predicated region
      $region21: #{res_unit_forward.5} parent=11 // pred_check
        %p195 = pneg %p127
      $region22: #{res_unit_forward.5} parent=11 // pred_check_branch
        %197 = sbr.rel (%p195) target = $region24
      $region23: #{res_unit_forward.5} parent=11 // pred_region
        _
      $region24: #{res_unit_forward.5} parent=11 // pred_fallthru
        _
      // Predicated region
      $region25: #{res_unit_forward.5} parent=11 // pred_check
        %p198 = pneg %p148
      $region26: #{res_unit_forward.5} parent=11 // pred_check_branch
        %200 = sbr.rel (%p198) target = $region28
      $region27: #{res_unit_forward.5} parent=11 // pred_region
        _
      $region28: #{res_unit_forward.5} parent=11 // pred_fallthru
        _
    $region12: #{res_unit_forward.5} parent=5 // pred_fallthru
      _
    %p201 = scmp.lt.s32.totalorder %s12, 2
    // Predicated region
    $region29: #{res_unit_forward.5} parent=5 // pred_check
      %p202 = pneg %p201
    $region30: #{res_unit_forward.5} parent=5 // pred_check_branch
      %204 = sbr.rel (%p202) target = $region32
    $region31: #{res_unit_forward.5} parent=5 // pred_region
      // Predicated region
      $region33: #{res_unit_forward.5} parent=31 // pred_check
        %p205 = pneg %p32
      $region34: #{res_unit_forward.5} parent=31 // pred_check_branch
        %207 = sbr.rel (%p205) target = $region36
      $region35: #{res_unit_forward.5} parent=31 // pred_region
        %p208 = scmp.lt.s32.totalorder %s12, 1
        %s209 = scalar_select %p208, %s12, 1
        %s210 = smul.addr %s209, 8
        %s211 = smul.addr %s210, 4
        %s212 = scalar_lea.vmem %s0, %s211
      $region36: #{res_unit_forward.5} parent=31 // pred_fallthru
        _
      // Predicated region
      $region37: #{res_unit_forward.5} parent=31 // pred_check
        %p213 = pneg %p100
      $region38: #{res_unit_forward.5} parent=31 // pred_check_branch
        %215 = sbr.rel (%p213) target = $region40
      $region39: #{res_unit_forward.5} parent=31 // pred_region
        %p216 = scmp.lt.s32.totalorder %s12, 1
        %s217 = scalar_select %p216, %s12, 1
        %s218 = smul.addr %s217, 8
        %s219 = smul.addr %s218, 4
        %s220 = scalar_lea.vmem %s3, %s219
      $region40: #{res_unit_forward.5} parent=31 // pred_fallthru
        _
    $region32: #{res_unit_forward.5} parent=5 // pred_fallthru
      _
    %p221 = scmp.le.s32.totalorder 1, %s12
    %p222 = scmp.lt.s32.totalorder %s12, 3
    %p223 = pnand %p221, %p222
    %p224 = pneg %p223
    // Predicated region
    $region41: #{res_unit_forward.5} parent=5 // pred_check
      _
    $region42: #{res_unit_forward.5} parent=5 // pred_check_branch
      %226 = sbr.rel (%p223) target = $region44
    $region43: #{res_unit_forward.5} parent=5 // pred_region
      %s227 = ssub.s32 %s12, 1
      %p228 = scmp.lt.s32.totalorder %s17, 1
      %s229 = scalar_select %p228, %s17, 1
      %s230 = smul.addr %s229, 8
      %s231 = smul.addr %s230, 4
      %s232 = scalar_lea.vmem %s0, %s231
      %p233 = pneg %p38
      %p234 = pneg %p35
      %p235 = pneg %p59
      %p236 = pneg %p56
      %p237 = pneg %p80
      %p238 = pneg %p77
      %p239 = scmp.lt.s32.totalorder %s17, 1
      %s240 = scalar_select %p239, %s17, 1
      %s241 = smul.addr %s240, 8
      %s242 = smul.addr %s241, 4
      %s243 = scalar_lea.vmem %s3, %s242
      %p244 = pneg %p106
      %p245 = pneg %p103
      %p246 = pneg %p127
      %p247 = pneg %p124
      %p248 = pneg %p148
      %p249 = pneg %p145
      %p250 = pneg %p174
      %p251 = pneg %p171
      %p252 = scmp.lt.s32.totalorder %s17, 1
      %s253 = scalar_select %p252, %s17, 1
      %s254 = smul.addr %s253, 8
      %s255 = smul.addr %s254, 8
      %s256 = scalar_lea.vmem %s6, %s255
      %p257 = scmp.lt.s32.totalorder %s17, 1
      %s258 = scalar_select %p257, %s17, 1
      %s259 = smul.addr %s258, 8
      %s260 = smul.addr %s259, 4
      %s261 = scalar_lea.vmem %s0, %s260
      %p262 = scmp.lt.s32.totalorder %s17, 1
      %s263 = scalar_select %p262, %s17, 1
      %s264 = smul.addr %s263, 8
      %s265 = smul.addr %s264, 4
      %s266 = scalar_lea.vmem %s3, %s265
      %p267 = scmp.lt.s32.totalorder %s17, 1
      %s268 = scalar_select %p267, %s17, 1
      %s269 = smul.addr %s268, 8
      %s270 = smul.addr %s269, 8
      %s271 = scalar_lea.vmem %s6, %s270
      %v273 = vld [vmem:[%s266] sm:$0xf]
      %v274 = vld [vmem:[%s266 + $0x4] sm:$0xf]
      %v275 = vld [vmem:[%s266 + $0x8] sm:$0xf]
      %v276 = vld [vmem:[%s266 + $0xc] sm:$0xf]
      %v277 = vld [vmem:[%s266 + $0x10] sm:$0xf]
      %v278 = vld [vmem:[%s266 + $0x14] sm:$0xf]
      %v279 = vld [vmem:[%s266 + $0x18] sm:$0xf]
      %v280 = vld [vmem:[%s266 + $0x1c] sm:$0xf]
      %v281 = vld [vmem:[%s4] sm:$0xf]
      %v282 = vld [vmem:[%s4 + $0x4] sm:$0xf]
      %v283 = vld [vmem:[%s4 + $0x8] sm:$0xf]
      %v284 = vld [vmem:[%s4 + $0xc] sm:$0xf]
      %v285 = vld [vmem:[%s4 + $0x10] sm:$0xf]
      %v286 = vld [vmem:[%s4 + $0x14] sm:$0xf]
      %v287 = vld [vmem:[%s4 + $0x18] sm:$0xf]
      %v288 = vld [vmem:[%s4 + $0x1c] sm:$0xf]
      %v289 = vld [vmem:[%s4 + $0x20] sm:$0xf]
      %v290 = vld [vmem:[%s4 + $0x24] sm:$0xf]
      %v291 = vld [vmem:[%s4 + $0x28] sm:$0xf]
      %v292 = vld [vmem:[%s4 + $0x2c] sm:$0xf]
      %v293 = vld [vmem:[%s4 + $0x30] sm:$0xf]
      %v294 = vld [vmem:[%s4 + $0x34] sm:$0xf]
      %v295 = vld [vmem:[%s4 + $0x38] sm:$0xf]
      %v296 = vld [vmem:[%s4 + $0x3c] sm:$0xf]
      %v297 = vld [vmem:[%s5] sm:$0x1]
      %v299 = vlaneseq
      %v300 = vshrl.u32 %v299, 7
      %v301 = vsub.s32 0, %v300
      %v302 = vrot.slane %v297, %v301
      %v312 = vunpack.c.l.b16 %v273
      %v313 = vunpack.c.l.b16 %v274
      %v314 = vunpack.c.l.b16 %v275
      %v315 = vunpack.c.l.b16 %v276
      %v316 = vunpack.c.l.b16 %v277
      %v317 = vunpack.c.l.b16 %v278
      %v318 = vunpack.c.l.b16 %v279
      %v319 = vunpack.c.l.b16 %v280
      %v320 = vpack.c.b16 %v313, %v312
      %v321 = vpack.c.b16 %v315, %v314
      %v322 = vpack.c.b16 %v317, %v316
      %v323 = vpack.c.b16 %v319, %v318
      %v344 = vunpack.c.l.b16 %v281
      %v345 = vunpack.c.l.b16 %v282
      %v346 = vunpack.c.l.b16 %v283
      %v347 = vunpack.c.l.b16 %v284
      %v348 = vunpack.c.l.b16 %v285
      %v349 = vunpack.c.l.b16 %v286
      %v350 = vunpack.c.l.b16 %v287
      %v351 = vunpack.c.l.b16 %v288
      %v352 = vunpack.c.l.b16 %v289
      %v353 = vunpack.c.l.b16 %v290
      %v354 = vunpack.c.l.b16 %v291
      %v355 = vunpack.c.l.b16 %v292
      %v356 = vunpack.c.l.b16 %v293
      %v357 = vunpack.c.l.b16 %v294
      %v358 = vunpack.c.l.b16 %v295
      %v359 = vunpack.c.l.b16 %v296
      %v360 = vpack.c.b16 %v345, %v344
      %v361 = vpack.c.b16 %v347, %v346
      %v362 = vpack.c.b16 %v349, %v348
      %v363 = vpack.c.b16 %v351, %v350
      %v364 = vpack.c.b16 %v353, %v352
      %v365 = vpack.c.b16 %v355, %v354
      %v366 = vpack.c.b16 %v357, %v356
      %v367 = vpack.c.b16 %v359, %v358
      %376 = vmatprep.subr.bf16.mxu0 0
      %377 = vmatpush1.bf16.msra.mxu0 %v360
      %378 = vmatprep.subr.bf16.mxu0 0
      %379 = vmatpush1.bf16.msra.mxu0 %v361
      %380 = vmatprep.subr.bf16.mxu0 0
      %381 = vmatpush1.bf16.msra.mxu0 %v362
      %382 = vmatprep.subr.bf16.mxu0 0
      %383 = vmatpush1.bf16.msra.mxu0 %v363
      %384 = vmatprep.subr.bf16.mxu0 0
      %385 = vmatpush1.bf16.msra.mxu0 %v364
      %386 = vmatprep.subr.bf16.mxu0 0
      %387 = vmatpush1.bf16.msra.mxu0 %v365
      %388 = vmatprep.subr.bf16.mxu0 0
      %389 = vmatpush1.bf16.msra.mxu0 %v366
      %390 = vmatprep.subr.bf16.mxu0 0
      %391 = vmatpush1.bf16.msra.mxu0 %v367
      %392 = vmatprep.subr.bf16.mxu0 0
      %393 = vmatpush1.bf16.msra.mxu0 0
      %394 = vmatprep.subr.bf16.mxu0 0
      %395 = vmatpush1.bf16.msra.mxu0 0
      %396 = vmatprep.subr.bf16.mxu0 0
      %397 = vmatpush1.bf16.msra.mxu0 0
      %398 = vmatprep.subr.bf16.mxu0 0
      %399 = vmatpush1.bf16.msra.mxu0 0
      %400 = vmatprep.subr.bf16.mxu0 0
      %401 = vmatpush1.bf16.msra.mxu0 0
      %402 = vmatprep.subr.bf16.mxu0 0
      %403 = vmatpush1.bf16.msra.mxu0 0
      %404 = vmatprep.subr.bf16.mxu0 0
      %405 = vmatpush1.bf16.msra.mxu0 0
      %406 = vmatprep.subr.bf16.mxu0 0
      %407 = vmatpush1.bf16.msra.mxu0 0
      %408 = vmatprep.mubr.bf16.mxu0 0
      %409 = vmatmul.mubr.bf16.gmra.mrb[0].mxu0 %v320
      %v410 = vpop.f32.mrb[0].mxu0
      %v411 = vadd.f32 %v302, %v410
      %v412 = vpop.f32.mrb[0].mxu0
      %v413 = vpop.f32.mrb[0].mxu0
      %v414 = vadd.f32 %v302, %v413
      %v415 = vpop.f32.mrb[0].mxu0
      %416 = vmatprep.mubr.bf16.mxu0 0
      %417 = vmatmul.mubr.bf16.gmra.mrb[0].mxu0 %v321
      %v418 = vpop.f32.mrb[0].mxu0
      %v419 = vadd.f32 %v302, %v418
      %v420 = vpop.f32.mrb[0].mxu0
      %v421 = vpop.f32.mrb[0].mxu0
      %v422 = vadd.f32 %v302, %v421
      %v423 = vpop.f32.mrb[0].mxu0
      %424 = vmatprep.mubr.bf16.mxu0 0
      %425 = vmatmul.mubr.bf16.gmra.mrb[0].mxu0 %v322
      %v426 = vpop.f32.mrb[0].mxu0
      %v427 = vadd.f32 %v302, %v426
      %v428 = vpop.f32.mrb[0].mxu0
      %v429 = vpop.f32.mrb[0].mxu0
      %v430 = vadd.f32 %v302, %v429
      %v431 = vpop.f32.mrb[0].mxu0
      %432 = vmatprep.mubr.bf16.mxu0 0
      %433 = vmatmul.mubr.bf16.gmra.mrb[0].mxu0 %v323
      %v434 = vpop.f32.mrb[0].mxu0
      %v435 = vadd.f32 %v302, %v434
      %v436 = vpop.f32.mrb[0].mxu0
      %v437 = vpop.f32.mrb[0].mxu0
      %v438 = vadd.f32 %v302, %v437
      %v439 = vpop.f32.mrb[0].mxu0
      %440 = vdwg.mxu0
      %v441 = vld [vmem:[%s261] sm:$0xf]
      %v442 = vld [vmem:[%s261 + $0x4] sm:$0xf]
      %v443 = vld [vmem:[%s261 + $0x8] sm:$0xf]
      %v444 = vld [vmem:[%s261 + $0xc] sm:$0xf]
      %v445 = vld [vmem:[%s261 + $0x10] sm:$0xf]
      %v446 = vld [vmem:[%s261 + $0x14] sm:$0xf]
      %v447 = vld [vmem:[%s261 + $0x18] sm:$0xf]
      %v448 = vld [vmem:[%s261 + $0x1c] sm:$0xf]
      %v449 = vunpack.c.l.bf16 %v441
      %v450 = vunpack.c.l.bf16 %v442
      %v451 = vunpack.c.l.bf16 %v443
      %v452 = vunpack.c.l.bf16 %v444
      %v453 = vunpack.c.l.bf16 %v445
      %v454 = vunpack.c.l.bf16 %v446
      %v455 = vunpack.c.l.bf16 %v447
      %v456 = vunpack.c.l.bf16 %v448
      %v457 = vld [vmem:[%s1] sm:$0x1]
      %v459 = vlaneseq
      %v460 = vshrl.u32 %v459, 7
      %v461 = vsub.s32 0, %v460
      %v462 = vrot.slane %v457, %v461
      %v464 = vmul.f32 %v449, %v462
      %v465 = vmul.f32 %v450, %v462
      %v466 = vmul.f32 %v451, %v462
      %v467 = vmul.f32 %v452, %v462
      %v468 = vmul.f32 %v453, %v462
      %v469 = vmul.f32 %v454, %v462
      %v470 = vmul.f32 %v455, %v462
      %v471 = vmul.f32 %v456, %v462
      %v472 = vld [vmem:[%s2] sm:$0x1]
      %v474 = vlaneseq
      %v475 = vshrl.u32 %v474, 7
      %v476 = vsub.s32 0, %v475
      %v477 = vrot.slane %v472, %v476
      %v479 = vadd.f32 %v464, %v477
      %v480 = vadd.f32 %v465, %v477
      %v481 = vadd.f32 %v466, %v477
      %v482 = vadd.f32 %v467, %v477
      %v483 = vadd.f32 %v468, %v477
      %v484 = vadd.f32 %v469, %v477
      %v485 = vadd.f32 %v470, %v477
      %v486 = vadd.f32 %v471, %v477
      %v487 = vadd.f32 %v479, %v411
      %v488 = vadd.f32 %v480, %v414
      %v489 = vadd.f32 %v481, %v419
      %v490 = vadd.f32 %v482, %v422
      %v491 = vadd.f32 %v483, %v427
      %v492 = vadd.f32 %v484, %v430
      %v493 = vadd.f32 %v485, %v435
      %v494 = vadd.f32 %v486, %v438
      %vm495 = vcmp.ge.f32.partialorder %v487, 0.0
      %vm496 = vcmp.ge.f32.partialorder %v488, 0.0
      %vm497 = vcmp.ge.f32.partialorder %v489, 0.0
      %vm498 = vcmp.ge.f32.partialorder %v490, 0.0
      %vm499 = vcmp.ge.f32.partialorder %v491, 0.0
      %vm500 = vcmp.ge.f32.partialorder %v492, 0.0
      %vm501 = vcmp.ge.f32.partialorder %v493, 0.0
      %vm502 = vcmp.ge.f32.partialorder %v494, 0.0
      %v503 = vmul.f32 %v487, 0.01
      %v504 = vmul.f32 %v488, 0.01
      %v505 = vmul.f32 %v489, 0.01
      %v506 = vmul.f32 %v490, 0.01
      %v507 = vmul.f32 %v491, 0.01
      %v508 = vmul.f32 %v492, 0.01
      %v509 = vmul.f32 %v493, 0.01
      %v510 = vmul.f32 %v494, 0.01
      %v511 = vsel %vm495, %v487, %v503
      %v512 = vsel %vm496, %v488, %v504
      %v513 = vsel %vm497, %v489, %v505
      %v514 = vsel %vm498, %v490, %v506
      %v515 = vsel %vm499, %v491, %v507
      %v516 = vsel %vm500, %v492, %v508
      %v517 = vsel %vm501, %v493, %v509
      %v518 = vsel %vm502, %v494, %v510
      %519 = vst [vmem:[%s271] sm:$0xff] %v511
      %520 = vst [vmem:[%s271 + $0x8] sm:$0xff] %v512
      %521 = vst [vmem:[%s271 + $0x10] sm:$0xff] %v513
      %522 = vst [vmem:[%s271 + $0x18] sm:$0xff] %v514
      %523 = vst [vmem:[%s271 + $0x20] sm:$0xff] %v515
      %524 = vst [vmem:[%s271 + $0x28] sm:$0xff] %v516
      %525 = vst [vmem:[%s271 + $0x30] sm:$0xff] %v517
      %526 = vst [vmem:[%s271 + $0x38] sm:$0xff] %v518
      %p527 = scmp.lt.s32.totalorder %s17, 1
      %s528 = scalar_select %p527, %s17, 1
      %s529 = smul.addr %s528, 8
      %s530 = smul.addr %s529, 8
      %s531 = scalar_lea.vmem %s6, %s530
      // Predicated region
      $region45: #{res_unit_forward.5} parent=43 // pred_check
        %p532 = pneg %p171
      $region46: #{res_unit_forward.5} parent=43 // pred_check_branch
        %534 = sbr.rel (%p532) target = $region48
      $region47: #{res_unit_forward.5} parent=43 // pred_region
        _
      $region48: #{res_unit_forward.5} parent=43 // pred_fallthru
        _
    $region44: #{res_unit_forward.5} parent=5 // pred_fallthru
      _
    %p535 = scmp.le.s32.totalorder 2, %s12
    // Predicated region
    $region49: #{res_unit_forward.5} parent=5 // pred_check
      %p536 = pneg %p535
    $region50: #{res_unit_forward.5} parent=5 // pred_check_branch
      %538 = sbr.rel (%p536) target = $region52
    $region51: #{res_unit_forward.5} parent=5 // pred_region
      %s539 = ssub.s32 %s12, 2
      // Predicated region
      $region53: #{res_unit_forward.5} parent=51 // pred_check
        %p540 = pneg %p177
      $region54: #{res_unit_forward.5} parent=51 // pred_check_branch
        %542 = sbr.rel (%p540) target = $region56
      $region55: #{res_unit_forward.5} parent=51 // pred_region
        %p543 = scmp.lt.s32.totalorder %s18, 1
        %s544 = scalar_select %p543, %s18, 1
        %s545 = smul.addr %s544, 8
        %s546 = smul.addr %s545, 8
        %s547 = scalar_lea.vmem %s6, %s546
      $region56: #{res_unit_forward.5} parent=51 // pred_fallthru
        _
    $region52: #{res_unit_forward.5} parent=5 // pred_fallthru
      _
  $region6: #{res_unit_forward.5} parent=0 // loop_footer
    %s16 = sadd.s32 1, %s12
  $region7: #{res_unit_forward.5} parent=0 // loop_footer_branch
    %11 = sbr.rel target = $region3
  $region8: #{res_unit_forward.5} parent=0 // loop_exit
    _

// kernel: res_unit_forward.3
$region0: #{res_unit_forward.3}
  #allocation0 [shape = 'u32[]', space=smem, size = 0x4, offset = 0x4, fixed_abs, tag = 'smem constant byte address 0x4 - core index']
  #allocation1 [shape = 'u32[144,128]{1,0:T(1,128)}', space=vmem, size = 0x12000, scoped, tag = 'internal scratch']
  #allocation2 [shape = 'f32[64,128]{1,0:T(8,128)}', space=vmem, size = 0x8000, scoped, tag = 'scratch operand']
  %s0 = inlined_call_operand.vmem [shape: bf16[2,9,9,128], index: 0, kind: input, shape index: {}]
  %s1 = inlined_call_operand.vmem [shape: bf16[4,128,128], index: 1, kind: input, shape index: {}]
  %s2 = inlined_call_operand.vmem [shape: f32[1,128], index: 2, kind: input, shape index: {}]
  %s3 = inlined_call_operand.vmem [shape: bf16[2,8,8,128], index: 3, kind: output, shape index: {0}]
  %s4 = inlined_call_operand.vmem [shape: f32[1,128], index: 4, kind: output, shape index: {1}]
  %s5 = inlined_call_operand.vmem [shape: f32[1,128], index: 5, kind: output, shape index: {2}]
  %6 = xla_tuple %s3, %s4, %s5
  %s7 = sld [smem:[#allocation0]]
  $region65: #{res_unit_forward.3} parent=0
    _
  %s9 = ssub.s32 1, %s7
  %s10 = scalar_select 0, %s9, %s7
  loop: start=0, step=1, limit=4
  $region2: #{res_unit_forward.3} parent=0 // loop_pre_header
    _
  $region3: #{res_unit_forward.3} parent=0 // loop_header
    %s12 = sphi 0, %s16
    %p13 = scmp.ge.s32.totalorder %s12, 4
    %s22 = sphi 0, %s24
    %s25 = sphi 0, %s22
    %s26 = sphi 0, %s25
    %s42 = sphi 0, %s26
    %s46 = sphi 0, %s46
    %s48 = sphi 0, %s46
    %s49 = sphi 0, %s48
    %s63 = sphi 0, %s49
    %s67 = sphi 0, %s67
    %s69 = sphi 0, %s67
    %s70 = sphi 0, %s69
    %s84 = sphi 0, %s70
    %s90 = sphi 0, %s92
    %s93 = sphi 0, %s90
    %s94 = sphi 0, %s93
    %s110 = sphi 0, %s94
    %s114 = sphi 0, %s114
    %s116 = sphi 0, %s114
    %s117 = sphi 0, %s116
    %s131 = sphi 0, %s117
    %s135 = sphi 0, %s135
    %s137 = sphi 0, %s135
    %s138 = sphi 0, %s137
    %s152 = sphi 0, %s138
  $region4: #{res_unit_forward.3} parent=0 // loop_header_branch
    %15 = sbr.rel (%p13) target = $region8
  $region5: #{res_unit_forward.3} parent=0 // loop_body
    %s17 = ssub.s32 %s12, 1
    %s18 = ssub.s32 %s12, 2
    %s19 = sadd.s32 %s12, 1
    %s20 = ssub.s32 %s12, %s19
    %p21 = scmp.eq.s32.totalorder %s20, 0
    %s23 = sadd.s32 %s22, 1
    %s24 = scalar_select %p21, %s22, %s23
    %p27 = pneg %p21
    %p28 = scmp.eq.s32.totalorder %s12, 1
    %p29 = por %p27, %p28
    %p30 = scmp.ne.s32.totalorder %s22, %s25
    %p31 = scmp.eq.s32.totalorder %s12, 0
    %p32 = por %p30, %p31
    %p33 = scmp.ne.s32.totalorder %s22, %s25
    %p34 = scmp.eq.s32.totalorder %s17, 1
    %p35 = por %p33, %p34
    %p36 = scmp.ne.s32.totalorder %s25, %s26
    %p37 = scmp.eq.s32.totalorder %s17, 0
    %p38 = por %p36, %p37
    %p39 = scmp.ne.s32.totalorder %s25, %s26
    %p40 = scmp.eq.s32.totalorder %s18, 1
    %p41 = por %p39, %p40
    %p43 = scmp.ne.s32.totalorder %s26, %s42
    %p44 = scmp.eq.s32.totalorder %s18, 0
    %p45 = por %p43, %p44
    %s47 = sadd.s32 %s46, 1
    %p50 = scmp.eq.s32.totalorder %s12, 1
    %p51 = scmp.ne.s32.totalorder %s46, %s48
    %p52 = scmp.eq.s32.totalorder %s12, 0
    %p53 = por %p51, %p52
    %p54 = scmp.ne.s32.totalorder %s46, %s48
    %p55 = scmp.eq.s32.totalorder %s17, 1
    %p56 = por %p54, %p55
    %p57 = scmp.ne.s32.totalorder %s48, %s49
    %p58 = scmp.eq.s32.totalorder %s17, 0
    %p59 = por %p57, %p58
    %p60 = scmp.ne.s32.totalorder %s48, %s49
    %p61 = scmp.eq.s32.totalorder %s18, 1
    %p62 = por %p60, %p61
    %p64 = scmp.ne.s32.totalorder %s49, %s63
    %p65 = scmp.eq.s32.totalorder %s18, 0
    %p66 = por %p64, %p65
    %s68 = sadd.s32 %s67, 1
    %p71 = scmp.eq.s32.totalorder %s12, 1
    %p72 = scmp.ne.s32.totalorder %s67, %s69
    %p73 = scmp.eq.s32.totalorder %s12, 0
    %p74 = por %p72, %p73
    %p75 = scmp.ne.s32.totalorder %s67, %s69
    %p76 = scmp.eq.s32.totalorder %s17, 1
    %p77 = por %p75, %p76
    %p78 = scmp.ne.s32.totalorder %s69, %s70
    %p79 = scmp.eq.s32.totalorder %s17, 0
    %p80 = por %p78, %p79
    %p81 = scmp.ne.s32.totalorder %s69, %s70
    %p82 = scmp.eq.s32.totalorder %s18, 1
    %p83 = por %p81, %p82
    %p85 = scmp.ne.s32.totalorder %s70, %s84
    %p86 = scmp.eq.s32.totalorder %s18, 0
    %p87 = por %p85, %p86
    %s88 = ssub.s32 %s12, %s19
    %p89 = scmp.eq.s32.totalorder %s88, 0
    %s91 = sadd.s32 %s90, 1
    %s92 = scalar_select %p89, %s90, %s91
    %p95 = pneg %p89
    %p96 = scmp.eq.s32.totalorder %s12, 1
    %p97 = por %p95, %p96
    %p98 = scmp.ne.s32.totalorder %s90, %s93
    %p99 = scmp.eq.s32.totalorder %s12, 0
    %p100 = por %p98, %p99
    %p101 = scmp.ne.s32.totalorder %s90, %s93
    %p102 = scmp.eq.s32.totalorder %s17, 1
    %p103 = por %p101, %p102
    %p104 = scmp.ne.s32.totalorder %s93, %s94
    %p105 = scmp.eq.s32.totalorder %s17, 0
    %p106 = por %p104, %p105
    %p107 = scmp.ne.s32.totalorder %s93, %s94
    %p108 = scmp.eq.s32.totalorder %s18, 1
    %p109 = por %p107, %p108
    %p111 = scmp.ne.s32.totalorder %s94, %s110
    %p112 = scmp.eq.s32.totalorder %s18, 0
    %p113 = por %p111, %p112
    %s115 = sadd.s32 %s114, 1
    %p118 = scmp.eq.s32.totalorder %s12, 1
    %p119 = scmp.ne.s32.totalorder %s114, %s116
    %p120 = scmp.eq.s32.totalorder %s12, 0
    %p121 = por %p119, %p120
    %p122 = scmp.ne.s32.totalorder %s114, %s116
    %p123 = scmp.eq.s32.totalorder %s17, 1
    %p124 = por %p122, %p123
    %p125 = scmp.ne.s32.totalorder %s116, %s117
    %p126 = scmp.eq.s32.totalorder %s17, 0
    %p127 = por %p125, %p126
    %p128 = scmp.ne.s32.totalorder %s116, %s117
    %p129 = scmp.eq.s32.totalorder %s18, 1
    %p130 = por %p128, %p129
    %p132 = scmp.ne.s32.totalorder %s117, %s131
    %p133 = scmp.eq.s32.totalorder %s18, 0
    %p134 = por %p132, %p133
    %s136 = sadd.s32 %s135, 1
    %p139 = scmp.eq.s32.totalorder %s12, 1
    %p140 = scmp.ne.s32.totalorder %s135, %s137
    %p141 = scmp.eq.s32.totalorder %s12, 0
    %p142 = por %p140, %p141
    %p143 = scmp.ne.s32.totalorder %s135, %s137
    %p144 = scmp.eq.s32.totalorder %s17, 1
    %p145 = por %p143, %p144
    %p146 = scmp.ne.s32.totalorder %s137, %s138
    %p147 = scmp.eq.s32.totalorder %s17, 0
    %p148 = por %p146, %p147
    %p149 = scmp.ne.s32.totalorder %s137, %s138
    %p150 = scmp.eq.s32.totalorder %s18, 1
    %p151 = por %p149, %p150
    %p153 = scmp.ne.s32.totalorder %s138, %s152
    %p154 = scmp.eq.s32.totalorder %s18, 0
    %p155 = por %p153, %p154
    %p156 = scmp.le.s32.totalorder 1, %s12
    %p157 = scmp.lt.s32.totalorder %s12, 3
    %p158 = pnand %p156, %p157
    %p159 = pneg %p158
    // Predicated region
    $region9: #{res_unit_forward.3} parent=5 // pred_check
      _
    $region10: #{res_unit_forward.3} parent=5 // pred_check_branch
      %161 = sbr.rel (%p158) target = $region12
    $region11: #{res_unit_forward.3} parent=5 // pred_region
      %s162 = ssub.s32 %s12, 1
      // Predicated region
      $region13: #{res_unit_forward.3} parent=11 // pred_check
        %p163 = pneg %p59
      $region14: #{res_unit_forward.3} parent=11 // pred_check_branch
        %165 = sbr.rel (%p163) target = $region16
      $region15: #{res_unit_forward.3} parent=11 // pred_region
        _
      $region16: #{res_unit_forward.3} parent=11 // pred_fallthru
        _
      // Predicated region
      $region17: #{res_unit_forward.3} parent=11 // pred_check
        %p166 = pneg %p80
      $region18: #{res_unit_forward.3} parent=11 // pred_check_branch
        %168 = sbr.rel (%p166) target = $region20
      $region19: #{res_unit_forward.3} parent=11 // pred_region
        _
      $region20: #{res_unit_forward.3} parent=11 // pred_fallthru
        _
    $region12: #{res_unit_forward.3} parent=5 // pred_fallthru
      _
    %p169 = scmp.lt.s32.totalorder %s12, 2
    // Predicated region
    $region21: #{res_unit_forward.3} parent=5 // pred_check
      %p170 = pneg %p169
    $region22: #{res_unit_forward.3} parent=5 // pred_check_branch
      %172 = sbr.rel (%p170) target = $region24
    $region23: #{res_unit_forward.3} parent=5 // pred_region
      // Predicated region
      $region25: #{res_unit_forward.3} parent=23 // pred_check
        %p173 = pneg %p32
      $region26: #{res_unit_forward.3} parent=23 // pred_check_branch
        %175 = sbr.rel (%p173) target = $region28
      $region27: #{res_unit_forward.3} parent=23 // pred_region
        %p176 = scmp.lt.s32.totalorder %s12, 1
        %s177 = scalar_select %p176, %s12, 1
        %s178 = smul.addr %s177, 18
        %s179 = smul.addr %s178, 4
        %s180 = scalar_lea.vmem %s0, %s179
      $region28: #{res_unit_forward.3} parent=23 // pred_fallthru
        _
    $region24: #{res_unit_forward.3} parent=5 // pred_fallthru
      _
    %p181 = scmp.le.s32.totalorder 1, %s12
    %p182 = scmp.lt.s32.totalorder %s12, 3
    %p183 = pnand %p181, %p182
    %p184 = pneg %p183
    // Predicated region
    $region29: #{res_unit_forward.3} parent=5 // pred_check
      _
    $region30: #{res_unit_forward.3} parent=5 // pred_check_branch
      %186 = sbr.rel (%p183) target = $region32
    $region31: #{res_unit_forward.3} parent=5 // pred_region
      %s187 = ssub.s32 %s12, 1
      %p188 = scmp.lt.s32.totalorder %s17, 1
      %s189 = scalar_select %p188, %s17, 1
      %s190 = smul.addr %s189, 18
      %s191 = smul.addr %s190, 4
      %s192 = scalar_lea.vmem %s0, %s191
      %p193 = pneg %p38
      %p194 = pneg %p35
      %p195 = pneg %p59
      %p196 = pneg %p56
      %p197 = pneg %p80
      %p198 = pneg %p77
      %p199 = pneg %p106
      %p200 = pneg %p103
      %p201 = scmp.lt.s32.totalorder %s17, 1
      %s202 = scalar_select %p201, %s17, 1
      %s203 = smul.addr %s202, 8
      %s204 = smul.addr %s203, 4
      %s205 = scalar_lea.vmem %s3, %s204
      %p206 = pneg %p127
      %p207 = pneg %p124
      %p208 = pneg %p148
      %p209 = pneg %p145
      %p210 = scmp.lt.s32.totalorder %s17, 1
      %s211 = scalar_select %p210, %s17, 1
      %s212 = smul.addr %s211, 18
      %s213 = smul.addr %s212, 4
      %s214 = scalar_lea.vmem %s0, %s213
      %p215 = scmp.lt.s32.totalorder %s17, 1
      %s216 = scalar_select %p215, %s17, 1
      %s217 = smul.addr %s216, 8
      %s218 = smul.addr %s217, 4
      %s219 = scalar_lea.vmem %s3, %s218
      %p221 = scmp.eq.s32.totalorder %s17, 0
      // Predicated region
      $region33: #{res_unit_forward.3} parent=31 // pred_check
        %p222 = pneg %p221
      $region34: #{res_unit_forward.3} parent=31 // pred_check_branch
        %224 = sbr.rel (%p222) target = $region36
      $region35: #{res_unit_forward.3} parent=31 // pred_region
        %225 = vst [vmem:[%s4] sm:$0x1] 0.0
        %226 = vst [vmem:[%s5] sm:$0x1] 0.0
      $region36: #{res_unit_forward.3} parent=31 // pred_fallthru
        _
      %v227 = vld [vmem:[%s214] sm:$0xf]
      %v228 = vld [vmem:[%s214 + $0x4] sm:$0x1]
      %v229 = vld [vmem:[%s214 + $0x8] sm:$0xf]
      %v230 = vld [vmem:[%s214 + $0xc] sm:$0x1]
      %v231 = vld [vmem:[%s214 + $0x10] sm:$0xf]
      %v232 = vld [vmem:[%s214 + $0x14] sm:$0x1]
      %v233 = vld [vmem:[%s214 + $0x18] sm:$0xf]
      %v234 = vld [vmem:[%s214 + $0x1c] sm:$0x1]
      %v235 = vld [vmem:[%s214 + $0x20] sm:$0xf]
      %v236 = vld [vmem:[%s214 + $0x24] sm:$0x1]
      %v237 = vld [vmem:[%s214 + $0x28] sm:$0xf]
      %v238 = vld [vmem:[%s214 + $0x2c] sm:$0x1]
      %v239 = vld [vmem:[%s214 + $0x30] sm:$0xf]
      %v240 = vld [vmem:[%s214 + $0x34] sm:$0x1]
      %v241 = vld [vmem:[%s214 + $0x38] sm:$0xf]
      %v242 = vld [vmem:[%s214 + $0x3c] sm:$0x1]
      %v243 = vld [vmem:[%s214 + $0x40] sm:$0xf]
      %v244 = vld [vmem:[%s214 + $0x44] sm:$0x1]
      %v245 = vld [vmem:[%s1] sm:$0xf]
      %v246 = vld [vmem:[%s1 + $0x4] sm:$0xf]
      %v247 = vld [vmem:[%s1 + $0x8] sm:$0xf]
      %v248 = vld [vmem:[%s1 + $0xc] sm:$0xf]
      %v249 = vld [vmem:[%s1 + $0x10] sm:$0xf]
      %v250 = vld [vmem:[%s1 + $0x14] sm:$0xf]
      %v251 = vld [vmem:[%s1 + $0x18] sm:$0xf]
      %v252 = vld [vmem:[%s1 + $0x1c] sm:$0xf]
      %v253 = vld [vmem:[%s1 + $0x20] sm:$0xf]
      %v254 = vld [vmem:[%s1 + $0x24] sm:$0xf]
      %v255 = vld [vmem:[%s1 + $0x28] sm:$0xf]
      %v256 = vld [vmem:[%s1 + $0x2c] sm:$0xf]
      %v257 = vld [vmem:[%s1 + $0x30] sm:$0xf]
      %v258 = vld [vmem:[%s1 + $0x34] sm:$0xf]
      %v259 = vld [vmem:[%s1 + $0x38] sm:$0xf]
      %v260 = vld [vmem:[%s1 + $0x3c] sm:$0xf]
      %v269 = vunpack.c.l.b16 %v227
      %v270 = vunpack.c.l.b16 %v229
      %v271 = vunpack.c.l.b16 %v231
      %v272 = vunpack.c.l.b16 %v233
      %v273 = vunpack.c.l.b16 %v235
      %v274 = vunpack.c.l.b16 %v237
      %v275 = vunpack.c.l.b16 %v239
      %v276 = vunpack.c.l.b16 %v241
      %v277 = vpack.c.b16 %v270, %v269
      %v278 = vpack.c.b16 %v272, %v271
      %v279 = vpack.c.b16 %v274, %v273
      %v280 = vpack.c.b16 %v276, %v275
      %v301 = vunpack.c.l.b16 %v245
      %v302 = vunpack.c.l.b16 %v246
      %v303 = vunpack.c.l.b16 %v247
      %v304 = vunpack.c.l.b16 %v248
      %v305 = vunpack.c.l.b16 %v249
      %v306 = vunpack.c.l.b16 %v250
      %v307 = vunpack.c.l.b16 %v251
      %v308 = vunpack.c.l.b16 %v252
      %v309 = vunpack.c.l.b16 %v253
      %v310 = vunpack.c.l.b16 %v254
      %v311 = vunpack.c.l.b16 %v255
      %v312 = vunpack.c.l.b16 %v256
      %v313 = vunpack.c.l.b16 %v257
      %v314 = vunpack.c.l.b16 %v258
      %v315 = vunpack.c.l.b16 %v259
      %v316 = vunpack.c.l.b16 %v260
      %v317 = vpack.c.b16 %v302, %v301
      %v318 = vpack.c.b16 %v304, %v303
      %v319 = vpack.c.b16 %v306, %v305
      %v320 = vpack.c.b16 %v308, %v307
      %v321 = vpack.c.b16 %v310, %v309
      %v322 = vpack.c.b16 %v312, %v311
      %v323 = vpack.c.b16 %v314, %v313
      %v324 = vpack.c.b16 %v316, %v315
      %333 = vmatprep.subr.bf16.mxu0 0
      %334 = vmatpush1.bf16.msra.mxu0 %v317
      %335 = vmatprep.subr.bf16.mxu0 0
      %336 = vmatpush1.bf16.msra.mxu0 %v318
      %337 = vmatprep.subr.bf16.mxu0 0
      %338 = vmatpush1.bf16.msra.mxu0 %v319
      %339 = vmatprep.subr.bf16.mxu0 0
      %340 = vmatpush1.bf16.msra.mxu0 %v320
      %341 = vmatprep.subr.bf16.mxu0 0
      %342 = vmatpush1.bf16.msra.mxu0 %v321
      %343 = vmatprep.subr.bf16.mxu0 0
      %344 = vmatpush1.bf16.msra.mxu0 %v322
      %345 = vmatprep.subr.bf16.mxu0 0
      %346 = vmatpush1.bf16.msra.mxu0 %v323
      %347 = vmatprep.subr.bf16.mxu0 0
      %348 = vmatpush1.bf16.msra.mxu0 %v324
      %349 = vmatprep.subr.bf16.mxu0 0
      %350 = vmatpush1.bf16.msra.mxu0 0
      %351 = vmatprep.subr.bf16.mxu0 0
      %352 = vmatpush1.bf16.msra.mxu0 0
      %353 = vmatprep.subr.bf16.mxu0 0
      %354 = vmatpush1.bf16.msra.mxu0 0
      %355 = vmatprep.subr.bf16.mxu0 0
      %356 = vmatpush1.bf16.msra.mxu0 0
      %357 = vmatprep.subr.bf16.mxu0 0
      %358 = vmatpush1.bf16.msra.mxu0 0
      %359 = vmatprep.subr.bf16.mxu0 0
      %360 = vmatpush1.bf16.msra.mxu0 0
      %361 = vmatprep.subr.bf16.mxu0 0
      %362 = vmatpush1.bf16.msra.mxu0 0
      %363 = vmatprep.subr.bf16.mxu0 0
      %364 = vmatpush1.bf16.msra.mxu0 0
      %365 = vmatprep.mubr.bf16.mxu0 0
      %366 = vmatmul.mubr.bf16.gmra.mrb[0].mxu0 %v277
      %v367 = vpop.f32.mrb[0].mxu0
      %v368 = vadd.f32 0.0, %v367
      %v369 = vpop.f32.mrb[0].mxu0
      %v370 = vpop.f32.mrb[0].mxu0
      %v371 = vadd.f32 0.0, %v370
      %v372 = vpop.f32.mrb[0].mxu0
      %373 = vmatprep.mubr.bf16.mxu0 0
      %374 = vmatmul.mubr.bf16.gmra.mrb[0].mxu0 %v278
      %v375 = vpop.f32.mrb[0].mxu0
      %v376 = vadd.f32 0.0, %v375
      %v377 = vpop.f32.mrb[0].mxu0
      %v378 = vpop.f32.mrb[0].mxu0
      %v379 = vadd.f32 0.0, %v378
      %v380 = vpop.f32.mrb[0].mxu0
      %381 = vmatprep.mubr.bf16.mxu0 0
      %382 = vmatmul.mubr.bf16.gmra.mrb[0].mxu0 %v279
      %v383 = vpop.f32.mrb[0].mxu0
      %v384 = vadd.f32 0.0, %v383
      %v385 = vpop.f32.mrb[0].mxu0
      %v386 = vpop.f32.mrb[0].mxu0
      %v387 = vadd.f32 0.0, %v386
      %v388 = vpop.f32.mrb[0].mxu0
      %389 = vmatprep.mubr.bf16.mxu0 0
      %390 = vmatmul.mubr.bf16.gmra.mrb[0].mxu0 %v280
      %v391 = vpop.f32.mrb[0].mxu0
      %v392 = vadd.f32 0.0, %v391
      %v393 = vpop.f32.mrb[0].mxu0
      %v394 = vpop.f32.mrb[0].mxu0
      %v395 = vadd.f32 0.0, %v394
      %v396 = vpop.f32.mrb[0].mxu0
      %397 = vdwg.mxu0
      %398 = vst [vmem:[#allocation2] sm:$0xff] %v368
      %399 = vst [vmem:[#allocation2 + $0x8] sm:$0xff] %v371
      %400 = vst [vmem:[#allocation2 + $0x10] sm:$0xff] %v376
      %401 = vst [vmem:[#allocation2 + $0x18] sm:$0xff] %v379
      %402 = vst [vmem:[#allocation2 + $0x20] sm:$0xff] %v384
      %403 = vst [vmem:[#allocation2 + $0x28] sm:$0xff] %v387
      %404 = vst [vmem:[#allocation2 + $0x30] sm:$0xff] %v392
      %405 = vst [vmem:[#allocation2 + $0x38] sm:$0xff] %v395
      %vm406 = vsmask.f32 3328
      %vm407 = vsmask.f32 7440
      %vm408 = vmor %vm406, %vm407
      %v410 = vshrl.u32 %v227, 16
      %v412 = vrot.slane %v410, 4
      %v413 = vshll.u32 %v227, 16
      %v415 = vrot.slane %v413, 5
      %v416 = vor.u32 %v412, %v415
      %v417 = vrot.slane %v416, 4
      %v419 = vshll.u32 %v228, 16
      %v421 = vrot.slane %v419, 5
      %v422 = vsel %vm408, %v417, %v421
      %v424 = vshrl.u32 %v229, 16
      %v426 = vrot.slane %v424, 4
      %v427 = vshll.u32 %v229, 16
      %v429 = vrot.slane %v427, 5
      %v430 = vor.u32 %v426, %v429
      %v431 = vrot.slane %v430, 4
      %v433 = vshll.u32 %v230, 16
      %v435 = vrot.slane %v433, 5
      %v436 = vsel %vm408, %v431, %v435
      %v438 = vshrl.u32 %v231, 16
      %v440 = vrot.slane %v438, 4
      %v441 = vshll.u32 %v231, 16
      %v443 = vrot.slane %v441, 5
      %v444 = vor.u32 %v440, %v443
      %v445 = vrot.slane %v444, 4
      %v447 = vshll.u32 %v232, 16
      %v449 = vrot.slane %v447, 5
      %v450 = vsel %vm408, %v445, %v449
      %v452 = vshrl.u32 %v233, 16
      %v454 = vrot.slane %v452, 4
      %v455 = vshll.u32 %v233, 16
      %v457 = vrot.slane %v455, 5
      %v458 = vor.u32 %v454, %v457
      %v459 = vrot.slane %v458, 4
      %v461 = vshll.u32 %v234, 16
      %v463 = vrot.slane %v461, 5
      %v464 = vsel %vm408, %v459, %v463
      %v466 = vshrl.u32 %v235, 16
      %v468 = vrot.slane %v466, 4
      %v469 = vshll.u32 %v235, 16
      %v471 = vrot.slane %v469, 5
      %v472 = vor.u32 %v468, %v471
      %v473 = vrot.slane %v472, 4
      %v475 = vshll.u32 %v236, 16
      %v477 = vrot.slane %v475, 5
      %v478 = vsel %vm408, %v473, %v477
      %v480 = vshrl.u32 %v237, 16
      %v482 = vrot.slane %v480, 4
      %v483 = vshll.u32 %v237, 16
      %v485 = vrot.slane %v483, 5
      %v486 = vor.u32 %v482, %v485
      %v487 = vrot.slane %v486, 4
      %v489 = vshll.u32 %v238, 16
      %v491 = vrot.slane %v489, 5
      %v492 = vsel %vm408, %v487, %v491
      %v494 = vshrl.u32 %v239, 16
      %v496 = vrot.slane %v494, 4
      %v497 = vshll.u32 %v239, 16
      %v499 = vrot.slane %v497, 5
      %v500 = vor.u32 %v496, %v499
      %v501 = vrot.slane %v500, 4
      %v503 = vshll.u32 %v240, 16
      %v505 = vrot.slane %v503, 5
      %v506 = vsel %vm408, %v501, %v505
      %v508 = vshrl.u32 %v241, 16
      %v510 = vrot.slane %v508, 4
      %v511 = vshll.u32 %v241, 16
      %v513 = vrot.slane %v511, 5
      %v514 = vor.u32 %v510, %v513
      %v515 = vrot.slane %v514, 4
      %v517 = vshll.u32 %v242, 16
      %v519 = vrot.slane %v517, 5
      %v520 = vsel %vm408, %v515, %v519
      %s521 = scalar_lea.vmem %s1, 64
      %v522 = vld [vmem:[%s521] sm:$0xf]
      %v523 = vld [vmem:[%s521 + $0x4] sm:$0xf]
      %v524 = vld [vmem:[%s521 + $0x8] sm:$0xf]
      %v525 = vld [vmem:[%s521 + $0xc] sm:$0xf]
      %v526 = vld [vmem:[%s521 + $0x10] sm:$0xf]
      %v527 = vld [vmem:[%s521 + $0x14] sm:$0xf]
      %v528 = vld [vmem:[%s521 + $0x18] sm:$0xf]
      %v529 = vld [vmem:[%s521 + $0x1c] sm:$0xf]
      %v530 = vld [vmem:[%s521 + $0x20] sm:$0xf]
      %v531 = vld [vmem:[%s521 + $0x24] sm:$0xf]
      %v532 = vld [vmem:[%s521 + $0x28] sm:$0xf]
      %v533 = vld [vmem:[%s521 + $0x2c] sm:$0xf]
      %v534 = vld [vmem:[%s521 + $0x30] sm:$0xf]
      %v535 = vld [vmem:[%s521 + $0x34] sm:$0xf]
      %v536 = vld [vmem:[%s521 + $0x38] sm:$0xf]
      %v537 = vld [vmem:[%s521 + $0x3c] sm:$0xf]
      %v538 = vunpack.c.l.b16 %v422
      %v539 = vunpack.c.l.b16 %v436
      %v540 = vunpack.c.l.b16 %v450
      %v541 = vunpack.c.l.b16 %v464
      %v542 = vunpack.c.l.b16 %v478
      %v543 = vunpack.c.l.b16 %v492
      %v544 = vunpack.c.l.b16 %v506
      %v545 = vunpack.c.l.b16 %v520
      %v546 = vpack.c.b16 %v539, %v538
      %v547 = vpack.c.b16 %v541, %v540
      %v548 = vpack.c.b16 %v543, %v542
      %v549 = vpack.c.b16 %v545, %v544
      %v570 = vunpack.c.l.b16 %v522
      %v571 = vunpack.c.l.b16 %v523
      %v572 = vunpack.c.l.b16 %v524
      %v573 = vunpack.c.l.b16 %v525
      %v574 = vunpack.c.l.b16 %v526
      %v575 = vunpack.c.l.b16 %v527
      %v576 = vunpack.c.l.b16 %v528
      %v577 = vunpack.c.l.b16 %v529
      %v578 = vunpack.c.l.b16 %v530
      %v579 = vunpack.c.l.b16 %v531
      %v580 = vunpack.c.l.b16 %v532
      %v581 = vunpack.c.l.b16 %v533
      %v582 = vunpack.c.l.b16 %v534
      %v583 = vunpack.c.l.b16 %v535
      %v584 = vunpack.c.l.b16 %v536
      %v585 = vunpack.c.l.b16 %v537
      %v586 = vpack.c.b16 %v571, %v570
      %v587 = vpack.c.b16 %v573, %v572
      %v588 = vpack.c.b16 %v575, %v574
      %v589 = vpack.c.b16 %v577, %v576
      %v590 = vpack.c.b16 %v579, %v578
      %v591 = vpack.c.b16 %v581, %v580
      %v592 = vpack.c.b16 %v583, %v582
      %v593 = vpack.c.b16 %v585, %v584
      %602 = vmatprep.subr.bf16.mxu0 0
      %603 = vmatpush1.bf16.msra.mxu0 %v586
      %604 = vmatprep.subr.bf16.mxu0 0
      %605 = vmatpush1.bf16.msra.mxu0 %v587
      %606 = vmatprep.subr.bf16.mxu0 0
      %607 = vmatpush1.bf16.msra.mxu0 %v588
      %608 = vmatprep.subr.bf16.mxu0 0
      %609 = vmatpush1.bf16.msra.mxu0 %v589
      %610 = vmatprep.subr.bf16.mxu0 0
      %611 = vmatpush1.bf16.msra.mxu0 %v590
      %612 = vmatprep.subr.bf16.mxu0 0
      %613 = vmatpush1.bf16.msra.mxu0 %v591
      %614 = vmatprep.subr.bf16.mxu0 0
      %615 = vmatpush1.bf16.msra.mxu0 %v592
      %616 = vmatprep.subr.bf16.mxu0 0
      %617 = vmatpush1.bf16.msra.mxu0 %v593
      %618 = vmatprep.subr.bf16.mxu0 0
      %619 = vmatpush1.bf16.msra.mxu0 0
      %620 = vmatprep.subr.bf16.mxu0 0
      %621 = vmatpush1.bf16.msra.mxu0 0
      %622 = vmatprep.subr.bf16.mxu0 0
      %623 = vmatpush1.bf16.msra.mxu0 0
      %624 = vmatprep.subr.bf16.mxu0 0
      %625 = vmatpush1.bf16.msra.mxu0 0
      %626 = vmatprep.subr.bf16.mxu0 0
      %627 = vmatpush1.bf16.msra.mxu0 0
      %628 = vmatprep.subr.bf16.mxu0 0
      %629 = vmatpush1.bf16.msra.mxu0 0
      %630 = vmatprep.subr.bf16.mxu0 0
      %631 = vmatpush1.bf16.msra.mxu0 0
      %632 = vmatprep.subr.bf16.mxu0 0
      %633 = vmatpush1.bf16.msra.mxu0 0
      %634 = vmatprep.mubr.bf16.mxu0 0
      %635 = vmatmul.mubr.bf16.gmra.mrb[0].mxu0 %v546
      %v636 = vpop.f32.mrb[0].mxu0
      %v637 = vadd.f32 0.0, %v636
      %v638 = vpop.f32.mrb[0].mxu0
      %v639 = vpop.f32.mrb[0].mxu0
      %v640 = vadd.f32 0.0, %v639
      %v641 = vpop.f32.mrb[0].mxu0
      %642 = vmatprep.mubr.bf16.mxu0 0
      %643 = vmatmul.mubr.bf16.gmra.mrb[0].mxu0 %v547
      %v644 = vpop.f32.mrb[0].mxu0
      %v645 = vadd.f32 0.0, %v644
      %v646 = vpop.f32.mrb[0].mxu0
      %v647 = vpop.f32.mrb[0].mxu0
      %v648 = vadd.f32 0.0, %v647
      %v649 = vpop.f32.mrb[0].mxu0
      %650 = vmatprep.mubr.bf16.mxu0 0
      %651 = vmatmul.mubr.bf16.gmra.mrb[0].mxu0 %v548
      %v652 = vpop.f32.mrb[0].mxu0
      %v653 = vadd.f32 0.0, %v652
      %v654 = vpop.f32.mrb[0].mxu0
      %v655 = vpop.f32.mrb[0].mxu0
      %v656 = vadd.f32 0.0, %v655
      %v657 = vpop.f32.mrb[0].mxu0
      %658 = vmatprep.mubr.bf16.mxu0 0
      %659 = vmatmul.mubr.bf16.gmra.mrb[0].mxu0 %v549
      %v660 = vpop.f32.mrb[0].mxu0
      %v661 = vadd.f32 0.0, %v660
      %v662 = vpop.f32.mrb[0].mxu0
      %v663 = vpop.f32.mrb[0].mxu0
      %v664 = vadd.f32 0.0, %v663
      %v665 = vpop.f32.mrb[0].mxu0
      %666 = vdwg.mxu0
      %v667 = vld [vmem:[#allocation2] sm:$0xff]
      %v668 = vld [vmem:[#allocation2 + $0x8] sm:$0xff]
      %v669 = vld [vmem:[#allocation2 + $0x10] sm:$0xff]
      %v670 = vld [vmem:[#allocation2 + $0x18] sm:$0xff]
      %v671 = vld [vmem:[#allocation2 + $0x20] sm:$0xff]
      %v672 = vld [vmem:[#allocation2 + $0x28] sm:$0xff]
      %v673 = vld [vmem:[#allocation2 + $0x30] sm:$0xff]
      %v674 = vld [vmem:[#allocation2 + $0x38] sm:$0xff]
      %v675 = vadd.f32 %v667, %v637
      %v676 = vadd.f32 %v668, %v640
      %v677 = vadd.f32 %v669, %v645
      %v678 = vadd.f32 %v670, %v648
      %v679 = vadd.f32 %v671, %v653
      %v680 = vadd.f32 %v672, %v656
      %v681 = vadd.f32 %v673, %v661
      %v682 = vadd.f32 %v674, %v664
      %683 = vst [vmem:[#allocation2] sm:$0xff] %v675
      %684 = vst [vmem:[#allocation2 + $0x8] sm:$0xff] %v676
      %685 = vst [vmem:[#allocation2 + $0x10] sm:$0xff] %v677
      %686 = vst [vmem:[#allocation2 + $0x18] sm:$0xff] %v678
      %687 = vst [vmem:[#allocation2 + $0x20] sm:$0xff] %v679
      %688 = vst [vmem:[#allocation2 + $0x28] sm:$0xff] %v680
      %689 = vst [vmem:[#allocation2 + $0x30] sm:$0xff] %v681
      %690 = vst [vmem:[#allocation2 + $0x38] sm:$0xff] %v682
      %s691 = scalar_lea.vmem %s1, 128
      %v692 = vld [vmem:[%s691] sm:$0xf]
      %v693 = vld [vmem:[%s691 + $0x4] sm:$0xf]
      %v694 = vld [vmem:[%s691 + $0x8] sm:$0xf]
      %v695 = vld [vmem:[%s691 + $0xc] sm:$0xf]
      %v696 = vld [vmem:[%s691 + $0x10] sm:$0xf]
      %v697 = vld [vmem:[%s691 + $0x14] sm:$0xf]
      %v698 = vld [vmem:[%s691 + $0x18] sm:$0xf]
      %v699 = vld [vmem:[%s691 + $0x1c] sm:$0xf]
      %v700 = vld [vmem:[%s691 + $0x20] sm:$0xf]
      %v701 = vld [vmem:[%s691 + $0x24] sm:$0xf]
      %v702 = vld [vmem:[%s691 + $0x28] sm:$0xf]
      %v703 = vld [vmem:[%s691 + $0x2c] sm:$0xf]
      %v704 = vld [vmem:[%s691 + $0x30] sm:$0xf]
      %v705 = vld [vmem:[%s691 + $0x34] sm:$0xf]
      %v706 = vld [vmem:[%s691 + $0x38] sm:$0xf]
      %v707 = vld [vmem:[%s691 + $0x3c] sm:$0xf]
      %v709 = vunpack.c.l.b16 %v243
      %v710 = vpack.c.b16 %v271, %v270
      %v711 = vpack.c.b16 %v273, %v272
      %v712 = vpack.c.b16 %v275, %v274
      %v713 = vpack.c.b16 %v709, %v276
      %v734 = vunpack.c.l.b16 %v692
      %v735 = vunpack.c.l.b16 %v693
      %v736 = vunpack.c.l.b16 %v694
      %v737 = vunpack.c.l.b16 %v695
      %v738 = vunpack.c.l.b16 %v696
      %v739 = vunpack.c.l.b16 %v697
      %v740 = vunpack.c.l.b16 %v698
      %v741 = vunpack.c.l.b16 %v699
      %v742 = vunpack.c.l.b16 %v700
      %v743 = vunpack.c.l.b16 %v701
      %v744 = vunpack.c.l.b16 %v702
      %v745 = vunpack.c.l.b16 %v703
      %v746 = vunpack.c.l.b16 %v704
      %v747 = vunpack.c.l.b16 %v705
      %v748 = vunpack.c.l.b16 %v706
      %v749 = vunpack.c.l.b16 %v707
      %v750 = vpack.c.b16 %v735, %v734
      %v751 = vpack.c.b16 %v737, %v736
      %v752 = vpack.c.b16 %v739, %v738
      %v753 = vpack.c.b16 %v741, %v740
      %v754 = vpack.c.b16 %v743, %v742
      %v755 = vpack.c.b16 %v745, %v744
      %v756 = vpack.c.b16 %v747, %v746
      %v757 = vpack.c.b16 %v749, %v748
      %766 = vmatprep.subr.bf16.mxu0 0
      %767 = vmatpush1.bf16.msra.mxu0 %v750
      %768 = vmatprep.subr.bf16.mxu0 0
      %769 = vmatpush1.bf16.msra.mxu0 %v751
      %770 = vmatprep.subr.bf16.mxu0 0
      %771 = vmatpush1.bf16.msra.mxu0 %v752
      %772 = vmatprep.subr.bf16.mxu0 0
      %773 = vmatpush1.bf16.msra.mxu0 %v753
      %774 = vmatprep.subr.bf16.mxu0 0
      %775 = vmatpush1.bf16.msra.mxu0 %v754
      %776 = vmatprep.subr.bf16.mxu0 0
      %777 = vmatpush1.bf16.msra.mxu0 %v755
      %778 = vmatprep.subr.bf16.mxu0 0
      %779 = vmatpush1.bf16.msra.mxu0 %v756
      %780 = vmatprep.subr.bf16.mxu0 0
      %781 = vmatpush1.bf16.msra.mxu0 %v757
      %782 = vmatprep.subr.bf16.mxu0 0
      %783 = vmatpush1.bf16.msra.mxu0 0
      %784 = vmatprep.subr.bf16.mxu0 0
      %785 = vmatpush1.bf16.msra.mxu0 0
      %786 = vmatprep.subr.bf16.mxu0 0
      %787 = vmatpush1.bf16.msra.mxu0 0
      %788 = vmatprep.subr.bf16.mxu0 0
      %789 = vmatpush1.bf16.msra.mxu0 0
      %790 = vmatprep.subr.bf16.mxu0 0
      %791 = vmatpush1.bf16.msra.mxu0 0
      %792 = vmatprep.subr.bf16.mxu0 0
      %793 = vmatpush1.bf16.msra.mxu0 0
      %794 = vmatprep.subr.bf16.mxu0 0
      %795 = vmatpush1.bf16.msra.mxu0 0
      %796 = vmatprep.subr.bf16.mxu0 0
      %797 = vmatpush1.bf16.msra.mxu0 0
      %798 = vmatprep.mubr.bf16.mxu0 0
      %799 = vmatmul.mubr.bf16.gmra.mrb[0].mxu0 %v710
      %v800 = vpop.f32.mrb[0].mxu0
      %v801 = vadd.f32 0.0, %v800
      %v802 = vpop.f32.mrb[0].mxu0
      %v803 = vpop.f32.mrb[0].mxu0
      %v804 = vadd.f32 0.0, %v803
      %v805 = vpop.f32.mrb[0].mxu0
      %806 = vmatprep.mubr.bf16.mxu0 0
      %807 = vmatmul.mubr.bf16.gmra.mrb[0].mxu0 %v711
      %v808 = vpop.f32.mrb[0].mxu0
      %v809 = vadd.f32 0.0, %v808
      %v810 = vpop.f32.mrb[0].mxu0
      %v811 = vpop.f32.mrb[0].mxu0
      %v812 = vadd.f32 0.0, %v811
      %v813 = vpop.f32.mrb[0].mxu0
      %814 = vmatprep.mubr.bf16.mxu0 0
      %815 = vmatmul.mubr.bf16.gmra.mrb[0].mxu0 %v712
      %v816 = vpop.f32.mrb[0].mxu0
      %v817 = vadd.f32 0.0, %v816
      %v818 = vpop.f32.mrb[0].mxu0
      %v819 = vpop.f32.mrb[0].mxu0
      %v820 = vadd.f32 0.0, %v819
      %v821 = vpop.f32.mrb[0].mxu0
      %822 = vmatprep.mubr.bf16.mxu0 0
      %823 = vmatmul.mubr.bf16.gmra.mrb[0].mxu0 %v713
      %v824 = vpop.f32.mrb[0].mxu0
      %v825 = vadd.f32 0.0, %v824
      %v826 = vpop.f32.mrb[0].mxu0
      %v827 = vpop.f32.mrb[0].mxu0
      %v828 = vadd.f32 0.0, %v827
      %v829 = vpop.f32.mrb[0].mxu0
      %830 = vdwg.mxu0
      %v831 = vld [vmem:[#allocation2] sm:$0xff]
      %v832 = vld [vmem:[#allocation2 + $0x8] sm:$0xff]
      %v833 = vld [vmem:[#allocation2 + $0x10] sm:$0xff]
      %v834 = vld [vmem:[#allocation2 + $0x18] sm:$0xff]
      %v835 = vld [vmem:[#allocation2 + $0x20] sm:$0xff]
      %v836 = vld [vmem:[#allocation2 + $0x28] sm:$0xff]
      %v837 = vld [vmem:[#allocation2 + $0x30] sm:$0xff]
      %v838 = vld [vmem:[#allocation2 + $0x38] sm:$0xff]
      %v839 = vadd.f32 %v831, %v801
      %v840 = vadd.f32 %v832, %v804
      %v841 = vadd.f32 %v833, %v809
      %v842 = vadd.f32 %v834, %v812
      %v843 = vadd.f32 %v835, %v817
      %v844 = vadd.f32 %v836, %v820
      %v845 = vadd.f32 %v837, %v825
      %v846 = vadd.f32 %v838, %v828
      %847 = vst [vmem:[#allocation2] sm:$0xff] %v839
      %848 = vst [vmem:[#allocation2 + $0x8] sm:$0xff] %v840
      %849 = vst [vmem:[#allocation2 + $0x10] sm:$0xff] %v841
      %850 = vst [vmem:[#allocation2 + $0x18] sm:$0xff] %v842
      %851 = vst [vmem:[#allocation2 + $0x20] sm:$0xff] %v843
      %852 = vst [vmem:[#allocation2 + $0x28] sm:$0xff] %v844
      %853 = vst [vmem:[#allocation2 + $0x30] sm:$0xff] %v845
      %854 = vst [vmem:[#allocation2 + $0x38] sm:$0xff] %v846
      %v856 = vshrl.u32 %v243, 16
      %v858 = vrot.slane %v856, 4
      %v859 = vshll.u32 %v243, 16
      %v861 = vrot.slane %v859, 5
      %v862 = vor.u32 %v858, %v861
      %v863 = vrot.slane %v862, 4
      %v865 = vshll.u32 %v244, 16
      %v867 = vrot.slane %v865, 5
      %v868 = vsel %vm408, %v863, %v867
      %s869 = scalar_lea.vmem %s1, 192
      %v870 = vld [vmem:[%s869] sm:$0xf]
      %v871 = vld [vmem:[%s869 + $0x4] sm:$0xf]
      %v872 = vld [vmem:[%s869 + $0x8] sm:$0xf]
      %v873 = vld [vmem:[%s869 + $0xc] sm:$0xf]
      %v874 = vld [vmem:[%s869 + $0x10] sm:$0xf]
      %v875 = vld [vmem:[%s869 + $0x14] sm:$0xf]
      %v876 = vld [vmem:[%s869 + $0x18] sm:$0xf]
      %v877 = vld [vmem:[%s869 + $0x1c] sm:$0xf]
      %v878 = vld [vmem:[%s869 + $0x20] sm:$0xf]
      %v879 = vld [vmem:[%s869 + $0x24] sm:$0xf]
      %v880 = vld [vmem:[%s869 + $0x28] sm:$0xf]
      %v881 = vld [vmem:[%s869 + $0x2c] sm:$0xf]
      %v882 = vld [vmem:[%s869 + $0x30] sm:$0xf]
      %v883 = vld [vmem:[%s869 + $0x34] sm:$0xf]
      %v884 = vld [vmem:[%s869 + $0x38] sm:$0xf]
      %v885 = vld [vmem:[%s869 + $0x3c] sm:$0xf]
      %v886 = vunpack.c.l.b16 %v868
      %v887 = vpack.c.b16 %v540, %v539
      %v888 = vpack.c.b16 %v542, %v541
      %v889 = vpack.c.b16 %v544, %v543
      %v890 = vpack.c.b16 %v886, %v545
      %v911 = vunpack.c.l.b16 %v870
      %v912 = vunpack.c.l.b16 %v871
      %v913 = vunpack.c.l.b16 %v872
      %v914 = vunpack.c.l.b16 %v873
      %v915 = vunpack.c.l.b16 %v874
      %v916 = vunpack.c.l.b16 %v875
      %v917 = vunpack.c.l.b16 %v876
      %v918 = vunpack.c.l.b16 %v877
      %v919 = vunpack.c.l.b16 %v878
      %v920 = vunpack.c.l.b16 %v879
      %v921 = vunpack.c.l.b16 %v880
      %v922 = vunpack.c.l.b16 %v881
      %v923 = vunpack.c.l.b16 %v882
      %v924 = vunpack.c.l.b16 %v883
      %v925 = vunpack.c.l.b16 %v884
      %v926 = vunpack.c.l.b16 %v885
      %v927 = vpack.c.b16 %v912, %v911
      %v928 = vpack.c.b16 %v914, %v913
      %v929 = vpack.c.b16 %v916, %v915
      %v930 = vpack.c.b16 %v918, %v917
      %v931 = vpack.c.b16 %v920, %v919
      %v932 = vpack.c.b16 %v922, %v921
      %v933 = vpack.c.b16 %v924, %v923
      %v934 = vpack.c.b16 %v926, %v925
      %943 = vmatprep.subr.bf16.mxu0 0
      %944 = vmatpush1.bf16.msra.mxu0 %v927
      %945 = vmatprep.subr.bf16.mxu0 0
      %946 = vmatpush1.bf16.msra.mxu0 %v928
      %947 = vmatprep.subr.bf16.mxu0 0
      %948 = vmatpush1.bf16.msra.mxu0 %v929
      %949 = vmatprep.subr.bf16.mxu0 0
      %950 = vmatpush1.bf16.msra.mxu0 %v930
      %951 = vmatprep.subr.bf16.mxu0 0
      %952 = vmatpush1.bf16.msra.mxu0 %v931
      %953 = vmatprep.subr.bf16.mxu0 0
      %954 = vmatpush1.bf16.msra.mxu0 %v932
      %955 = vmatprep.subr.bf16.mxu0 0
      %956 = vmatpush1.bf16.msra.mxu0 %v933
      %957 = vmatprep.subr.bf16.mxu0 0
      %958 = vmatpush1.bf16.msra.mxu0 %v934
      %959 = vmatprep.subr.bf16.mxu0 0
      %960 = vmatpush1.bf16.msra.mxu0 0
      %961 = vmatprep.subr.bf16.mxu0 0
      %962 = vmatpush1.bf16.msra.mxu0 0
      %963 = vmatprep.subr.bf16.mxu0 0
      %964 = vmatpush1.bf16.msra.mxu0 0
      %965 = vmatprep.subr.bf16.mxu0 0
      %966 = vmatpush1.bf16.msra.mxu0 0
      %967 = vmatprep.subr.bf16.mxu0 0
      %968 = vmatpush1.bf16.msra.mxu0 0
      %969 = vmatprep.subr.bf16.mxu0 0
      %970 = vmatpush1.bf16.msra.mxu0 0
      %971 = vmatprep.subr.bf16.mxu0 0
      %972 = vmatpush1.bf16.msra.mxu0 0
      %973 = vmatprep.subr.bf16.mxu0 0
      %974 = vmatpush1.bf16.msra.mxu0 0
      %975 = vmatprep.mubr.bf16.mxu0 0
      %976 = vmatmul.mubr.bf16.gmra.mrb[0].mxu0 %v887
      %v977 = vpop.f32.mrb[0].mxu0
      %v978 = vadd.f32 0.0, %v977
      %v979 = vpop.f32.mrb[0].mxu0
      %v980 = vpop.f32.mrb[0].mxu0
      %v981 = vadd.f32 0.0, %v980
      %v982 = vpop.f32.mrb[0].mxu0
      %983 = vmatprep.mubr.bf16.mxu0 0
      %984 = vmatmul.mubr.bf16.gmra.mrb[0].mxu0 %v888
      %v985 = vpop.f32.mrb[0].mxu0
      %v986 = vadd.f32 0.0, %v985
      %v987 = vpop.f32.mrb[0].mxu0
      %v988 = vpop.f32.mrb[0].mxu0
      %v989 = vadd.f32 0.0, %v988
      %v990 = vpop.f32.mrb[0].mxu0
      %991 = vmatprep.mubr.bf16.mxu0 0
      %992 = vmatmul.mubr.bf16.gmra.mrb[0].mxu0 %v889
      %v993 = vpop.f32.mrb[0].mxu0
      %v994 = vadd.f32 0.0, %v993
      %v995 = vpop.f32.mrb[0].mxu0
      %v996 = vpop.f32.mrb[0].mxu0
      %v997 = vadd.f32 0.0, %v996
      %v998 = vpop.f32.mrb[0].mxu0
      %999 = vmatprep.mubr.bf16.mxu0 0
      %1000 = vmatmul.mubr.bf16.gmra.mrb[0].mxu0 %v890
      %v1001 = vpop.f32.mrb[0].mxu0
      %v1002 = vadd.f32 0.0, %v1001
      %v1003 = vpop.f32.mrb[0].mxu0
      %v1004 = vpop.f32.mrb[0].mxu0
      %v1005 = vadd.f32 0.0, %v1004
      %v1006 = vpop.f32.mrb[0].mxu0
      %1007 = vdwg.mxu0
      %v1008 = vld [vmem:[#allocation2] sm:$0xff]
      %v1009 = vld [vmem:[#allocation2 + $0x8] sm:$0xff]
      %v1010 = vld [vmem:[#allocation2 + $0x10] sm:$0xff]
      %v1011 = vld [vmem:[#allocation2 + $0x18] sm:$0xff]
      %v1012 = vld [vmem:[#allocation2 + $0x20] sm:$0xff]
      %v1013 = vld [vmem:[#allocation2 + $0x28] sm:$0xff]
      %v1014 = vld [vmem:[#allocation2 + $0x30] sm:$0xff]
      %v1015 = vld [vmem:[#allocation2 + $0x38] sm:$0xff]
      %v1016 = vadd.f32 %v1008, %v978
      %v1017 = vadd.f32 %v1009, %v981
      %v1018 = vadd.f32 %v1010, %v986
      %v1019 = vadd.f32 %v1011, %v989
      %v1020 = vadd.f32 %v1012, %v994
      %v1021 = vadd.f32 %v1013, %v997
      %v1022 = vadd.f32 %v1014, %v1002
      %v1023 = vadd.f32 %v1015, %v1005
      %1024 = vst [vmem:[#allocation2] sm:$0xff] %v1016
      %1025 = vst [vmem:[#allocation2 + $0x8] sm:$0xff] %v1017
      %1026 = vst [vmem:[#allocation2 + $0x10] sm:$0xff] %v1018
      %1027 = vst [vmem:[#allocation2 + $0x18] sm:$0xff] %v1019
      %1028 = vst [vmem:[#allocation2 + $0x20] sm:$0xff] %v1020
      %1029 = vst [vmem:[#allocation2 + $0x28] sm:$0xff] %v1021
      %1030 = vst [vmem:[#allocation2 + $0x30] sm:$0xff] %v1022
      %1031 = vst [vmem:[#allocation2 + $0x38] sm:$0xff] %v1023
      %v1032 = vld [vmem:[#allocation2] sm:$0xff]
      %v1033 = vld [vmem:[#allocation2 + $0x8] sm:$0xff]
      %v1034 = vld [vmem:[#allocation2 + $0x10] sm:$0xff]
      %v1035 = vld [vmem:[#allocation2 + $0x18] sm:$0xff]
      %v1036 = vld [vmem:[#allocation2 + $0x20] sm:$0xff]
      %v1037 = vld [vmem:[#allocation2 + $0x28] sm:$0xff]
      %v1038 = vld [vmem:[#allocation2 + $0x30] sm:$0xff]
      %v1039 = vld [vmem:[#allocation2 + $0x38] sm:$0xff]
      %v1040 = vld [vmem:[%s2] sm:$0x1]
      %v1042 = vlaneseq
      %v1043 = vshrl.u32 %v1042, 7
      %v1044 = vsub.s32 0, %v1043
      %v1045 = vrot.slane %v1040, %v1044
      %v1047 = vadd.f32 %v1032, %v1045
      %v1048 = vadd.f32 %v1033, %v1045
      %v1049 = vadd.f32 %v1034, %v1045
      %v1050 = vadd.f32 %v1035, %v1045
      %v1051 = vadd.f32 %v1036, %v1045
      %v1052 = vadd.f32 %v1037, %v1045
      %v1053 = vadd.f32 %v1038, %v1045
      %v1054 = vadd.f32 %v1039, %v1045
      %v1055 = vpack.c.bf16 %v1048, %v1047
      %v1056 = vpack.c.bf16 %v1050, %v1049
      %v1057 = vpack.c.bf16 %v1052, %v1051
      %v1058 = vpack.c.bf16 %v1054, %v1053
      %v1063 = vunpack.c.l.b16 %v1055
      %v1064 = vunpack.c.h.b16 %v1055
      %v1065 = vunpack.c.l.b16 %v1056
      %v1066 = vunpack.c.h.b16 %v1056
      %v1067 = vunpack.c.l.b16 %v1057
      %v1068 = vunpack.c.h.b16 %v1057
      %v1069 = vunpack.c.l.b16 %v1058
      %v1070 = vunpack.c.h.b16 %v1058
      %v1071 = vpack.c.b16 %v1063, %v1063
      %v1072 = vpack.c.b16 %v1064, %v1064
      %v1073 = vpack.c.b16 %v1065, %v1065
      %v1074 = vpack.c.b16 %v1066, %v1066
      %v1075 = vpack.c.b16 %v1067, %v1067
      %v1076 = vpack.c.b16 %v1068, %v1068
      %v1077 = vpack.c.b16 %v1069, %v1069
      %v1078 = vpack.c.b16 %v1070, %v1070
      %1087 = vst [vmem:[%s219] sm:$0xf] %v1071
      %1088 = vst [vmem:[%s219 + $0x4] sm:$0xf] %v1072
      %1089 = vst [vmem:[%s219 + $0x8] sm:$0xf] %v1073
      %1090 = vst [vmem:[%s219 + $0xc] sm:$0xf] %v1074
      %1091 = vst [vmem:[%s219 + $0x10] sm:$0xf] %v1075
      %1092 = vst [vmem:[%s219 + $0x14] sm:$0xf] %v1076
      %1093 = vst [vmem:[%s219 + $0x18] sm:$0xf] %v1077
      %1094 = vst [vmem:[%s219 + $0x1c] sm:$0xf] %v1078
      %v1095 = vunpack.c.l.bf16 %v1055
      %v1096 = vunpack.c.h.bf16 %v1055
      %v1097 = vunpack.c.l.bf16 %v1056
      %v1098 = vunpack.c.h.bf16 %v1056
      %v1099 = vunpack.c.l.bf16 %v1057
      %v1100 = vunpack.c.h.bf16 %v1057
      %v1101 = vunpack.c.l.bf16 %v1058
      %v1102 = vunpack.c.h.bf16 %v1058
      %v1103 = vld [vmem:[%s4] sm:$0x1]
      %v1104 = vadd.f32 %v1095, %v1096
      %v1105 = vadd.f32 %v1104, %v1097
      %v1106 = vadd.f32 %v1105, %v1098
      %v1107 = vadd.f32 %v1106, %v1099
      %v1108 = vadd.f32 %v1107, %v1100
      %v1109 = vadd.f32 %v1108, %v1101
      %v1110 = vadd.f32 %v1109, %v1102
      %v1111 = vrot.slane %v1110, 4
      %v1112 = vadd.f32 %v1110, %v1111
      %v1113 = vrot.slane %v1112, 2
      %v1114 = vadd.f32 %v1112, %v1113
      %v1115 = vrot.slane %v1114, 1
      %v1116 = vadd.f32 %v1114, %v1115
      %v1117 = vadd.f32 %v1103, %v1116
      %1118 = vst [vmem:[%s4] sm:$0x1] %v1117
      %v1119 = vld [vmem:[%s5] sm:$0x1]
      %v1120 = vmul.f32 %v1095, %v1095
      %v1121 = vmul.f32 %v1096, %v1096
      %v1122 = vmul.f32 %v1097, %v1097
      %v1123 = vmul.f32 %v1098, %v1098
      %v1124 = vmul.f32 %v1099, %v1099
      %v1125 = vmul.f32 %v1100, %v1100
      %v1126 = vmul.f32 %v1101, %v1101
      %v1127 = vmul.f32 %v1102, %v1102
      %v1128 = vadd.f32 %v1120, %v1121
      %v1129 = vadd.f32 %v1128, %v1122
      %v1130 = vadd.f32 %v1129, %v1123
      %v1131 = vadd.f32 %v1130, %v1124
      %v1132 = vadd.f32 %v1131, %v1125
      %v1133 = vadd.f32 %v1132, %v1126
      %v1134 = vadd.f32 %v1133, %v1127
      %v1135 = vrot.slane %v1134, 4
      %v1136 = vadd.f32 %v1134, %v1135
      %v1137 = vrot.slane %v1136, 2
      %v1138 = vadd.f32 %v1136, %v1137
      %v1139 = vrot.slane %v1138, 1
      %v1140 = vadd.f32 %v1138, %v1139
      %v1141 = vadd.f32 %v1119, %v1140
      %1142 = vst [vmem:[%s5] sm:$0x1] %v1141
      %p1143 = scmp.lt.s32.totalorder %s17, 1
      %s1144 = scalar_select %p1143, %s17, 1
      %s1145 = smul.addr %s1144, 8
      %s1146 = smul.addr %s1145, 4
      %s1147 = scalar_lea.vmem %s3, %s1146
      // Predicated region
      $region37: #{res_unit_forward.3} parent=31 // pred_check
        %p1148 = pneg %p103
      $region38: #{res_unit_forward.3} parent=31 // pred_check_branch
        %1150 = sbr.rel (%p1148) target = $region40
      $region39: #{res_unit_forward.3} parent=31 // pred_region
        _
      $region40: #{res_unit_forward.3} parent=31 // pred_fallthru
        _
      // Predicated region
      $region41: #{res_unit_forward.3} parent=31 // pred_check
        %p1151 = pneg %p124
      $region42: #{res_unit_forward.3} parent=31 // pred_check_branch
        %1153 = sbr.rel (%p1151) target = $region44
      $region43: #{res_unit_forward.3} parent=31 // pred_region
        _
      $region44: #{res_unit_forward.3} parent=31 // pred_fallthru
        _
      // Predicated region
      $region45: #{res_unit_forward.3} parent=31 // pred_check
        %p1154 = pneg %p145
      $region46: #{res_unit_forward.3} parent=31 // pred_check_branch
        %1156 = sbr.rel (%p1154) target = $region48
      $region47: #{res_unit_forward.3} parent=31 // pred_region
        _
      $region48: #{res_unit_forward.3} parent=31 // pred_fallthru
        _
      // Predicated region
      $region49: #{res_unit_forward.3} parent=31 // pred_check
        %p1157 = pneg %p124
      $region50: #{res_unit_forward.3} parent=31 // pred_check_branch
        %1159 = sbr.rel (%p1157) target = $region52
      $region51: #{res_unit_forward.3} parent=31 // pred_region
        _
      $region52: #{res_unit_forward.3} parent=31 // pred_fallthru
        _
      // Predicated region
      $region53: #{res_unit_forward.3} parent=31 // pred_check
        %p1160 = pneg %p145
      $region54: #{res_unit_forward.3} parent=31 // pred_check_branch
        %1162 = sbr.rel (%p1160) target = $region56
      $region55: #{res_unit_forward.3} parent=31 // pred_region
        _
      $region56: #{res_unit_forward.3} parent=31 // pred_fallthru
        _
    $region32: #{res_unit_forward.3} parent=5 // pred_fallthru
      _
    %p1163 = scmp.le.s32.totalorder 2, %s12
    // Predicated region
    $region57: #{res_unit_forward.3} parent=5 // pred_check
      %p1164 = pneg %p1163
    $region58: #{res_unit_forward.3} parent=5 // pred_check_branch
      %1166 = sbr.rel (%p1164) target = $region60
    $region59: #{res_unit_forward.3} parent=5 // pred_region
      %s1167 = ssub.s32 %s12, 2
      // Predicated region
      $region61: #{res_unit_forward.3} parent=59 // pred_check
        %p1168 = pneg %p109
      $region62: #{res_unit_forward.3} parent=59 // pred_check_branch
        %1170 = sbr.rel (%p1168) target = $region64
      $region63: #{res_unit_forward.3} parent=59 // pred_region
        %p1171 = scmp.lt.s32.totalorder %s18, 1
        %s1172 = scalar_select %p1171, %s18, 1
        %s1173 = smul.addr %s1172, 8
        %s1174 = smul.addr %s1173, 4
        %s1175 = scalar_lea.vmem %s3, %s1174
      $region64: #{res_unit_forward.3} parent=59 // pred_fallthru
        _
    $region60: #{res_unit_forward.3} parent=5 // pred_fallthru
      _
  $region6: #{res_unit_forward.3} parent=0 // loop_footer
    %s16 = sadd.s32 1, %s12
  $region7: #{res_unit_forward.3} parent=0 // loop_footer_branch
    %11 = sbr.rel target = $region3
  $region8: #{res_unit_forward.3} parent=0 // loop_exit
    _

// kernel: res_unit_forward.4
$region0: #{res_unit_forward.4}
  #allocation0 [shape = 'u32[]', space=smem, size = 0x4, offset = 0x4, fixed_abs, tag = 'smem constant byte address 0x4 - core index']
  #allocation1 [shape = 'u32[144,128]{1,0:T(1,128)}', space=vmem, size = 0x12000, scoped, tag = 'internal scratch']
  #allocation2 [shape = 'f32[64,128]{1,0:T(8,128)}', space=vmem, size = 0x8000, scoped, tag = 'scratch operand']
  %s0 = inlined_call_operand.vmem [shape: bf16[2,10,10,128], index: 0, kind: input, shape index: {}]
  %s1 = inlined_call_operand.vmem [shape: bf16[9,128,128], index: 1, kind: input, shape index: {}]
  %s2 = inlined_call_operand.vmem [shape: f32[1,128], index: 2, kind: input, shape index: {}]
  %s3 = inlined_call_operand.vmem [shape: bf16[2,8,8,128], index: 3, kind: output, shape index: {0}]
  %s4 = inlined_call_operand.vmem [shape: f32[1,128], index: 4, kind: output, shape index: {1}]
  %s5 = inlined_call_operand.vmem [shape: f32[1,128], index: 5, kind: output, shape index: {2}]
  %6 = xla_tuple %s3, %s4, %s5
  %s7 = sld [smem:[#allocation0]]
  $region65: #{res_unit_forward.4} parent=0
    _
  %s9 = ssub.s32 1, %s7
  %s10 = scalar_select 0, %s9, %s7
  loop: start=0, step=1, limit=4
  $region2: #{res_unit_forward.4} parent=0 // loop_pre_header
    _
  $region3: #{res_unit_forward.4} parent=0 // loop_header
    %s12 = sphi 0, %s16
    %p13 = scmp.ge.s32.totalorder %s12, 4
    %s22 = sphi 0, %s24
    %s25 = sphi 0, %s22
    %s26 = sphi 0, %s25
    %s42 = sphi 0, %s26
    %s46 = sphi 0, %s46
    %s48 = sphi 0, %s46
    %s49 = sphi 0, %s48
    %s63 = sphi 0, %s49
    %s67 = sphi 0, %s67
    %s69 = sphi 0, %s67
    %s70 = sphi 0, %s69
    %s84 = sphi 0, %s70
    %s90 = sphi 0, %s92
    %s93 = sphi 0, %s90
    %s94 = sphi 0, %s93
    %s110 = sphi 0, %s94
    %s114 = sphi 0, %s114
    %s116 = sphi 0, %s114
    %s117 = sphi 0, %s116
    %s131 = sphi 0, %s117
    %s135 = sphi 0, %s135
    %s137 = sphi 0, %s135
    %s138 = sphi 0, %s137
    %s152 = sphi 0, %s138
  $region4: #{res_unit_forward.4} parent=0 // loop_header_branch
    %15 = sbr.rel (%p13) target = $region8
  $region5: #{res_unit_forward.4} parent=0 // loop_body
    %s17 = ssub.s32 %s12, 1
    %s18 = ssub.s32 %s12, 2
    %s19 = sadd.s32 %s12, 1
    %s20 = ssub.s32 %s12, %s19
    %p21 = scmp.eq.s32.totalorder %s20, 0
    %s23 = sadd.s32 %s22, 1
    %s24 = scalar_select %p21, %s22, %s23
    %p27 = pneg %p21
    %p28 = scmp.eq.s32.totalorder %s12, 1
    %p29 = por %p27, %p28
    %p30 = scmp.ne.s32.totalorder %s22, %s25
    %p31 = scmp.eq.s32.totalorder %s12, 0
    %p32 = por %p30, %p31
    %p33 = scmp.ne.s32.totalorder %s22, %s25
    %p34 = scmp.eq.s32.totalorder %s17, 1
    %p35 = por %p33, %p34
    %p36 = scmp.ne.s32.totalorder %s25, %s26
    %p37 = scmp.eq.s32.totalorder %s17, 0
    %p38 = por %p36, %p37
    %p39 = scmp.ne.s32.totalorder %s25, %s26
    %p40 = scmp.eq.s32.totalorder %s18, 1
    %p41 = por %p39, %p40
    %p43 = scmp.ne.s32.totalorder %s26, %s42
    %p44 = scmp.eq.s32.totalorder %s18, 0
    %p45 = por %p43, %p44
    %s47 = sadd.s32 %s46, 1
    %p50 = scmp.eq.s32.totalorder %s12, 1
    %p51 = scmp.ne.s32.totalorder %s46, %s48
    %p52 = scmp.eq.s32.totalorder %s12, 0
    %p53 = por %p51, %p52
    %p54 = scmp.ne.s32.totalorder %s46, %s48
    %p55 = scmp.eq.s32.totalorder %s17, 1
    %p56 = por %p54, %p55
    %p57 = scmp.ne.s32.totalorder %s48, %s49
    %p58 = scmp.eq.s32.totalorder %s17, 0
    %p59 = por %p57, %p58
    %p60 = scmp.ne.s32.totalorder %s48, %s49
    %p61 = scmp.eq.s32.totalorder %s18, 1
    %p62 = por %p60, %p61
    %p64 = scmp.ne.s32.totalorder %s49, %s63
    %p65 = scmp.eq.s32.totalorder %s18, 0
    %p66 = por %p64, %p65
    %s68 = sadd.s32 %s67, 1
    %p71 = scmp.eq.s32.totalorder %s12, 1
    %p72 = scmp.ne.s32.totalorder %s67, %s69
    %p73 = scmp.eq.s32.totalorder %s12, 0
    %p74 = por %p72, %p73
    %p75 = scmp.ne.s32.totalorder %s67, %s69
    %p76 = scmp.eq.s32.totalorder %s17, 1
    %p77 = por %p75, %p76
    %p78 = scmp.ne.s32.totalorder %s69, %s70
    %p79 = scmp.eq.s32.totalorder %s17, 0
    %p80 = por %p78, %p79
    %p81 = scmp.ne.s32.totalorder %s69, %s70
    %p82 = scmp.eq.s32.totalorder %s18, 1
    %p83 = por %p81, %p82
    %p85 = scmp.ne.s32.totalorder %s70, %s84
    %p86 = scmp.eq.s32.totalorder %s18, 0
    %p87 = por %p85, %p86
    %s88 = ssub.s32 %s12, %s19
    %p89 = scmp.eq.s32.totalorder %s88, 0
    %s91 = sadd.s32 %s90, 1
    %s92 = scalar_select %p89, %s90, %s91
    %p95 = pneg %p89
    %p96 = scmp.eq.s32.totalorder %s12, 1
    %p97 = por %p95, %p96
    %p98 = scmp.ne.s32.totalorder %s90, %s93
    %p99 = scmp.eq.s32.totalorder %s12, 0
    %p100 = por %p98, %p99
    %p101 = scmp.ne.s32.totalorder %s90, %s93
    %p102 = scmp.eq.s32.totalorder %s17, 1
    %p103 = por %p101, %p102
    %p104 = scmp.ne.s32.totalorder %s93, %s94
    %p105 = scmp.eq.s32.totalorder %s17, 0
    %p106 = por %p104, %p105
    %p107 = scmp.ne.s32.totalorder %s93, %s94
    %p108 = scmp.eq.s32.totalorder %s18, 1
    %p109 = por %p107, %p108
    %p111 = scmp.ne.s32.totalorder %s94, %s110
    %p112 = scmp.eq.s32.totalorder %s18, 0
    %p113 = por %p111, %p112
    %s115 = sadd.s32 %s114, 1
    %p118 = scmp.eq.s32.totalorder %s12, 1
    %p119 = scmp.ne.s32.totalorder %s114, %s116
    %p120 = scmp.eq.s32.totalorder %s12, 0
    %p121 = por %p119, %p120
    %p122 = scmp.ne.s32.totalorder %s114, %s116
    %p123 = scmp.eq.s32.totalorder %s17, 1
    %p124 = por %p122, %p123
    %p125 = scmp.ne.s32.totalorder %s116, %s117
    %p126 = scmp.eq.s32.totalorder %s17, 0
    %p127 = por %p125, %p126
    %p128 = scmp.ne.s32.totalorder %s116, %s117
    %p129 = scmp.eq.s32.totalorder %s18, 1
    %p130 = por %p128, %p129
    %p132 = scmp.ne.s32.totalorder %s117, %s131
    %p133 = scmp.eq.s32.totalorder %s18, 0
    %p134 = por %p132, %p133
    %s136 = sadd.s32 %s135, 1
    %p139 = scmp.eq.s32.totalorder %s12, 1
    %p140 = scmp.ne.s32.totalorder %s135, %s137
    %p141 = scmp.eq.s32.totalorder %s12, 0
    %p142 = por %p140, %p141
    %p143 = scmp.ne.s32.totalorder %s135, %s137
    %p144 = scmp.eq.s32.totalorder %s17, 1
    %p145 = por %p143, %p144
    %p146 = scmp.ne.s32.totalorder %s137, %s138
    %p147 = scmp.eq.s32.totalorder %s17, 0
    %p148 = por %p146, %p147
    %p149 = scmp.ne.s32.totalorder %s137, %s138
    %p150 = scmp.eq.s32.totalorder %s18, 1
    %p151 = por %p149, %p150
    %p153 = scmp.ne.s32.totalorder %s138, %s152
    %p154 = scmp.eq.s32.totalorder %s18, 0
    %p155 = por %p153, %p154
    %p156 = scmp.le.s32.totalorder 1, %s12
    %p157 = scmp.lt.s32.totalorder %s12, 3
    %p158 = pnand %p156, %p157
    %p159 = pneg %p158
    // Predicated region
    $region9: #{res_unit_forward.4} parent=5 // pred_check
      _
    $region10: #{res_unit_forward.4} parent=5 // pred_check_branch
      %161 = sbr.rel (%p158) target = $region12
    $region11: #{res_unit_forward.4} parent=5 // pred_region
      %s162 = ssub.s32 %s12, 1
      // Predicated region
      $region13: #{res_unit_forward.4} parent=11 // pred_check
        %p163 = pneg %p59
      $region14: #{res_unit_forward.4} parent=11 // pred_check_branch
        %165 = sbr.rel (%p163) target = $region16
      $region15: #{res_unit_forward.4} parent=11 // pred_region
        _
      $region16: #{res_unit_forward.4} parent=11 // pred_fallthru
        _
      // Predicated region
      $region17: #{res_unit_forward.4} parent=11 // pred_check
        %p166 = pneg %p80
      $region18: #{res_unit_forward.4} parent=11 // pred_check_branch
        %168 = sbr.rel (%p166) target = $region20
      $region19: #{res_unit_forward.4} parent=11 // pred_region
        _
      $region20: #{res_unit_forward.4} parent=11 // pred_fallthru
        _
    $region12: #{res_unit_forward.4} parent=5 // pred_fallthru
      _
    %p169 = scmp.lt.s32.totalorder %s12, 2
    // Predicated region
    $region21: #{res_unit_forward.4} parent=5 // pred_check
      %p170 = pneg %p169
    $region22: #{res_unit_forward.4} parent=5 // pred_check_branch
      %172 = sbr.rel (%p170) target = $region24
    $region23: #{res_unit_forward.4} parent=5 // pred_region
      // Predicated region
      $region25: #{res_unit_forward.4} parent=23 // pred_check
        %p173 = pneg %p32
      $region26: #{res_unit_forward.4} parent=23 // pred_check_branch
        %175 = sbr.rel (%p173) target = $region28
      $region27: #{res_unit_forward.4} parent=23 // pred_region
        %p176 = scmp.lt.s32.totalorder %s12, 1
        %s177 = scalar_select %p176, %s12, 1
        %s178 = smul.addr %s177, 20
        %s179 = smul.addr %s178, 4
        %s180 = scalar_lea.vmem %s0, %s179
      $region28: #{res_unit_forward.4} parent=23 // pred_fallthru
        _
    $region24: #{res_unit_forward.4} parent=5 // pred_fallthru
      _
    %p181 = scmp.le.s32.totalorder 1, %s12
    %p182 = scmp.lt.s32.totalorder %s12, 3
    %p183 = pnand %p181, %p182
    %p184 = pneg %p183
    // Predicated region
    $region29: #{res_unit_forward.4} parent=5 // pred_check
      _
    $region30: #{res_unit_forward.4} parent=5 // pred_check_branch
      %186 = sbr.rel (%p183) target = $region32
    $region31: #{res_unit_forward.4} parent=5 // pred_region
      %s187 = ssub.s32 %s12, 1
      %p188 = scmp.lt.s32.totalorder %s17, 1
      %s189 = scalar_select %p188, %s17, 1
      %s190 = smul.addr %s189, 20
      %s191 = smul.addr %s190, 4
      %s192 = scalar_lea.vmem %s0, %s191
      %p193 = pneg %p38
      %p194 = pneg %p35
      %p195 = pneg %p59
      %p196 = pneg %p56
      %p197 = pneg %p80
      %p198 = pneg %p77
      %p199 = pneg %p106
      %p200 = pneg %p103
      %p201 = scmp.lt.s32.totalorder %s17, 1
      %s202 = scalar_select %p201, %s17, 1
      %s203 = smul.addr %s202, 8
      %s204 = smul.addr %s203, 4
      %s205 = scalar_lea.vmem %s3, %s204
      %p206 = pneg %p127
      %p207 = pneg %p124
      %p208 = pneg %p148
      %p209 = pneg %p145
      %p210 = scmp.lt.s32.totalorder %s17, 1
      %s211 = scalar_select %p210, %s17, 1
      %s212 = smul.addr %s211, 20
      %s213 = smul.addr %s212, 4
      %s214 = scalar_lea.vmem %s0, %s213
      %p215 = scmp.lt.s32.totalorder %s17, 1
      %s216 = scalar_select %p215, %s17, 1
      %s217 = smul.addr %s216, 8
      %s218 = smul.addr %s217, 4
      %s219 = scalar_lea.vmem %s3, %s218
      %p221 = scmp.eq.s32.totalorder %s17, 0
      // Predicated region
      $region33: #{res_unit_forward.4} parent=31 // pred_check
        %p222 = pneg %p221
      $region34: #{res_unit_forward.4} parent=31 // pred_check_branch
        %224 = sbr.rel (%p222) target = $region36
      $region35: #{res_unit_forward.4} parent=31 // pred_region
        %225 = vst [vmem:[%s4] sm:$0x1] 0.0
        %226 = vst [vmem:[%s5] sm:$0x1] 0.0
      $region36: #{res_unit_forward.4} parent=31 // pred_fallthru
        _
      %v227 = vld [vmem:[%s214] sm:$0xf]
      %v228 = vld [vmem:[%s214 + $0x4] sm:$0x1]
      %v229 = vld [vmem:[%s214 + $0x8] sm:$0xf]
      %v230 = vld [vmem:[%s214 + $0xc] sm:$0x1]
      %v231 = vld [vmem:[%s214 + $0x10] sm:$0xf]
      %v232 = vld [vmem:[%s214 + $0x14] sm:$0x1]
      %v233 = vld [vmem:[%s214 + $0x18] sm:$0xf]
      %v234 = vld [vmem:[%s214 + $0x1c] sm:$0x1]
      %v235 = vld [vmem:[%s214 + $0x20] sm:$0xf]
      %v236 = vld [vmem:[%s214 + $0x24] sm:$0x1]
      %v237 = vld [vmem:[%s214 + $0x28] sm:$0xf]
      %v238 = vld [vmem:[%s214 + $0x2c] sm:$0x1]
      %v239 = vld [vmem:[%s214 + $0x30] sm:$0xf]
      %v240 = vld [vmem:[%s214 + $0x34] sm:$0x1]
      %v241 = vld [vmem:[%s214 + $0x38] sm:$0xf]
      %v242 = vld [vmem:[%s214 + $0x3c] sm:$0x1]
      %v243 = vld [vmem:[%s214 + $0x40] sm:$0xf]
      %v244 = vld [vmem:[%s214 + $0x44] sm:$0x1]
      %v245 = vld [vmem:[%s214 + $0x48] sm:$0xf]
      %v246 = vld [vmem:[%s214 + $0x4c] sm:$0x1]
      %v247 = vld [vmem:[%s1] sm:$0xf]
      %v248 = vld [vmem:[%s1 + $0x4] sm:$0xf]
      %v249 = vld [vmem:[%s1 + $0x8] sm:$0xf]
      %v250 = vld [vmem:[%s1 + $0xc] sm:$0xf]
      %v251 = vld [vmem:[%s1 + $0x10] sm:$0xf]
      %v252 = vld [vmem:[%s1 + $0x14] sm:$0xf]
      %v253 = vld [vmem:[%s1 + $0x18] sm:$0xf]
      %v254 = vld [vmem:[%s1 + $0x1c] sm:$0xf]
      %v255 = vld [vmem:[%s1 + $0x20] sm:$0xf]
      %v256 = vld [vmem:[%s1 + $0x24] sm:$0xf]
      %v257 = vld [vmem:[%s1 + $0x28] sm:$0xf]
      %v258 = vld [vmem:[%s1 + $0x2c] sm:$0xf]
      %v259 = vld [vmem:[%s1 + $0x30] sm:$0xf]
      %v260 = vld [vmem:[%s1 + $0x34] sm:$0xf]
      %v261 = vld [vmem:[%s1 + $0x38] sm:$0xf]
      %v262 = vld [vmem:[%s1 + $0x3c] sm:$0xf]
      %v271 = vunpack.c.l.b16 %v227
      %v272 = vunpack.c.l.b16 %v229
      %v273 = vunpack.c.l.b16 %v231
      %v274 = vunpack.c.l.b16 %v233
      %v275 = vunpack.c.l.b16 %v235
      %v276 = vunpack.c.l.b16 %v237
      %v277 = vunpack.c.l.b16 %v239
      %v278 = vunpack.c.l.b16 %v241
      %v279 = vpack.c.b16 %v272, %v271
      %v280 = vpack.c.b16 %v274, %v273
      %v281 = vpack.c.b16 %v276, %v275
      %v282 = vpack.c.b16 %v278, %v277
      %v303 = vunpack.c.l.b16 %v247
      %v304 = vunpack.c.l.b16 %v248
      %v305 = vunpack.c.l.b16 %v249
      %v306 = vunpack.c.l.b16 %v250
      %v307 = vunpack.c.l.b16 %v251
      %v308 = vunpack.c.l.b16 %v252
      %v309 = vunpack.c.l.b16 %v253
      %v310 = vunpack.c.l.b16 %v254
      %v311 = vunpack.c.l.b16 %v255
      %v312 = vunpack.c.l.b16 %v256
      %v313 = vunpack.c.l.b16 %v257
      %v314 = vunpack.c.l.b16 %v258
      %v315 = vunpack.c.l.b16 %v259
      %v316 = vunpack.c.l.b16 %v260
      %v317 = vunpack.c.l.b16 %v261
      %v318 = vunpack.c.l.b16 %v262
      %v319 = vpack.c.b16 %v304, %v303
      %v320 = vpack.c.b16 %v306, %v305
      %v321 = vpack.c.b16 %v308, %v307
      %v322 = vpack.c.b16 %v310, %v309
      %v323 = vpack.c.b16 %v312, %v311
      %v324 = vpack.c.b16 %v314, %v313
      %v325 = vpack.c.b16 %v316, %v315
      %v326 = vpack.c.b16 %v318, %v317
      %335 = vmatprep.subr.bf16.mxu0 0
      %336 = vmatpush1.bf16.msra.mxu0 %v319
      %337 = vmatprep.subr.bf16.mxu0 0
      %338 = vmatpush1.bf16.msra.mxu0 %v320
      %339 = vmatprep.subr.bf16.mxu0 0
      %340 = vmatpush1.bf16.msra.mxu0 %v321
      %341 = vmatprep.subr.bf16.mxu0 0
      %342 = vmatpush1.bf16.msra.mxu0 %v322
      %343 = vmatprep.subr.bf16.mxu0 0
      %344 = vmatpush1.bf16.msra.mxu0 %v323
      %345 = vmatprep.subr.bf16.mxu0 0
      %346 = vmatpush1.bf16.msra.mxu0 %v324
      %347 = vmatprep.subr.bf16.mxu0 0
      %348 = vmatpush1.bf16.msra.mxu0 %v325
      %349 = vmatprep.subr.bf16.mxu0 0
      %350 = vmatpush1.bf16.msra.mxu0 %v326
      %351 = vmatprep.subr.bf16.mxu0 0
      %352 = vmatpush1.bf16.msra.mxu0 0
      %353 = vmatprep.subr.bf16.mxu0 0
      %354 = vmatpush1.bf16.msra.mxu0 0
      %355 = vmatprep.subr.bf16.mxu0 0
      %356 = vmatpush1.bf16.msra.mxu0 0
      %357 = vmatprep.subr.bf16.mxu0 0
      %358 = vmatpush1.bf16.msra.mxu0 0
      %359 = vmatprep.subr.bf16.mxu0 0
      %360 = vmatpush1.bf16.msra.mxu0 0
      %361 = vmatprep.subr.bf16.mxu0 0
      %362 = vmatpush1.bf16.msra.mxu0 0
      %363 = vmatprep.subr.bf16.mxu0 0
      %364 = vmatpush1.bf16.msra.mxu0 0
      %365 = vmatprep.subr.bf16.mxu0 0
      %366 = vmatpush1.bf16.msra.mxu0 0
      %367 = vmatprep.mubr.bf16.mxu0 0
      %368 = vmatmul.mubr.bf16.gmra.mrb[0].mxu0 %v279
      %v369 = vpop.f32.mrb[0].mxu0
      %v370 = vadd.f32 0.0, %v369
      %v371 = vpop.f32.mrb[0].mxu0
      %v372 = vpop.f32.mrb[0].mxu0
      %v373 = vadd.f32 0.0, %v372
      %v374 = vpop.f32.mrb[0].mxu0
      %375 = vmatprep.mubr.bf16.mxu0 0
      %376 = vmatmul.mubr.bf16.gmra.mrb[0].mxu0 %v280
      %v377 = vpop.f32.mrb[0].mxu0
      %v378 = vadd.f32 0.0, %v377
      %v379 = vpop.f32.mrb[0].mxu0
      %v380 = vpop.f32.mrb[0].mxu0
      %v381 = vadd.f32 0.0, %v380
      %v382 = vpop.f32.mrb[0].mxu0
      %383 = vmatprep.mubr.bf16.mxu0 0
      %384 = vmatmul.mubr.bf16.gmra.mrb[0].mxu0 %v281
      %v385 = vpop.f32.mrb[0].mxu0
      %v386 = vadd.f32 0.0, %v385
      %v387 = vpop.f32.mrb[0].mxu0
      %v388 = vpop.f32.mrb[0].mxu0
      %v389 = vadd.f32 0.0, %v388
      %v390 = vpop.f32.mrb[0].mxu0
      %391 = vmatprep.mubr.bf16.mxu0 0
      %392 = vmatmul.mubr.bf16.gmra.mrb[0].mxu0 %v282
      %v393 = vpop.f32.mrb[0].mxu0
      %v394 = vadd.f32 0.0, %v393
      %v395 = vpop.f32.mrb[0].mxu0
      %v396 = vpop.f32.mrb[0].mxu0
      %v397 = vadd.f32 0.0, %v396
      %v398 = vpop.f32.mrb[0].mxu0
      %399 = vdwg.mxu0
      %400 = vst [vmem:[#allocation2] sm:$0xff] %v370
      %401 = vst [vmem:[#allocation2 + $0x8] sm:$0xff] %v373
      %402 = vst [vmem:[#allocation2 + $0x10] sm:$0xff] %v378
      %403 = vst [vmem:[#allocation2 + $0x18] sm:$0xff] %v381
      %404 = vst [vmem:[#allocation2 + $0x20] sm:$0xff] %v386
      %405 = vst [vmem:[#allocation2 + $0x28] sm:$0xff] %v389
      %406 = vst [vmem:[#allocation2 + $0x30] sm:$0xff] %v394
      %407 = vst [vmem:[#allocation2 + $0x38] sm:$0xff] %v397
      %vm408 = vsmask.f32 3328
      %vm409 = vsmask.f32 7440
      %vm410 = vmor %vm408, %vm409
      %v412 = vshrl.u32 %v227, 16
      %v414 = vrot.slane %v412, 4
      %v415 = vshll.u32 %v227, 16
      %v417 = vrot.slane %v415, 5
      %v418 = vor.u32 %v414, %v417
      %v419 = vrot.slane %v418, 4
      %v421 = vshll.u32 %v228, 16
      %v423 = vrot.slane %v421, 5
      %v424 = vsel %vm410, %v419, %v423
      %v426 = vshrl.u32 %v229, 16
      %v428 = vrot.slane %v426, 4
      %v429 = vshll.u32 %v229, 16
      %v431 = vrot.slane %v429, 5
      %v432 = vor.u32 %v428, %v431
      %v433 = vrot.slane %v432, 4
      %v435 = vshll.u32 %v230, 16
      %v437 = vrot.slane %v435, 5
      %v438 = vsel %vm410, %v433, %v437
      %v440 = vshrl.u32 %v231, 16
      %v442 = vrot.slane %v440, 4
      %v443 = vshll.u32 %v231, 16
      %v445 = vrot.slane %v443, 5
      %v446 = vor.u32 %v442, %v445
      %v447 = vrot.slane %v446, 4
      %v449 = vshll.u32 %v232, 16
      %v451 = vrot.slane %v449, 5
      %v452 = vsel %vm410, %v447, %v451
      %v454 = vshrl.u32 %v233, 16
      %v456 = vrot.slane %v454, 4
      %v457 = vshll.u32 %v233, 16
      %v459 = vrot.slane %v457, 5
      %v460 = vor.u32 %v456, %v459
      %v461 = vrot.slane %v460, 4
      %v463 = vshll.u32 %v234, 16
      %v465 = vrot.slane %v463, 5
      %v466 = vsel %vm410, %v461, %v465
      %v468 = vshrl.u32 %v235, 16
      %v470 = vrot.slane %v468, 4
      %v471 = vshll.u32 %v235, 16
      %v473 = vrot.slane %v471, 5
      %v474 = vor.u32 %v470, %v473
      %v475 = vrot.slane %v474, 4
      %v477 = vshll.u32 %v236, 16
      %v479 = vrot.slane %v477, 5
      %v480 = vsel %vm410, %v475, %v479
      %v482 = vshrl.u32 %v237, 16
      %v484 = vrot.slane %v482, 4
      %v485 = vshll.u32 %v237, 16
      %v487 = vrot.slane %v485, 5
      %v488 = vor.u32 %v484, %v487
      %v489 = vrot.slane %v488, 4
      %v491 = vshll.u32 %v238, 16
      %v493 = vrot.slane %v491, 5
      %v494 = vsel %vm410, %v489, %v493
      %v496 = vshrl.u32 %v239, 16
      %v498 = vrot.slane %v496, 4
      %v499 = vshll.u32 %v239, 16
      %v501 = vrot.slane %v499, 5
      %v502 = vor.u32 %v498, %v501
      %v503 = vrot.slane %v502, 4
      %v505 = vshll.u32 %v240, 16
      %v507 = vrot.slane %v505, 5
      %v508 = vsel %vm410, %v503, %v507
      %v510 = vshrl.u32 %v241, 16
      %v512 = vrot.slane %v510, 4
      %v513 = vshll.u32 %v241, 16
      %v515 = vrot.slane %v513, 5
      %v516 = vor.u32 %v512, %v515
      %v517 = vrot.slane %v516, 4
      %v519 = vshll.u32 %v242, 16
      %v521 = vrot.slane %v519, 5
      %v522 = vsel %vm410, %v517, %v521
      %s523 = scalar_lea.vmem %s1, 64
      %v524 = vld [vmem:[%s523] sm:$0xf]
      %v525 = vld [vmem:[%s523 + $0x4] sm:$0xf]
      %v526 = vld [vmem:[%s523 + $0x8] sm:$0xf]
      %v527 = vld [vmem:[%s523 + $0xc] sm:$0xf]
      %v528 = vld [vmem:[%s523 + $0x10] sm:$0xf]
      %v529 = vld [vmem:[%s523 + $0x14] sm:$0xf]
      %v530 = vld [vmem:[%s523 + $0x18] sm:$0xf]
      %v531 = vld [vmem:[%s523 + $0x1c] sm:$0xf]
      %v532 = vld [vmem:[%s523 + $0x20] sm:$0xf]
      %v533 = vld [vmem:[%s523 + $0x24] sm:$0xf]
      %v534 = vld [vmem:[%s523 + $0x28] sm:$0xf]
      %v535 = vld [vmem:[%s523 + $0x2c] sm:$0xf]
      %v536 = vld [vmem:[%s523 + $0x30] sm:$0xf]
      %v537 = vld [vmem:[%s523 + $0x34] sm:$0xf]
      %v538 = vld [vmem:[%s523 + $0x38] sm:$0xf]
      %v539 = vld [vmem:[%s523 + $0x3c] sm:$0xf]
      %v540 = vunpack.c.l.b16 %v424
      %v541 = vunpack.c.l.b16 %v438
      %v542 = vunpack.c.l.b16 %v452
      %v543 = vunpack.c.l.b16 %v466
      %v544 = vunpack.c.l.b16 %v480
      %v545 = vunpack.c.l.b16 %v494
      %v546 = vunpack.c.l.b16 %v508
      %v547 = vunpack.c.l.b16 %v522
      %v548 = vpack.c.b16 %v541, %v540
      %v549 = vpack.c.b16 %v543, %v542
      %v550 = vpack.c.b16 %v545, %v544
      %v551 = vpack.c.b16 %v547, %v546
      %v572 = vunpack.c.l.b16 %v524
      %v573 = vunpack.c.l.b16 %v525
      %v574 = vunpack.c.l.b16 %v526
      %v575 = vunpack.c.l.b16 %v527
      %v576 = vunpack.c.l.b16 %v528
      %v577 = vunpack.c.l.b16 %v529
      %v578 = vunpack.c.l.b16 %v530
      %v579 = vunpack.c.l.b16 %v531
      %v580 = vunpack.c.l.b16 %v532
      %v581 = vunpack.c.l.b16 %v533
      %v582 = vunpack.c.l.b16 %v534
      %v583 = vunpack.c.l.b16 %v535
      %v584 = vunpack.c.l.b16 %v536
      %v585 = vunpack.c.l.b16 %v537
      %v586 = vunpack.c.l.b16 %v538
      %v587 = vunpack.c.l.b16 %v539
      %v588 = vpack.c.b16 %v573, %v572
      %v589 = vpack.c.b16 %v575, %v574
      %v590 = vpack.c.b16 %v577, %v576
      %v591 = vpack.c.b16 %v579, %v578
      %v592 = vpack.c.b16 %v581, %v580
      %v593 = vpack.c.b16 %v583, %v582
      %v594 = vpack.c.b16 %v585, %v584
      %v595 = vpack.c.b16 %v587, %v586
      %604 = vmatprep.subr.bf16.mxu0 0
      %605 = vmatpush1.bf16.msra.mxu0 %v588
      %606 = vmatprep.subr.bf16.mxu0 0
      %607 = vmatpush1.bf16.msra.mxu0 %v589
      %608 = vmatprep.subr.bf16.mxu0 0
      %609 = vmatpush1.bf16.msra.mxu0 %v590
      %610 = vmatprep.subr.bf16.mxu0 0
      %611 = vmatpush1.bf16.msra.mxu0 %v591
      %612 = vmatprep.subr.bf16.mxu0 0
      %613 = vmatpush1.bf16.msra.mxu0 %v592
      %614 = vmatprep.subr.bf16.mxu0 0
      %615 = vmatpush1.bf16.msra.mxu0 %v593
      %616 = vmatprep.subr.bf16.mxu0 0
      %617 = vmatpush1.bf16.msra.mxu0 %v594
      %618 = vmatprep.subr.bf16.mxu0 0
      %619 = vmatpush1.bf16.msra.mxu0 %v595
      %620 = vmatprep.subr.bf16.mxu0 0
      %621 = vmatpush1.bf16.msra.mxu0 0
      %622 = vmatprep.subr.bf16.mxu0 0
      %623 = vmatpush1.bf16.msra.mxu0 0
      %624 = vmatprep.subr.bf16.mxu0 0
      %625 = vmatpush1.bf16.msra.mxu0 0
      %626 = vmatprep.subr.bf16.mxu0 0
      %627 = vmatpush1.bf16.msra.mxu0 0
      %628 = vmatprep.subr.bf16.mxu0 0
      %629 = vmatpush1.bf16.msra.mxu0 0
      %630 = vmatprep.subr.bf16.mxu0 0
      %631 = vmatpush1.bf16.msra.mxu0 0
      %632 = vmatprep.subr.bf16.mxu0 0
      %633 = vmatpush1.bf16.msra.mxu0 0
      %634 = vmatprep.subr.bf16.mxu0 0
      %635 = vmatpush1.bf16.msra.mxu0 0
      %636 = vmatprep.mubr.bf16.mxu0 0
      %637 = vmatmul.mubr.bf16.gmra.mrb[0].mxu0 %v548
      %v638 = vpop.f32.mrb[0].mxu0
      %v639 = vadd.f32 0.0, %v638
      %v640 = vpop.f32.mrb[0].mxu0
      %v641 = vpop.f32.mrb[0].mxu0
      %v642 = vadd.f32 0.0, %v641
      %v643 = vpop.f32.mrb[0].mxu0
      %644 = vmatprep.mubr.bf16.mxu0 0
      %645 = vmatmul.mubr.bf16.gmra.mrb[0].mxu0 %v549
      %v646 = vpop.f32.mrb[0].mxu0
      %v647 = vadd.f32 0.0, %v646
      %v648 = vpop.f32.mrb[0].mxu0
      %v649 = vpop.f32.mrb[0].mxu0
      %v650 = vadd.f32 0.0, %v649
      %v651 = vpop.f32.mrb[0].mxu0
      %652 = vmatprep.mubr.bf16.mxu0 0
      %653 = vmatmul.mubr.bf16.gmra.mrb[0].mxu0 %v550
      %v654 = vpop.f32.mrb[0].mxu0
      %v655 = vadd.f32 0.0, %v654
      %v656 = vpop.f32.mrb[0].mxu0
      %v657 = vpop.f32.mrb[0].mxu0
      %v658 = vadd.f32 0.0, %v657
      %v659 = vpop.f32.mrb[0].mxu0
      %660 = vmatprep.mubr.bf16.mxu0 0
      %661 = vmatmul.mubr.bf16.gmra.mrb[0].mxu0 %v551
      %v662 = vpop.f32.mrb[0].mxu0
      %v663 = vadd.f32 0.0, %v662
      %v664 = vpop.f32.mrb[0].mxu0
      %v665 = vpop.f32.mrb[0].mxu0
      %v666 = vadd.f32 0.0, %v665
      %v667 = vpop.f32.mrb[0].mxu0
      %668 = vdwg.mxu0
      %v669 = vld [vmem:[#allocation2] sm:$0xff]
      %v670 = vld [vmem:[#allocation2 + $0x8] sm:$0xff]
      %v671 = vld [vmem:[#allocation2 + $0x10] sm:$0xff]
      %v672 = vld [vmem:[#allocation2 + $0x18] sm:$0xff]
      %v673 = vld [vmem:[#allocation2 + $0x20] sm:$0xff]
      %v674 = vld [vmem:[#allocation2 + $0x28] sm:$0xff]
      %v675 = vld [vmem:[#allocation2 + $0x30] sm:$0xff]
      %v676 = vld [vmem:[#allocation2 + $0x38] sm:$0xff]
      %v677 = vadd.f32 %v669, %v639
      %v678 = vadd.f32 %v670, %v642
      %v679 = vadd.f32 %v671, %v647
      %v680 = vadd.f32 %v672, %v650
      %v681 = vadd.f32 %v673, %v655
      %v682 = vadd.f32 %v674, %v658
      %v683 = vadd.f32 %v675, %v663
      %v684 = vadd.f32 %v676, %v666
      %685 = vst [vmem:[#allocation2] sm:$0xff] %v677
      %686 = vst [vmem:[#allocation2 + $0x8] sm:$0xff] %v678
      %687 = vst [vmem:[#allocation2 + $0x10] sm:$0xff] %v679
      %688 = vst [vmem:[#allocation2 + $0x18] sm:$0xff] %v680
      %689 = vst [vmem:[#allocation2 + $0x20] sm:$0xff] %v681
      %690 = vst [vmem:[#allocation2 + $0x28] sm:$0xff] %v682
      %691 = vst [vmem:[#allocation2 + $0x30] sm:$0xff] %v683
      %692 = vst [vmem:[#allocation2 + $0x38] sm:$0xff] %v684
      %vm701 = vcmask 1042432
      %vm702 = vcmask 1046532
      %vm703 = vmor %vm701, %vm702
      %v704 = vrot.slane %v227, 5
      %v705 = vrot.slane %v704, 4
      %v706 = vrot.slane %v228, 5
      %v707 = vsel %vm703, %v705, %v706
      %v708 = vrot.slane %v229, 5
      %v709 = vrot.slane %v708, 4
      %v710 = vrot.slane %v230, 5
      %v711 = vsel %vm703, %v709, %v710
      %v712 = vrot.slane %v231, 5
      %v713 = vrot.slane %v712, 4
      %v714 = vrot.slane %v232, 5
      %v715 = vsel %vm703, %v713, %v714
      %v716 = vrot.slane %v233, 5
      %v717 = vrot.slane %v716, 4
      %v718 = vrot.slane %v234, 5
      %v719 = vsel %vm703, %v717, %v718
      %v720 = vrot.slane %v235, 5
      %v721 = vrot.slane %v720, 4
      %v722 = vrot.slane %v236, 5
      %v723 = vsel %vm703, %v721, %v722
      %v724 = vrot.slane %v237, 5
      %v725 = vrot.slane %v724, 4
      %v726 = vrot.slane %v238, 5
      %v727 = vsel %vm703, %v725, %v726
      %v728 = vrot.slane %v239, 5
      %v729 = vrot.slane %v728, 4
      %v730 = vrot.slane %v240, 5
      %v731 = vsel %vm703, %v729, %v730
      %v732 = vrot.slane %v241, 5
      %v733 = vrot.slane %v732, 4
      %v734 = vrot.slane %v242, 5
      %v735 = vsel %vm703, %v733, %v734
      %s736 = scalar_lea.vmem %s1, 128
      %v737 = vld [vmem:[%s736] sm:$0xf]
      %v738 = vld [vmem:[%s736 + $0x4] sm:$0xf]
      %v739 = vld [vmem:[%s736 + $0x8] sm:$0xf]
      %v740 = vld [vmem:[%s736 + $0xc] sm:$0xf]
      %v741 = vld [vmem:[%s736 + $0x10] sm:$0xf]
      %v742 = vld [vmem:[%s736 + $0x14] sm:$0xf]
      %v743 = vld [vmem:[%s736 + $0x18] sm:$0xf]
      %v744 = vld [vmem:[%s736 + $0x1c] sm:$0xf]
      %v745 = vld [vmem:[%s736 + $0x20] sm:$0xf]
      %v746 = vld [vmem:[%s736 + $0x24] sm:$0xf]
      %v747 = vld [vmem:[%s736 + $0x28] sm:$0xf]
      %v748 = vld [vmem:[%s736 + $0x2c] sm:$0xf]
      %v749 = vld [vmem:[%s736 + $0x30] sm:$0xf]
      %v750 = vld [vmem:[%s736 + $0x34] sm:$0xf]
      %v751 = vld [vmem:[%s736 + $0x38] sm:$0xf]
      %v752 = vld [vmem:[%s736 + $0x3c] sm:$0xf]
      %v753 = vunpack.c.l.b16 %v707
      %v754 = vunpack.c.l.b16 %v711
      %v755 = vunpack.c.l.b16 %v715
      %v756 = vunpack.c.l.b16 %v719
      %v757 = vunpack.c.l.b16 %v723
      %v758 = vunpack.c.l.b16 %v727
      %v759 = vunpack.c.l.b16 %v731
      %v760 = vunpack.c.l.b16 %v735
      %v761 = vpack.c.b16 %v754, %v753
      %v762 = vpack.c.b16 %v756, %v755
      %v763 = vpack.c.b16 %v758, %v757
      %v764 = vpack.c.b16 %v760, %v759
      %v785 = vunpack.c.l.b16 %v737
      %v786 = vunpack.c.l.b16 %v738
      %v787 = vunpack.c.l.b16 %v739
      %v788 = vunpack.c.l.b16 %v740
      %v789 = vunpack.c.l.b16 %v741
      %v790 = vunpack.c.l.b16 %v742
      %v791 = vunpack.c.l.b16 %v743
      %v792 = vunpack.c.l.b16 %v744
      %v793 = vunpack.c.l.b16 %v745
      %v794 = vunpack.c.l.b16 %v746
      %v795 = vunpack.c.l.b16 %v747
      %v796 = vunpack.c.l.b16 %v748
      %v797 = vunpack.c.l.b16 %v749
      %v798 = vunpack.c.l.b16 %v750
      %v799 = vunpack.c.l.b16 %v751
      %v800 = vunpack.c.l.b16 %v752
      %v801 = vpack.c.b16 %v786, %v785
      %v802 = vpack.c.b16 %v788, %v787
      %v803 = vpack.c.b16 %v790, %v789
      %v804 = vpack.c.b16 %v792, %v791
      %v805 = vpack.c.b16 %v794, %v793
      %v806 = vpack.c.b16 %v796, %v795
      %v807 = vpack.c.b16 %v798, %v797
      %v808 = vpack.c.b16 %v800, %v799
      %817 = vmatprep.subr.bf16.mxu0 0
      %818 = vmatpush1.bf16.msra.mxu0 %v801
      %819 = vmatprep.subr.bf16.mxu0 0
      %820 = vmatpush1.bf16.msra.mxu0 %v802
      %821 = vmatprep.subr.bf16.mxu0 0
      %822 = vmatpush1.bf16.msra.mxu0 %v803
      %823 = vmatprep.subr.bf16.mxu0 0
      %824 = vmatpush1.bf16.msra.mxu0 %v804
      %825 = vmatprep.subr.bf16.mxu0 0
      %826 = vmatpush1.bf16.msra.mxu0 %v805
      %827 = vmatprep.subr.bf16.mxu0 0
      %828 = vmatpush1.bf16.msra.mxu0 %v806
      %829 = vmatprep.subr.bf16.mxu0 0
      %830 = vmatpush1.bf16.msra.mxu0 %v807
      %831 = vmatprep.subr.bf16.mxu0 0
      %832 = vmatpush1.bf16.msra.mxu0 %v808
      %833 = vmatprep.subr.bf16.mxu0 0
      %834 = vmatpush1.bf16.msra.mxu0 0
      %835 = vmatprep.subr.bf16.mxu0 0
      %836 = vmatpush1.bf16.msra.mxu0 0
      %837 = vmatprep.subr.bf16.mxu0 0
      %838 = vmatpush1.bf16.msra.mxu0 0
      %839 = vmatprep.subr.bf16.mxu0 0
      %840 = vmatpush1.bf16.msra.mxu0 0
      %841 = vmatprep.subr.bf16.mxu0 0
      %842 = vmatpush1.bf16.msra.mxu0 0
      %843 = vmatprep.subr.bf16.mxu0 0
      %844 = vmatpush1.bf16.msra.mxu0 0
      %845 = vmatprep.subr.bf16.mxu0 0
      %846 = vmatpush1.bf16.msra.mxu0 0
      %847 = vmatprep.subr.bf16.mxu0 0
      %848 = vmatpush1.bf16.msra.mxu0 0
      %849 = vmatprep.mubr.bf16.mxu0 0
      %850 = vmatmul.mubr.bf16.gmra.mrb[0].mxu0 %v761
      %v851 = vpop.f32.mrb[0].mxu0
      %v852 = vadd.f32 0.0, %v851
      %v853 = vpop.f32.mrb[0].mxu0
      %v854 = vpop.f32.mrb[0].mxu0
      %v855 = vadd.f32 0.0, %v854
      %v856 = vpop.f32.mrb[0].mxu0
      %857 = vmatprep.mubr.bf16.mxu0 0
      %858 = vmatmul.mubr.bf16.gmra.mrb[0].mxu0 %v762
      %v859 = vpop.f32.mrb[0].mxu0
      %v860 = vadd.f32 0.0, %v859
      %v861 = vpop.f32.mrb[0].mxu0
      %v862 = vpop.f32.mrb[0].mxu0
      %v863 = vadd.f32 0.0, %v862
      %v864 = vpop.f32.mrb[0].mxu0
      %865 = vmatprep.mubr.bf16.mxu0 0
      %866 = vmatmul.mubr.bf16.gmra.mrb[0].mxu0 %v763
      %v867 = vpop.f32.mrb[0].mxu0
      %v868 = vadd.f32 0.0, %v867
      %v869 = vpop.f32.mrb[0].mxu0
      %v870 = vpop.f32.mrb[0].mxu0
      %v871 = vadd.f32 0.0, %v870
      %v872 = vpop.f32.mrb[0].mxu0
      %873 = vmatprep.mubr.bf16.mxu0 0
      %874 = vmatmul.mubr.bf16.gmra.mrb[0].mxu0 %v764
      %v875 = vpop.f32.mrb[0].mxu0
      %v876 = vadd.f32 0.0, %v875
      %v877 = vpop.f32.mrb[0].mxu0
      %v878 = vpop.f32.mrb[0].mxu0
      %v879 = vadd.f32 0.0, %v878
      %v880 = vpop.f32.mrb[0].mxu0
      %881 = vdwg.mxu0
      %v882 = vld [vmem:[#allocation2] sm:$0xff]
      %v883 = vld [vmem:[#allocation2 + $0x8] sm:$0xff]
      %v884 = vld [vmem:[#allocation2 + $0x10] sm:$0xff]
      %v885 = vld [vmem:[#allocation2 + $0x18] sm:$0xff]
      %v886 = vld [vmem:[#allocation2 + $0x20] sm:$0xff]
      %v887 = vld [vmem:[#allocation2 + $0x28] sm:$0xff]
      %v888 = vld [vmem:[#allocation2 + $0x30] sm:$0xff]
      %v889 = vld [vmem:[#allocation2 + $0x38] sm:$0xff]
      %v890 = vadd.f32 %v882, %v852
      %v891 = vadd.f32 %v883, %v855
      %v892 = vadd.f32 %v884, %v860
      %v893 = vadd.f32 %v885, %v863
      %v894 = vadd.f32 %v886, %v868
      %v895 = vadd.f32 %v887, %v871
      %v896 = vadd.f32 %v888, %v876
      %v897 = vadd.f32 %v889, %v879
      %898 = vst [vmem:[#allocation2] sm:$0xff] %v890
      %899 = vst [vmem:[#allocation2 + $0x8] sm:$0xff] %v891
      %900 = vst [vmem:[#allocation2 + $0x10] sm:$0xff] %v892
      %901 = vst [vmem:[#allocation2 + $0x18] sm:$0xff] %v893
      %902 = vst [vmem:[#allocation2 + $0x20] sm:$0xff] %v894
      %903 = vst [vmem:[#allocation2 + $0x28] sm:$0xff] %v895
      %904 = vst [vmem:[#allocation2 + $0x30] sm:$0xff] %v896
      %905 = vst [vmem:[#allocation2 + $0x38] sm:$0xff] %v897
      %s906 = scalar_lea.vmem %s1, 192
      %v907 = vld [vmem:[%s906] sm:$0xf]
      %v908 = vld [vmem:[%s906 + $0x4] sm:$0xf]
      %v909 = vld [vmem:[%s906 + $0x8] sm:$0xf]
      %v910 = vld [vmem:[%s906 + $0xc] sm:$0xf]
      %v911 = vld [vmem:[%s906 + $0x10] sm:$0xf]
      %v912 = vld [vmem:[%s906 + $0x14] sm:$0xf]
      %v913 = vld [vmem:[%s906 + $0x18] sm:$0xf]
      %v914 = vld [vmem:[%s906 + $0x1c] sm:$0xf]
      %v915 = vld [vmem:[%s906 + $0x20] sm:$0xf]
      %v916 = vld [vmem:[%s906 + $0x24] sm:$0xf]
      %v917 = vld [vmem:[%s906 + $0x28] sm:$0xf]
      %v918 = vld [vmem:[%s906 + $0x2c] sm:$0xf]
      %v919 = vld [vmem:[%s906 + $0x30] sm:$0xf]
      %v920 = vld [vmem:[%s906 + $0x34] sm:$0xf]
      %v921 = vld [vmem:[%s906 + $0x38] sm:$0xf]
      %v922 = vld [vmem:[%s906 + $0x3c] sm:$0xf]
      %v924 = vunpack.c.l.b16 %v243
      %v925 = vpack.c.b16 %v273, %v272
      %v926 = vpack.c.b16 %v275, %v274
      %v927 = vpack.c.b16 %v277, %v276
      %v928 = vpack.c.b16 %v924, %v278
      %v949 = vunpack.c.l.b16 %v907
      %v950 = vunpack.c.l.b16 %v908
      %v951 = vunpack.c.l.b16 %v909
      %v952 = vunpack.c.l.b16 %v910
      %v953 = vunpack.c.l.b16 %v911
      %v954 = vunpack.c.l.b16 %v912
      %v955 = vunpack.c.l.b16 %v913
      %v956 = vunpack.c.l.b16 %v914
      %v957 = vunpack.c.l.b16 %v915
      %v958 = vunpack.c.l.b16 %v916
      %v959 = vunpack.c.l.b16 %v917
      %v960 = vunpack.c.l.b16 %v918
      %v961 = vunpack.c.l.b16 %v919
      %v962 = vunpack.c.l.b16 %v920
      %v963 = vunpack.c.l.b16 %v921
      %v964 = vunpack.c.l.b16 %v922
      %v965 = vpack.c.b16 %v950, %v949
      %v966 = vpack.c.b16 %v952, %v951
      %v967 = vpack.c.b16 %v954, %v953
      %v968 = vpack.c.b16 %v956, %v955
      %v969 = vpack.c.b16 %v958, %v957
      %v970 = vpack.c.b16 %v960, %v959
      %v971 = vpack.c.b16 %v962, %v961
      %v972 = vpack.c.b16 %v964, %v963
      %981 = vmatprep.subr.bf16.mxu0 0
      %982 = vmatpush1.bf16.msra.mxu0 %v965
      %983 = vmatprep.subr.bf16.mxu0 0
      %984 = vmatpush1.bf16.msra.mxu0 %v966
      %985 = vmatprep.subr.bf16.mxu0 0
      %986 = vmatpush1.bf16.msra.mxu0 %v967
      %987 = vmatprep.subr.bf16.mxu0 0
      %988 = vmatpush1.bf16.msra.mxu0 %v968
      %989 = vmatprep.subr.bf16.mxu0 0
      %990 = vmatpush1.bf16.msra.mxu0 %v969
      %991 = vmatprep.subr.bf16.mxu0 0
      %992 = vmatpush1.bf16.msra.mxu0 %v970
      %993 = vmatprep.subr.bf16.mxu0 0
      %994 = vmatpush1.bf16.msra.mxu0 %v971
      %995 = vmatprep.subr.bf16.mxu0 0
      %996 = vmatpush1.bf16.msra.mxu0 %v972
      %997 = vmatprep.subr.bf16.mxu0 0
      %998 = vmatpush1.bf16.msra.mxu0 0
      %999 = vmatprep.subr.bf16.mxu0 0
      %1000 = vmatpush1.bf16.msra.mxu0 0
      %1001 = vmatprep.subr.bf16.mxu0 0
      %1002 = vmatpush1.bf16.msra.mxu0 0
      %1003 = vmatprep.subr.bf16.mxu0 0
      %1004 = vmatpush1.bf16.msra.mxu0 0
      %1005 = vmatprep.subr.bf16.mxu0 0
      %1006 = vmatpush1.bf16.msra.mxu0 0
      %1007 = vmatprep.subr.bf16.mxu0 0
      %1008 = vmatpush1.bf16.msra.mxu0 0
      %1009 = vmatprep.subr.bf16.mxu0 0
      %1010 = vmatpush1.bf16.msra.mxu0 0
      %1011 = vmatprep.subr.bf16.mxu0 0
      %1012 = vmatpush1.bf16.msra.mxu0 0
      %1013 = vmatprep.mubr.bf16.mxu0 0
      %1014 = vmatmul.mubr.bf16.gmra.mrb[0].mxu0 %v925
      %v1015 = vpop.f32.mrb[0].mxu0
      %v1016 = vadd.f32 0.0, %v1015
      %v1017 = vpop.f32.mrb[0].mxu0
      %v1018 = vpop.f32.mrb[0].mxu0
      %v1019 = vadd.f32 0.0, %v1018
      %v1020 = vpop.f32.mrb[0].mxu0
      %1021 = vmatprep.mubr.bf16.mxu0 0
      %1022 = vmatmul.mubr.bf16.gmra.mrb[0].mxu0 %v926
      %v1023 = vpop.f32.mrb[0].mxu0
      %v1024 = vadd.f32 0.0, %v1023
      %v1025 = vpop.f32.mrb[0].mxu0
      %v1026 = vpop.f32.mrb[0].mxu0
      %v1027 = vadd.f32 0.0, %v1026
      %v1028 = vpop.f32.mrb[0].mxu0
      %1029 = vmatprep.mubr.bf16.mxu0 0
      %1030 = vmatmul.mubr.bf16.gmra.mrb[0].mxu0 %v927
      %v1031 = vpop.f32.mrb[0].mxu0
      %v1032 = vadd.f32 0.0, %v1031
      %v1033 = vpop.f32.mrb[0].mxu0
      %v1034 = vpop.f32.mrb[0].mxu0
      %v1035 = vadd.f32 0.0, %v1034
      %v1036 = vpop.f32.mrb[0].mxu0
      %1037 = vmatprep.mubr.bf16.mxu0 0
      %1038 = vmatmul.mubr.bf16.gmra.mrb[0].mxu0 %v928
      %v1039 = vpop.f32.mrb[0].mxu0
      %v1040 = vadd.f32 0.0, %v1039
      %v1041 = vpop.f32.mrb[0].mxu0
      %v1042 = vpop.f32.mrb[0].mxu0
      %v1043 = vadd.f32 0.0, %v1042
      %v1044 = vpop.f32.mrb[0].mxu0
      %1045 = vdwg.mxu0
      %v1046 = vld [vmem:[#allocation2] sm:$0xff]
      %v1047 = vld [vmem:[#allocation2 + $0x8] sm:$0xff]
      %v1048 = vld [vmem:[#allocation2 + $0x10] sm:$0xff]
      %v1049 = vld [vmem:[#allocation2 + $0x18] sm:$0xff]
      %v1050 = vld [vmem:[#allocation2 + $0x20] sm:$0xff]
      %v1051 = vld [vmem:[#allocation2 + $0x28] sm:$0xff]
      %v1052 = vld [vmem:[#allocation2 + $0x30] sm:$0xff]
      %v1053 = vld [vmem:[#allocation2 + $0x38] sm:$0xff]
      %v1054 = vadd.f32 %v1046, %v1016
      %v1055 = vadd.f32 %v1047, %v1019
      %v1056 = vadd.f32 %v1048, %v1024
      %v1057 = vadd.f32 %v1049, %v1027
      %v1058 = vadd.f32 %v1050, %v1032
      %v1059 = vadd.f32 %v1051, %v1035
      %v1060 = vadd.f32 %v1052, %v1040
      %v1061 = vadd.f32 %v1053, %v1043
      %1062 = vst [vmem:[#allocation2] sm:$0xff] %v1054
      %1063 = vst [vmem:[#allocation2 + $0x8] sm:$0xff] %v1055
      %1064 = vst [vmem:[#allocation2 + $0x10] sm:$0xff] %v1056
      %1065 = vst [vmem:[#allocation2 + $0x18] sm:$0xff] %v1057
      %1066 = vst [vmem:[#allocation2 + $0x20] sm:$0xff] %v1058
      %1067 = vst [vmem:[#allocation2 + $0x28] sm:$0xff] %v1059
      %1068 = vst [vmem:[#allocation2 + $0x30] sm:$0xff] %v1060
      %1069 = vst [vmem:[#allocation2 + $0x38] sm:$0xff] %v1061
      %v1071 = vshrl.u32 %v243, 16
      %v1073 = vrot.slane %v1071, 4
      %v1074 = vshll.u32 %v243, 16
      %v1076 = vrot.slane %v1074, 5
      %v1077 = vor.u32 %v1073, %v1076
      %v1078 = vrot.slane %v1077, 4
      %v1080 = vshll.u32 %v244, 16
      %v1082 = vrot.slane %v1080, 5
      %v1083 = vsel %vm410, %v1078, %v1082
      %s1084 = scalar_lea.vmem %s1, 256
      %v1085 = vld [vmem:[%s1084] sm:$0xf]
      %v1086 = vld [vmem:[%s1084 + $0x4] sm:$0xf]
      %v1087 = vld [vmem:[%s1084 + $0x8] sm:$0xf]
      %v1088 = vld [vmem:[%s1084 + $0xc] sm:$0xf]
      %v1089 = vld [vmem:[%s1084 + $0x10] sm:$0xf]
      %v1090 = vld [vmem:[%s1084 + $0x14] sm:$0xf]
      %v1091 = vld [vmem:[%s1084 + $0x18] sm:$0xf]
      %v1092 = vld [vmem:[%s1084 + $0x1c] sm:$0xf]
      %v1093 = vld [vmem:[%s1084 + $0x20] sm:$0xf]
      %v1094 = vld [vmem:[%s1084 + $0x24] sm:$0xf]
      %v1095 = vld [vmem:[%s1084 + $0x28] sm:$0xf]
      %v1096 = vld [vmem:[%s1084 + $0x2c] sm:$0xf]
      %v1097 = vld [vmem:[%s1084 + $0x30] sm:$0xf]
      %v1098 = vld [vmem:[%s1084 + $0x34] sm:$0xf]
      %v1099 = vld [vmem:[%s1084 + $0x38] sm:$0xf]
      %v1100 = vld [vmem:[%s1084 + $0x3c] sm:$0xf]
      %v1101 = vunpack.c.l.b16 %v1083
      %v1102 = vpack.c.b16 %v542, %v541
      %v1103 = vpack.c.b16 %v544, %v543
      %v1104 = vpack.c.b16 %v546, %v545
      %v1105 = vpack.c.b16 %v1101, %v547
      %v1126 = vunpack.c.l.b16 %v1085
      %v1127 = vunpack.c.l.b16 %v1086
      %v1128 = vunpack.c.l.b16 %v1087
      %v1129 = vunpack.c.l.b16 %v1088
      %v1130 = vunpack.c.l.b16 %v1089
      %v1131 = vunpack.c.l.b16 %v1090
      %v1132 = vunpack.c.l.b16 %v1091
      %v1133 = vunpack.c.l.b16 %v1092
      %v1134 = vunpack.c.l.b16 %v1093
      %v1135 = vunpack.c.l.b16 %v1094
      %v1136 = vunpack.c.l.b16 %v1095
      %v1137 = vunpack.c.l.b16 %v1096
      %v1138 = vunpack.c.l.b16 %v1097
      %v1139 = vunpack.c.l.b16 %v1098
      %v1140 = vunpack.c.l.b16 %v1099
      %v1141 = vunpack.c.l.b16 %v1100
      %v1142 = vpack.c.b16 %v1127, %v1126
      %v1143 = vpack.c.b16 %v1129, %v1128
      %v1144 = vpack.c.b16 %v1131, %v1130
      %v1145 = vpack.c.b16 %v1133, %v1132
      %v1146 = vpack.c.b16 %v1135, %v1134
      %v1147 = vpack.c.b16 %v1137, %v1136
      %v1148 = vpack.c.b16 %v1139, %v1138
      %v1149 = vpack.c.b16 %v1141, %v1140
      %1158 = vmatprep.subr.bf16.mxu0 0
      %1159 = vmatpush1.bf16.msra.mxu0 %v1142
      %1160 = vmatprep.subr.bf16.mxu0 0
      %1161 = vmatpush1.bf16.msra.mxu0 %v1143
      %1162 = vmatprep.subr.bf16.mxu0 0
      %1163 = vmatpush1.bf16.msra.mxu0 %v1144
      %1164 = vmatprep.subr.bf16.mxu0 0
      %1165 = vmatpush1.bf16.msra.mxu0 %v1145
      %1166 = vmatprep.subr.bf16.mxu0 0
      %1167 = vmatpush1.bf16.msra.mxu0 %v1146
      %1168 = vmatprep.subr.bf16.mxu0 0
      %1169 = vmatpush1.bf16.msra.mxu0 %v1147
      %1170 = vmatprep.subr.bf16.mxu0 0
      %1171 = vmatpush1.bf16.msra.mxu0 %v1148
      %1172 = vmatprep.subr.bf16.mxu0 0
      %1173 = vmatpush1.bf16.msra.mxu0 %v1149
      %1174 = vmatprep.subr.bf16.mxu0 0
      %1175 = vmatpush1.bf16.msra.mxu0 0
      %1176 = vmatprep.subr.bf16.mxu0 0
      %1177 = vmatpush1.bf16.msra.mxu0 0
      %1178 = vmatprep.subr.bf16.mxu0 0
      %1179 = vmatpush1.bf16.msra.mxu0 0
      %1180 = vmatprep.subr.bf16.mxu0 0
      %1181 = vmatpush1.bf16.msra.mxu0 0
      %1182 = vmatprep.subr.bf16.mxu0 0
      %1183 = vmatpush1.bf16.msra.mxu0 0
      %1184 = vmatprep.subr.bf16.mxu0 0
      %1185 = vmatpush1.bf16.msra.mxu0 0
      %1186 = vmatprep.subr.bf16.mxu0 0
      %1187 = vmatpush1.bf16.msra.mxu0 0
      %1188 = vmatprep.subr.bf16.mxu0 0
      %1189 = vmatpush1.bf16.msra.mxu0 0
      %1190 = vmatprep.mubr.bf16.mxu0 0
      %1191 = vmatmul.mubr.bf16.gmra.mrb[0].mxu0 %v1102
      %v1192 = vpop.f32.mrb[0].mxu0
      %v1193 = vadd.f32 0.0, %v1192
      %v1194 = vpop.f32.mrb[0].mxu0
      %v1195 = vpop.f32.mrb[0].mxu0
      %v1196 = vadd.f32 0.0, %v1195
      %v1197 = vpop.f32.mrb[0].mxu0
      %1198 = vmatprep.mubr.bf16.mxu0 0
      %1199 = vmatmul.mubr.bf16.gmra.mrb[0].mxu0 %v1103
      %v1200 = vpop.f32.mrb[0].mxu0
      %v1201 = vadd.f32 0.0, %v1200
      %v1202 = vpop.f32.mrb[0].mxu0
      %v1203 = vpop.f32.mrb[0].mxu0
      %v1204 = vadd.f32 0.0, %v1203
      %v1205 = vpop.f32.mrb[0].mxu0
      %1206 = vmatprep.mubr.bf16.mxu0 0
      %1207 = vmatmul.mubr.bf16.gmra.mrb[0].mxu0 %v1104
      %v1208 = vpop.f32.mrb[0].mxu0
      %v1209 = vadd.f32 0.0, %v1208
      %v1210 = vpop.f32.mrb[0].mxu0
      %v1211 = vpop.f32.mrb[0].mxu0
      %v1212 = vadd.f32 0.0, %v1211
      %v1213 = vpop.f32.mrb[0].mxu0
      %1214 = vmatprep.mubr.bf16.mxu0 0
      %1215 = vmatmul.mubr.bf16.gmra.mrb[0].mxu0 %v1105
      %v1216 = vpop.f32.mrb[0].mxu0
      %v1217 = vadd.f32 0.0, %v1216
      %v1218 = vpop.f32.mrb[0].mxu0
      %v1219 = vpop.f32.mrb[0].mxu0
      %v1220 = vadd.f32 0.0, %v1219
      %v1221 = vpop.f32.mrb[0].mxu0
      %1222 = vdwg.mxu0
      %v1223 = vld [vmem:[#allocation2] sm:$0xff]
      %v1224 = vld [vmem:[#allocation2 + $0x8] sm:$0xff]
      %v1225 = vld [vmem:[#allocation2 + $0x10] sm:$0xff]
      %v1226 = vld [vmem:[#allocation2 + $0x18] sm:$0xff]
      %v1227 = vld [vmem:[#allocation2 + $0x20] sm:$0xff]
      %v1228 = vld [vmem:[#allocation2 + $0x28] sm:$0xff]
      %v1229 = vld [vmem:[#allocation2 + $0x30] sm:$0xff]
      %v1230 = vld [vmem:[#allocation2 + $0x38] sm:$0xff]
      %v1231 = vadd.f32 %v1223, %v1193
      %v1232 = vadd.f32 %v1224, %v1196
      %v1233 = vadd.f32 %v1225, %v1201
      %v1234 = vadd.f32 %v1226, %v1204
      %v1235 = vadd.f32 %v1227, %v1209
      %v1236 = vadd.f32 %v1228, %v1212
      %v1237 = vadd.f32 %v1229, %v1217
      %v1238 = vadd.f32 %v1230, %v1220
      %1239 = vst [vmem:[#allocation2] sm:$0xff] %v1231
      %1240 = vst [vmem:[#allocation2 + $0x8] sm:$0xff] %v1232
      %1241 = vst [vmem:[#allocation2 + $0x10] sm:$0xff] %v1233
      %1242 = vst [vmem:[#allocation2 + $0x18] sm:$0xff] %v1234
      %1243 = vst [vmem:[#allocation2 + $0x20] sm:$0xff] %v1235
      %1244 = vst [vmem:[#allocation2 + $0x28] sm:$0xff] %v1236
      %1245 = vst [vmem:[#allocation2 + $0x30] sm:$0xff] %v1237
      %1246 = vst [vmem:[#allocation2 + $0x38] sm:$0xff] %v1238
      %v1248 = vrot.slane %v243, 5
      %v1249 = vrot.slane %v1248, 4
      %v1250 = vrot.slane %v244, 5
      %v1251 = vsel %vm703, %v1249, %v1250
      %s1252 = scalar_lea.vmem %s1, 320
      %v1253 = vld [vmem:[%s1252] sm:$0xf]
      %v1254 = vld [vmem:[%s1252 + $0x4] sm:$0xf]
      %v1255 = vld [vmem:[%s1252 + $0x8] sm:$0xf]
      %v1256 = vld [vmem:[%s1252 + $0xc] sm:$0xf]
      %v1257 = vld [vmem:[%s1252 + $0x10] sm:$0xf]
      %v1258 = vld [vmem:[%s1252 + $0x14] sm:$0xf]
      %v1259 = vld [vmem:[%s1252 + $0x18] sm:$0xf]
      %v1260 = vld [vmem:[%s1252 + $0x1c] sm:$0xf]
      %v1261 = vld [vmem:[%s1252 + $0x20] sm:$0xf]
      %v1262 = vld [vmem:[%s1252 + $0x24] sm:$0xf]
      %v1263 = vld [vmem:[%s1252 + $0x28] sm:$0xf]
      %v1264 = vld [vmem:[%s1252 + $0x2c] sm:$0xf]
      %v1265 = vld [vmem:[%s1252 + $0x30] sm:$0xf]
      %v1266 = vld [vmem:[%s1252 + $0x34] sm:$0xf]
      %v1267 = vld [vmem:[%s1252 + $0x38] sm:$0xf]
      %v1268 = vld [vmem:[%s1252 + $0x3c] sm:$0xf]
      %v1269 = vunpack.c.l.b16 %v1251
      %v1270 = vpack.c.b16 %v755, %v754
      %v1271 = vpack.c.b16 %v757, %v756
      %v1272 = vpack.c.b16 %v759, %v758
      %v1273 = vpack.c.b16 %v1269, %v760
      %v1294 = vunpack.c.l.b16 %v1253
      %v1295 = vunpack.c.l.b16 %v1254
      %v1296 = vunpack.c.l.b16 %v1255
      %v1297 = vunpack.c.l.b16 %v1256
      %v1298 = vunpack.c.l.b16 %v1257
      %v1299 = vunpack.c.l.b16 %v1258
      %v1300 = vunpack.c.l.b16 %v1259
      %v1301 = vunpack.c.l.b16 %v1260
      %v1302 = vunpack.c.l.b16 %v1261
      %v1303 = vunpack.c.l.b16 %v1262
      %v1304 = vunpack.c.l.b16 %v1263
      %v1305 = vunpack.c.l.b16 %v1264
      %v1306 = vunpack.c.l.b16 %v1265
      %v1307 = vunpack.c.l.b16 %v1266
      %v1308 = vunpack.c.l.b16 %v1267
      %v1309 = vunpack.c.l.b16 %v1268
      %v1310 = vpack.c.b16 %v1295, %v1294
      %v1311 = vpack.c.b16 %v1297, %v1296
      %v1312 = vpack.c.b16 %v1299, %v1298
      %v1313 = vpack.c.b16 %v1301, %v1300
      %v1314 = vpack.c.b16 %v1303, %v1302
      %v1315 = vpack.c.b16 %v1305, %v1304
      %v1316 = vpack.c.b16 %v1307, %v1306
      %v1317 = vpack.c.b16 %v1309, %v1308
      %1326 = vmatprep.subr.bf16.mxu0 0
      %1327 = vmatpush1.bf16.msra.mxu0 %v1310
      %1328 = vmatprep.subr.bf16.mxu0 0
      %1329 = vmatpush1.bf16.msra.mxu0 %v1311
      %1330 = vmatprep.subr.bf16.mxu0 0
      %1331 = vmatpush1.bf16.msra.mxu0 %v1312
      %1332 = vmatprep.subr.bf16.mxu0 0
      %1333 = vmatpush1.bf16.msra.mxu0 %v1313
      %1334 = vmatprep.subr.bf16.mxu0 0
      %1335 = vmatpush1.bf16.msra.mxu0 %v1314
      %1336 = vmatprep.subr.bf16.mxu0 0
      %1337 = vmatpush1.bf16.msra.mxu0 %v1315
      %1338 = vmatprep.subr.bf16.mxu0 0
      %1339 = vmatpush1.bf16.msra.mxu0 %v1316
      %1340 = vmatprep.subr.bf16.mxu0 0
      %1341 = vmatpush1.bf16.msra.mxu0 %v1317
      %1342 = vmatprep.subr.bf16.mxu0 0
      %1343 = vmatpush1.bf16.msra.mxu0 0
      %1344 = vmatprep.subr.bf16.mxu0 0
      %1345 = vmatpush1.bf16.msra.mxu0 0
      %1346 = vmatprep.subr.bf16.mxu0 0
      %1347 = vmatpush1.bf16.msra.mxu0 0
      %1348 = vmatprep.subr.bf16.mxu0 0
      %1349 = vmatpush1.bf16.msra.mxu0 0
      %1350 = vmatprep.subr.bf16.mxu0 0
      %1351 = vmatpush1.bf16.msra.mxu0 0
      %1352 = vmatprep.subr.bf16.mxu0 0
      %1353 = vmatpush1.bf16.msra.mxu0 0
      %1354 = vmatprep.subr.bf16.mxu0 0
      %1355 = vmatpush1.bf16.msra.mxu0 0
      %1356 = vmatprep.subr.bf16.mxu0 0
      %1357 = vmatpush1.bf16.msra.mxu0 0
      %1358 = vmatprep.mubr.bf16.mxu0 0
      %1359 = vmatmul.mubr.bf16.gmra.mrb[0].mxu0 %v1270
      %v1360 = vpop.f32.mrb[0].mxu0
      %v1361 = vadd.f32 0.0, %v1360
      %v1362 = vpop.f32.mrb[0].mxu0
      %v1363 = vpop.f32.mrb[0].mxu0
      %v1364 = vadd.f32 0.0, %v1363
      %v1365 = vpop.f32.mrb[0].mxu0
      %1366 = vmatprep.mubr.bf16.mxu0 0
      %1367 = vmatmul.mubr.bf16.gmra.mrb[0].mxu0 %v1271
      %v1368 = vpop.f32.mrb[0].mxu0
      %v1369 = vadd.f32 0.0, %v1368
      %v1370 = vpop.f32.mrb[0].mxu0
      %v1371 = vpop.f32.mrb[0].mxu0
      %v1372 = vadd.f32 0.0, %v1371
      %v1373 = vpop.f32.mrb[0].mxu0
      %1374 = vmatprep.mubr.bf16.mxu0 0
      %1375 = vmatmul.mubr.bf16.gmra.mrb[0].mxu0 %v1272
      %v1376 = vpop.f32.mrb[0].mxu0
      %v1377 = vadd.f32 0.0, %v1376
      %v1378 = vpop.f32.mrb[0].mxu0
      %v1379 = vpop.f32.mrb[0].mxu0
      %v1380 = vadd.f32 0.0, %v1379
      %v1381 = vpop.f32.mrb[0].mxu0
      %1382 = vmatprep.mubr.bf16.mxu0 0
      %1383 = vmatmul.mubr.bf16.gmra.mrb[0].mxu0 %v1273
      %v1384 = vpop.f32.mrb[0].mxu0
      %v1385 = vadd.f32 0.0, %v1384
      %v1386 = vpop.f32.mrb[0].mxu0
      %v1387 = vpop.f32.mrb[0].mxu0
      %v1388 = vadd.f32 0.0, %v1387
      %v1389 = vpop.f32.mrb[0].mxu0
      %1390 = vdwg.mxu0
      %v1391 = vld [vmem:[#allocation2] sm:$0xff]
      %v1392 = vld [vmem:[#allocation2 + $0x8] sm:$0xff]
      %v1393 = vld [vmem:[#allocation2 + $0x10] sm:$0xff]
      %v1394 = vld [vmem:[#allocation2 + $0x18] sm:$0xff]
      %v1395 = vld [vmem:[#allocation2 + $0x20] sm:$0xff]
      %v1396 = vld [vmem:[#allocation2 + $0x28] sm:$0xff]
      %v1397 = vld [vmem:[#allocation2 + $0x30] sm:$0xff]
      %v1398 = vld [vmem:[#allocation2 + $0x38] sm:$0xff]
      %v1399 = vadd.f32 %v1391, %v1361
      %v1400 = vadd.f32 %v1392, %v1364
      %v1401 = vadd.f32 %v1393, %v1369
      %v1402 = vadd.f32 %v1394, %v1372
      %v1403 = vadd.f32 %v1395, %v1377
      %v1404 = vadd.f32 %v1396, %v1380
      %v1405 = vadd.f32 %v1397, %v1385
      %v1406 = vadd.f32 %v1398, %v1388
      %1407 = vst [vmem:[#allocation2] sm:$0xff] %v1399
      %1408 = vst [vmem:[#allocation2 + $0x8] sm:$0xff] %v1400
      %1409 = vst [vmem:[#allocation2 + $0x10] sm:$0xff] %v1401
      %1410 = vst [vmem:[#allocation2 + $0x18] sm:$0xff] %v1402
      %1411 = vst [vmem:[#allocation2 + $0x20] sm:$0xff] %v1403
      %1412 = vst [vmem:[#allocation2 + $0x28] sm:$0xff] %v1404
      %1413 = vst [vmem:[#allocation2 + $0x30] sm:$0xff] %v1405
      %1414 = vst [vmem:[#allocation2 + $0x38] sm:$0xff] %v1406
      %s1415 = scalar_lea.vmem %s1, 384
      %v1416 = vld [vmem:[%s1415] sm:$0xf]
      %v1417 = vld [vmem:[%s1415 + $0x4] sm:$0xf]
      %v1418 = vld [vmem:[%s1415 + $0x8] sm:$0xf]
      %v1419 = vld [vmem:[%s1415 + $0xc] sm:$0xf]
      %v1420 = vld [vmem:[%s1415 + $0x10] sm:$0xf]
      %v1421 = vld [vmem:[%s1415 + $0x14] sm:$0xf]
      %v1422 = vld [vmem:[%s1415 + $0x18] sm:$0xf]
      %v1423 = vld [vmem:[%s1415 + $0x1c] sm:$0xf]
      %v1424 = vld [vmem:[%s1415 + $0x20] sm:$0xf]
      %v1425 = vld [vmem:[%s1415 + $0x24] sm:$0xf]
      %v1426 = vld [vmem:[%s1415 + $0x28] sm:$0xf]
      %v1427 = vld [vmem:[%s1415 + $0x2c] sm:$0xf]
      %v1428 = vld [vmem:[%s1415 + $0x30] sm:$0xf]
      %v1429 = vld [vmem:[%s1415 + $0x34] sm:$0xf]
      %v1430 = vld [vmem:[%s1415 + $0x38] sm:$0xf]
      %v1431 = vld [vmem:[%s1415 + $0x3c] sm:$0xf]
      %v1433 = vunpack.c.l.b16 %v245
      %v1434 = vpack.c.b16 %v1433, %v924
      %v1452 = vunpack.c.l.b16 %v1416
      %v1453 = vunpack.c.l.b16 %v1417
      %v1454 = vunpack.c.l.b16 %v1418
      %v1455 = vunpack.c.l.b16 %v1419
      %v1456 = vunpack.c.l.b16 %v1420
      %v1457 = vunpack.c.l.b16 %v1421
      %v1458 = vunpack.c.l.b16 %v1422
      %v1459 = vunpack.c.l.b16 %v1423
      %v1460 = vunpack.c.l.b16 %v1424
      %v1461 = vunpack.c.l.b16 %v1425
      %v1462 = vunpack.c.l.b16 %v1426
      %v1463 = vunpack.c.l.b16 %v1427
      %v1464 = vunpack.c.l.b16 %v1428
      %v1465 = vunpack.c.l.b16 %v1429
      %v1466 = vunpack.c.l.b16 %v1430
      %v1467 = vunpack.c.l.b16 %v1431
      %v1468 = vpack.c.b16 %v1453, %v1452
      %v1469 = vpack.c.b16 %v1455, %v1454
      %v1470 = vpack.c.b16 %v1457, %v1456
      %v1471 = vpack.c.b16 %v1459, %v1458
      %v1472 = vpack.c.b16 %v1461, %v1460
      %v1473 = vpack.c.b16 %v1463, %v1462
      %v1474 = vpack.c.b16 %v1465, %v1464
      %v1475 = vpack.c.b16 %v1467, %v1466
      %1484 = vmatprep.subr.bf16.mxu0 0
      %1485 = vmatpush1.bf16.msra.mxu0 %v1468
      %1486 = vmatprep.subr.bf16.mxu0 0
      %1487 = vmatpush1.bf16.msra.mxu0 %v1469
      %1488 = vmatprep.subr.bf16.mxu0 0
      %1489 = vmatpush1.bf16.msra.mxu0 %v1470
      %1490 = vmatprep.subr.bf16.mxu0 0
      %1491 = vmatpush1.bf16.msra.mxu0 %v1471
      %1492 = vmatprep.subr.bf16.mxu0 0
      %1493 = vmatpush1.bf16.msra.mxu0 %v1472
      %1494 = vmatprep.subr.bf16.mxu0 0
      %1495 = vmatpush1.bf16.msra.mxu0 %v1473
      %1496 = vmatprep.subr.bf16.mxu0 0
      %1497 = vmatpush1.bf16.msra.mxu0 %v1474
      %1498 = vmatprep.subr.bf16.mxu0 0
      %1499 = vmatpush1.bf16.msra.mxu0 %v1475
      %1500 = vmatprep.subr.bf16.mxu0 0
      %1501 = vmatpush1.bf16.msra.mxu0 0
      %1502 = vmatprep.subr.bf16.mxu0 0
      %1503 = vmatpush1.bf16.msra.mxu0 0
      %1504 = vmatprep.subr.bf16.mxu0 0
      %1505 = vmatpush1.bf16.msra.mxu0 0
      %1506 = vmatprep.subr.bf16.mxu0 0
      %1507 = vmatpush1.bf16.msra.mxu0 0
      %1508 = vmatprep.subr.bf16.mxu0 0
      %1509 = vmatpush1.bf16.msra.mxu0 0
      %1510 = vmatprep.subr.bf16.mxu0 0
      %1511 = vmatpush1.bf16.msra.mxu0 0
      %1512 = vmatprep.subr.bf16.mxu0 0
      %1513 = vmatpush1.bf16.msra.mxu0 0
      %1514 = vmatprep.subr.bf16.mxu0 0
      %1515 = vmatpush1.bf16.msra.mxu0 0
      %1516 = vmatprep.mubr.bf16.mxu0 0
      %1517 = vmatmul.mubr.bf16.gmra.mrb[0].mxu0 %v280
      %v1518 = vpop.f32.mrb[0].mxu0
      %v1519 = vadd.f32 0.0, %v1518
      %v1520 = vpop.f32.mrb[0].mxu0
      %v1521 = vpop.f32.mrb[0].mxu0
      %v1522 = vadd.f32 0.0, %v1521
      %v1523 = vpop.f32.mrb[0].mxu0
      %1524 = vmatprep.mubr.bf16.mxu0 0
      %1525 = vmatmul.mubr.bf16.gmra.mrb[0].mxu0 %v281
      %v1526 = vpop.f32.mrb[0].mxu0
      %v1527 = vadd.f32 0.0, %v1526
      %v1528 = vpop.f32.mrb[0].mxu0
      %v1529 = vpop.f32.mrb[0].mxu0
      %v1530 = vadd.f32 0.0, %v1529
      %v1531 = vpop.f32.mrb[0].mxu0
      %1532 = vmatprep.mubr.bf16.mxu0 0
      %1533 = vmatmul.mubr.bf16.gmra.mrb[0].mxu0 %v282
      %v1534 = vpop.f32.mrb[0].mxu0
      %v1535 = vadd.f32 0.0, %v1534
      %v1536 = vpop.f32.mrb[0].mxu0
      %v1537 = vpop.f32.mrb[0].mxu0
      %v1538 = vadd.f32 0.0, %v1537
      %v1539 = vpop.f32.mrb[0].mxu0
      %1540 = vmatprep.mubr.bf16.mxu0 0
      %1541 = vmatmul.mubr.bf16.gmra.mrb[0].mxu0 %v1434
      %v1542 = vpop.f32.mrb[0].mxu0
      %v1543 = vadd.f32 0.0, %v1542
      %v1544 = vpop.f32.mrb[0].mxu0
      %v1545 = vpop.f32.mrb[0].mxu0
      %v1546 = vadd.f32 0.0, %v1545
      %v1547 = vpop.f32.mrb[0].mxu0
      %1548 = vdwg.mxu0
      %v1549 = vld [vmem:[#allocation2] sm:$0xff]
      %v1550 = vld [vmem:[#allocation2 + $0x8] sm:$0xff]
      %v1551 = vld [vmem:[#allocation2 + $0x10] sm:$0xff]
      %v1552 = vld [vmem:[#allocation2 + $0x18] sm:$0xff]
      %v1553 = vld [vmem:[#allocation2 + $0x20] sm:$0xff]
      %v1554 = vld [vmem:[#allocation2 + $0x28] sm:$0xff]
      %v1555 = vld [vmem:[#allocation2 + $0x30] sm:$0xff]
      %v1556 = vld [vmem:[#allocation2 + $0x38] sm:$0xff]
      %v1557 = vadd.f32 %v1549, %v1519
      %v1558 = vadd.f32 %v1550, %v1522
      %v1559 = vadd.f32 %v1551, %v1527
      %v1560 = vadd.f32 %v1552, %v1530
      %v1561 = vadd.f32 %v1553, %v1535
      %v1562 = vadd.f32 %v1554, %v1538
      %v1563 = vadd.f32 %v1555, %v1543
      %v1564 = vadd.f32 %v1556, %v1546
      %1565 = vst [vmem:[#allocation2] sm:$0xff] %v1557
      %1566 = vst [vmem:[#allocation2 + $0x8] sm:$0xff] %v1558
      %1567 = vst [vmem:[#allocation2 + $0x10] sm:$0xff] %v1559
      %1568 = vst [vmem:[#allocation2 + $0x18] sm:$0xff] %v1560
      %1569 = vst [vmem:[#allocation2 + $0x20] sm:$0xff] %v1561
      %1570 = vst [vmem:[#allocation2 + $0x28] sm:$0xff] %v1562
      %1571 = vst [vmem:[#allocation2 + $0x30] sm:$0xff] %v1563
      %1572 = vst [vmem:[#allocation2 + $0x38] sm:$0xff] %v1564
      %v1574 = vshrl.u32 %v245, 16
      %v1576 = vrot.slane %v1574, 4
      %v1577 = vshll.u32 %v245, 16
      %v1579 = vrot.slane %v1577, 5
      %v1580 = vor.u32 %v1576, %v1579
      %v1581 = vrot.slane %v1580, 4
      %v1583 = vshll.u32 %v246, 16
      %v1585 = vrot.slane %v1583, 5
      %v1586 = vsel %vm410, %v1581, %v1585
      %s1587 = scalar_lea.vmem %s1, 448
      %v1588 = vld [vmem:[%s1587] sm:$0xf]
      %v1589 = vld [vmem:[%s1587 + $0x4] sm:$0xf]
      %v1590 = vld [vmem:[%s1587 + $0x8] sm:$0xf]
      %v1591 = vld [vmem:[%s1587 + $0xc] sm:$0xf]
      %v1592 = vld [vmem:[%s1587 + $0x10] sm:$0xf]
      %v1593 = vld [vmem:[%s1587 + $0x14] sm:$0xf]
      %v1594 = vld [vmem:[%s1587 + $0x18] sm:$0xf]
      %v1595 = vld [vmem:[%s1587 + $0x1c] sm:$0xf]
      %v1596 = vld [vmem:[%s1587 + $0x20] sm:$0xf]
      %v1597 = vld [vmem:[%s1587 + $0x24] sm:$0xf]
      %v1598 = vld [vmem:[%s1587 + $0x28] sm:$0xf]
      %v1599 = vld [vmem:[%s1587 + $0x2c] sm:$0xf]
      %v1600 = vld [vmem:[%s1587 + $0x30] sm:$0xf]
      %v1601 = vld [vmem:[%s1587 + $0x34] sm:$0xf]
      %v1602 = vld [vmem:[%s1587 + $0x38] sm:$0xf]
      %v1603 = vld [vmem:[%s1587 + $0x3c] sm:$0xf]
      %v1604 = vunpack.c.l.b16 %v1586
      %v1605 = vpack.c.b16 %v1604, %v1101
      %v1623 = vunpack.c.l.b16 %v1588
      %v1624 = vunpack.c.l.b16 %v1589
      %v1625 = vunpack.c.l.b16 %v1590
      %v1626 = vunpack.c.l.b16 %v1591
      %v1627 = vunpack.c.l.b16 %v1592
      %v1628 = vunpack.c.l.b16 %v1593
      %v1629 = vunpack.c.l.b16 %v1594
      %v1630 = vunpack.c.l.b16 %v1595
      %v1631 = vunpack.c.l.b16 %v1596
      %v1632 = vunpack.c.l.b16 %v1597
      %v1633 = vunpack.c.l.b16 %v1598
      %v1634 = vunpack.c.l.b16 %v1599
      %v1635 = vunpack.c.l.b16 %v1600
      %v1636 = vunpack.c.l.b16 %v1601
      %v1637 = vunpack.c.l.b16 %v1602
      %v1638 = vunpack.c.l.b16 %v1603
      %v1639 = vpack.c.b16 %v1624, %v1623
      %v1640 = vpack.c.b16 %v1626, %v1625
      %v1641 = vpack.c.b16 %v1628, %v1627
      %v1642 = vpack.c.b16 %v1630, %v1629
      %v1643 = vpack.c.b16 %v1632, %v1631
      %v1644 = vpack.c.b16 %v1634, %v1633
      %v1645 = vpack.c.b16 %v1636, %v1635
      %v1646 = vpack.c.b16 %v1638, %v1637
      %1655 = vmatprep.subr.bf16.mxu0 0
      %1656 = vmatpush1.bf16.msra.mxu0 %v1639
      %1657 = vmatprep.subr.bf16.mxu0 0
      %1658 = vmatpush1.bf16.msra.mxu0 %v1640
      %1659 = vmatprep.subr.bf16.mxu0 0
      %1660 = vmatpush1.bf16.msra.mxu0 %v1641
      %1661 = vmatprep.subr.bf16.mxu0 0
      %1662 = vmatpush1.bf16.msra.mxu0 %v1642
      %1663 = vmatprep.subr.bf16.mxu0 0
      %1664 = vmatpush1.bf16.msra.mxu0 %v1643
      %1665 = vmatprep.subr.bf16.mxu0 0
      %1666 = vmatpush1.bf16.msra.mxu0 %v1644
      %1667 = vmatprep.subr.bf16.mxu0 0
      %1668 = vmatpush1.bf16.msra.mxu0 %v1645
      %1669 = vmatprep.subr.bf16.mxu0 0
      %1670 = vmatpush1.bf16.msra.mxu0 %v1646
      %1671 = vmatprep.subr.bf16.mxu0 0
      %1672 = vmatpush1.bf16.msra.mxu0 0
      %1673 = vmatprep.subr.bf16.mxu0 0
      %1674 = vmatpush1.bf16.msra.mxu0 0
      %1675 = vmatprep.subr.bf16.mxu0 0
      %1676 = vmatpush1.bf16.msra.mxu0 0
      %1677 = vmatprep.subr.bf16.mxu0 0
      %1678 = vmatpush1.bf16.msra.mxu0 0
      %1679 = vmatprep.subr.bf16.mxu0 0
      %1680 = vmatpush1.bf16.msra.mxu0 0
      %1681 = vmatprep.subr.bf16.mxu0 0
      %1682 = vmatpush1.bf16.msra.mxu0 0
      %1683 = vmatprep.subr.bf16.mxu0 0
      %1684 = vmatpush1.bf16.msra.mxu0 0
      %1685 = vmatprep.subr.bf16.mxu0 0
      %1686 = vmatpush1.bf16.msra.mxu0 0
      %1687 = vmatprep.mubr.bf16.mxu0 0
      %1688 = vmatmul.mubr.bf16.gmra.mrb[0].mxu0 %v549
      %v1689 = vpop.f32.mrb[0].mxu0
      %v1690 = vadd.f32 0.0, %v1689
      %v1691 = vpop.f32.mrb[0].mxu0
      %v1692 = vpop.f32.mrb[0].mxu0
      %v1693 = vadd.f32 0.0, %v1692
      %v1694 = vpop.f32.mrb[0].mxu0
      %1695 = vmatprep.mubr.bf16.mxu0 0
      %1696 = vmatmul.mubr.bf16.gmra.mrb[0].mxu0 %v550
      %v1697 = vpop.f32.mrb[0].mxu0
      %v1698 = vadd.f32 0.0, %v1697
      %v1699 = vpop.f32.mrb[0].mxu0
      %v1700 = vpop.f32.mrb[0].mxu0
      %v1701 = vadd.f32 0.0, %v1700
      %v1702 = vpop.f32.mrb[0].mxu0
      %1703 = vmatprep.mubr.bf16.mxu0 0
      %1704 = vmatmul.mubr.bf16.gmra.mrb[0].mxu0 %v551
      %v1705 = vpop.f32.mrb[0].mxu0
      %v1706 = vadd.f32 0.0, %v1705
      %v1707 = vpop.f32.mrb[0].mxu0
      %v1708 = vpop.f32.mrb[0].mxu0
      %v1709 = vadd.f32 0.0, %v1708
      %v1710 = vpop.f32.mrb[0].mxu0
      %1711 = vmatprep.mubr.bf16.mxu0 0
      %1712 = vmatmul.mubr.bf16.gmra.mrb[0].mxu0 %v1605
      %v1713 = vpop.f32.mrb[0].mxu0
      %v1714 = vadd.f32 0.0, %v1713
      %v1715 = vpop.f32.mrb[0].mxu0
      %v1716 = vpop.f32.mrb[0].mxu0
      %v1717 = vadd.f32 0.0, %v1716
      %v1718 = vpop.f32.mrb[0].mxu0
      %1719 = vdwg.mxu0
      %v1720 = vld [vmem:[#allocation2] sm:$0xff]
      %v1721 = vld [vmem:[#allocation2 + $0x8] sm:$0xff]
      %v1722 = vld [vmem:[#allocation2 + $0x10] sm:$0xff]
      %v1723 = vld [vmem:[#allocation2 + $0x18] sm:$0xff]
      %v1724 = vld [vmem:[#allocation2 + $0x20] sm:$0xff]
      %v1725 = vld [vmem:[#allocation2 + $0x28] sm:$0xff]
      %v1726 = vld [vmem:[#allocation2 + $0x30] sm:$0xff]
      %v1727 = vld [vmem:[#allocation2 + $0x38] sm:$0xff]
      %v1728 = vadd.f32 %v1720, %v1690
      %v1729 = vadd.f32 %v1721, %v1693
      %v1730 = vadd.f32 %v1722, %v1698
      %v1731 = vadd.f32 %v1723, %v1701
      %v1732 = vadd.f32 %v1724, %v1706
      %v1733 = vadd.f32 %v1725, %v1709
      %v1734 = vadd.f32 %v1726, %v1714
      %v1735 = vadd.f32 %v1727, %v1717
      %1736 = vst [vmem:[#allocation2] sm:$0xff] %v1728
      %1737 = vst [vmem:[#allocation2 + $0x8] sm:$0xff] %v1729
      %1738 = vst [vmem:[#allocation2 + $0x10] sm:$0xff] %v1730
      %1739 = vst [vmem:[#allocation2 + $0x18] sm:$0xff] %v1731
      %1740 = vst [vmem:[#allocation2 + $0x20] sm:$0xff] %v1732
      %1741 = vst [vmem:[#allocation2 + $0x28] sm:$0xff] %v1733
      %1742 = vst [vmem:[#allocation2 + $0x30] sm:$0xff] %v1734
      %1743 = vst [vmem:[#allocation2 + $0x38] sm:$0xff] %v1735
      %v1745 = vrot.slane %v245, 5
      %v1746 = vrot.slane %v1745, 4
      %v1747 = vrot.slane %v246, 5
      %v1748 = vsel %vm703, %v1746, %v1747
      %s1749 = scalar_lea.vmem %s1, 512
      %v1750 = vld [vmem:[%s1749] sm:$0xf]
      %v1751 = vld [vmem:[%s1749 + $0x4] sm:$0xf]
      %v1752 = vld [vmem:[%s1749 + $0x8] sm:$0xf]
      %v1753 = vld [vmem:[%s1749 + $0xc] sm:$0xf]
      %v1754 = vld [vmem:[%s1749 + $0x10] sm:$0xf]
      %v1755 = vld [vmem:[%s1749 + $0x14] sm:$0xf]
      %v1756 = vld [vmem:[%s1749 + $0x18] sm:$0xf]
      %v1757 = vld [vmem:[%s1749 + $0x1c] sm:$0xf]
      %v1758 = vld [vmem:[%s1749 + $0x20] sm:$0xf]
      %v1759 = vld [vmem:[%s1749 + $0x24] sm:$0xf]
      %v1760 = vld [vmem:[%s1749 + $0x28] sm:$0xf]
      %v1761 = vld [vmem:[%s1749 + $0x2c] sm:$0xf]
      %v1762 = vld [vmem:[%s1749 + $0x30] sm:$0xf]
      %v1763 = vld [vmem:[%s1749 + $0x34] sm:$0xf]
      %v1764 = vld [vmem:[%s1749 + $0x38] sm:$0xf]
      %v1765 = vld [vmem:[%s1749 + $0x3c] sm:$0xf]
      %v1766 = vunpack.c.l.b16 %v1748
      %v1767 = vpack.c.b16 %v1766, %v1269
      %v1785 = vunpack.c.l.b16 %v1750
      %v1786 = vunpack.c.l.b16 %v1751
      %v1787 = vunpack.c.l.b16 %v1752
      %v1788 = vunpack.c.l.b16 %v1753
      %v1789 = vunpack.c.l.b16 %v1754
      %v1790 = vunpack.c.l.b16 %v1755
      %v1791 = vunpack.c.l.b16 %v1756
      %v1792 = vunpack.c.l.b16 %v1757
      %v1793 = vunpack.c.l.b16 %v1758
      %v1794 = vunpack.c.l.b16 %v1759
      %v1795 = vunpack.c.l.b16 %v1760
      %v1796 = vunpack.c.l.b16 %v1761
      %v1797 = vunpack.c.l.b16 %v1762
      %v1798 = vunpack.c.l.b16 %v1763
      %v1799 = vunpack.c.l.b16 %v1764
      %v1800 = vunpack.c.l.b16 %v1765
      %v1801 = vpack.c.b16 %v1786, %v1785
      %v1802 = vpack.c.b16 %v1788, %v1787
      %v1803 = vpack.c.b16 %v1790, %v1789
      %v1804 = vpack.c.b16 %v1792, %v1791
      %v1805 = vpack.c.b16 %v1794, %v1793
      %v1806 = vpack.c.b16 %v1796, %v1795
      %v1807 = vpack.c.b16 %v1798, %v1797
      %v1808 = vpack.c.b16 %v1800, %v1799
      %1817 = vmatprep.subr.bf16.mxu0 0
      %1818 = vmatpush1.bf16.msra.mxu0 %v1801
      %1819 = vmatprep.subr.bf16.mxu0 0
      %1820 = vmatpush1.bf16.msra.mxu0 %v1802
      %1821 = vmatprep.subr.bf16.mxu0 0
      %1822 = vmatpush1.bf16.msra.mxu0 %v1803
      %1823 = vmatprep.subr.bf16.mxu0 0
      %1824 = vmatpush1.bf16.msra.mxu0 %v1804
      %1825 = vmatprep.subr.bf16.mxu0 0
      %1826 = vmatpush1.bf16.msra.mxu0 %v1805
      %1827 = vmatprep.subr.bf16.mxu0 0
      %1828 = vmatpush1.bf16.msra.mxu0 %v1806
      %1829 = vmatprep.subr.bf16.mxu0 0
      %1830 = vmatpush1.bf16.msra.mxu0 %v1807
      %1831 = vmatprep.subr.bf16.mxu0 0
      %1832 = vmatpush1.bf16.msra.mxu0 %v1808
      %1833 = vmatprep.subr.bf16.mxu0 0
      %1834 = vmatpush1.bf16.msra.mxu0 0
      %1835 = vmatprep.subr.bf16.mxu0 0
      %1836 = vmatpush1.bf16.msra.mxu0 0
      %1837 = vmatprep.subr.bf16.mxu0 0
      %1838 = vmatpush1.bf16.msra.mxu0 0
      %1839 = vmatprep.subr.bf16.mxu0 0
      %1840 = vmatpush1.bf16.msra.mxu0 0
      %1841 = vmatprep.subr.bf16.mxu0 0
      %1842 = vmatpush1.bf16.msra.mxu0 0
      %1843 = vmatprep.subr.bf16.mxu0 0
      %1844 = vmatpush1.bf16.msra.mxu0 0
      %1845 = vmatprep.subr.bf16.mxu0 0
      %1846 = vmatpush1.bf16.msra.mxu0 0
      %1847 = vmatprep.subr.bf16.mxu0 0
      %1848 = vmatpush1.bf16.msra.mxu0 0
      %1849 = vmatprep.mubr.bf16.mxu0 0
      %1850 = vmatmul.mubr.bf16.gmra.mrb[0].mxu0 %v762
      %v1851 = vpop.f32.mrb[0].mxu0
      %v1852 = vadd.f32 0.0, %v1851
      %v1853 = vpop.f32.mrb[0].mxu0
      %v1854 = vpop.f32.mrb[0].mxu0
      %v1855 = vadd.f32 0.0, %v1854
      %v1856 = vpop.f32.mrb[0].mxu0
      %1857 = vmatprep.mubr.bf16.mxu0 0
      %1858 = vmatmul.mubr.bf16.gmra.mrb[0].mxu0 %v763
      %v1859 = vpop.f32.mrb[0].mxu0
      %v1860 = vadd.f32 0.0, %v1859
      %v1861 = vpop.f32.mrb[0].mxu0
      %v1862 = vpop.f32.mrb[0].mxu0
      %v1863 = vadd.f32 0.0, %v1862
      %v1864 = vpop.f32.mrb[0].mxu0
      %1865 = vmatprep.mubr.bf16.mxu0 0
      %1866 = vmatmul.mubr.bf16.gmra.mrb[0].mxu0 %v764
      %v1867 = vpop.f32.mrb[0].mxu0
      %v1868 = vadd.f32 0.0, %v1867
      %v1869 = vpop.f32.mrb[0].mxu0
      %v1870 = vpop.f32.mrb[0].mxu0
      %v1871 = vadd.f32 0.0, %v1870
      %v1872 = vpop.f32.mrb[0].mxu0
      %1873 = vmatprep.mubr.bf16.mxu0 0
      %1874 = vmatmul.mubr.bf16.gmra.mrb[0].mxu0 %v1767
      %v1875 = vpop.f32.mrb[0].mxu0
      %v1876 = vadd.f32 0.0, %v1875
      %v1877 = vpop.f32.mrb[0].mxu0
      %v1878 = vpop.f32.mrb[0].mxu0
      %v1879 = vadd.f32 0.0, %v1878
      %v1880 = vpop.f32.mrb[0].mxu0
      %1881 = vdwg.mxu0
      %v1882 = vld [vmem:[#allocation2] sm:$0xff]
      %v1883 = vld [vmem:[#allocation2 + $0x8] sm:$0xff]
      %v1884 = vld [vmem:[#allocation2 + $0x10] sm:$0xff]
      %v1885 = vld [vmem:[#allocation2 + $0x18] sm:$0xff]
      %v1886 = vld [vmem:[#allocation2 + $0x20] sm:$0xff]
      %v1887 = vld [vmem:[#allocation2 + $0x28] sm:$0xff]
      %v1888 = vld [vmem:[#allocation2 + $0x30] sm:$0xff]
      %v1889 = vld [vmem:[#allocation2 + $0x38] sm:$0xff]
      %v1890 = vadd.f32 %v1882, %v1852
      %v1891 = vadd.f32 %v1883, %v1855
      %v1892 = vadd.f32 %v1884, %v1860
      %v1893 = vadd.f32 %v1885, %v1863
      %v1894 = vadd.f32 %v1886, %v1868
      %v1895 = vadd.f32 %v1887, %v1871
      %v1896 = vadd.f32 %v1888, %v1876
      %v1897 = vadd.f32 %v1889, %v1879
      %1898 = vst [vmem:[#allocation2] sm:$0xff] %v1890
      %1899 = vst [vmem:[#allocation2 + $0x8] sm:$0xff] %v1891
      %1900 = vst [vmem:[#allocation2 + $0x10] sm:$0xff] %v1892
      %1901 = vst [vmem:[#allocation2 + $0x18] sm:$0xff] %v1893
      %1902 = vst [vmem:[#allocation2 + $0x20] sm:$0xff] %v1894
      %1903 = vst [vmem:[#allocation2 + $0x28] sm:$0xff] %v1895
      %1904 = vst [vmem:[#allocation2 + $0x30] sm:$0xff] %v1896
      %1905 = vst [vmem:[#allocation2 + $0x38] sm:$0xff] %v1897
      %v1906 = vld [vmem:[#allocation2] sm:$0xff]
      %v1907 = vld [vmem:[#allocation2 + $0x8] sm:$0xff]
      %v1908 = vld [vmem:[#allocation2 + $0x10] sm:$0xff]
      %v1909 = vld [vmem:[#allocation2 + $0x18] sm:$0xff]
      %v1910 = vld [vmem:[#allocation2 + $0x20] sm:$0xff]
      %v1911 = vld [vmem:[#allocation2 + $0x28] sm:$0xff]
      %v1912 = vld [vmem:[#allocation2 + $0x30] sm:$0xff]
      %v1913 = vld [vmem:[#allocation2 + $0x38] sm:$0xff]
      %v1914 = vld [vmem:[%s2] sm:$0x1]
      %v1916 = vlaneseq
      %v1917 = vshrl.u32 %v1916, 7
      %v1918 = vsub.s32 0, %v1917
      %v1919 = vrot.slane %v1914, %v1918
      %v1921 = vadd.f32 %v1906, %v1919
      %v1922 = vadd.f32 %v1907, %v1919
      %v1923 = vadd.f32 %v1908, %v1919
      %v1924 = vadd.f32 %v1909, %v1919
      %v1925 = vadd.f32 %v1910, %v1919
      %v1926 = vadd.f32 %v1911, %v1919
      %v1927 = vadd.f32 %v1912, %v1919
      %v1928 = vadd.f32 %v1913, %v1919
      %v1929 = vpack.c.bf16 %v1922, %v1921
      %v1930 = vpack.c.bf16 %v1924, %v1923
      %v1931 = vpack.c.bf16 %v1926, %v1925
      %v1932 = vpack.c.bf16 %v1928, %v1927
      %v1937 = vunpack.c.l.b16 %v1929
      %v1938 = vunpack.c.h.b16 %v1929
      %v1939 = vunpack.c.l.b16 %v1930
      %v1940 = vunpack.c.h.b16 %v1930
      %v1941 = vunpack.c.l.b16 %v1931
      %v1942 = vunpack.c.h.b16 %v1931
      %v1943 = vunpack.c.l.b16 %v1932
      %v1944 = vunpack.c.h.b16 %v1932
      %v1945 = vpack.c.b16 %v1937, %v1937
      %v1946 = vpack.c.b16 %v1938, %v1938
      %v1947 = vpack.c.b16 %v1939, %v1939
      %v1948 = vpack.c.b16 %v1940, %v1940
      %v1949 = vpack.c.b16 %v1941, %v1941
      %v1950 = vpack.c.b16 %v1942, %v1942
      %v1951 = vpack.c.b16 %v1943, %v1943
      %v1952 = vpack.c.b16 %v1944, %v1944
      %1961 = vst [vmem:[%s219] sm:$0xf] %v1945
      %1962 = vst [vmem:[%s219 + $0x4] sm:$0xf] %v1946
      %1963 = vst [vmem:[%s219 + $0x8] sm:$0xf] %v1947
      %1964 = vst [vmem:[%s219 + $0xc] sm:$0xf] %v1948
      %1965 = vst [vmem:[%s219 + $0x10] sm:$0xf] %v1949
      %1966 = vst [vmem:[%s219 + $0x14] sm:$0xf] %v1950
      %1967 = vst [vmem:[%s219 + $0x18] sm:$0xf] %v1951
      %1968 = vst [vmem:[%s219 + $0x1c] sm:$0xf] %v1952
      %v1969 = vunpack.c.l.bf16 %v1929
      %v1970 = vunpack.c.h.bf16 %v1929
      %v1971 = vunpack.c.l.bf16 %v1930
      %v1972 = vunpack.c.h.bf16 %v1930
      %v1973 = vunpack.c.l.bf16 %v1931
      %v1974 = vunpack.c.h.bf16 %v1931
      %v1975 = vunpack.c.l.bf16 %v1932
      %v1976 = vunpack.c.h.bf16 %v1932
      %v1977 = vld [vmem:[%s4] sm:$0x1]
      %v1978 = vadd.f32 %v1969, %v1970
      %v1979 = vadd.f32 %v1978, %v1971
      %v1980 = vadd.f32 %v1979, %v1972
      %v1981 = vadd.f32 %v1980, %v1973
      %v1982 = vadd.f32 %v1981, %v1974
      %v1983 = vadd.f32 %v1982, %v1975
      %v1984 = vadd.f32 %v1983, %v1976
      %v1985 = vrot.slane %v1984, 4
      %v1986 = vadd.f32 %v1984, %v1985
      %v1987 = vrot.slane %v1986, 2
      %v1988 = vadd.f32 %v1986, %v1987
      %v1989 = vrot.slane %v1988, 1
      %v1990 = vadd.f32 %v1988, %v1989
      %v1991 = vadd.f32 %v1977, %v1990
      %1992 = vst [vmem:[%s4] sm:$0x1] %v1991
      %v1993 = vld [vmem:[%s5] sm:$0x1]
      %v1994 = vmul.f32 %v1969, %v1969
      %v1995 = vmul.f32 %v1970, %v1970
      %v1996 = vmul.f32 %v1971, %v1971
      %v1997 = vmul.f32 %v1972, %v1972
      %v1998 = vmul.f32 %v1973, %v1973
      %v1999 = vmul.f32 %v1974, %v1974
      %v2000 = vmul.f32 %v1975, %v1975
      %v2001 = vmul.f32 %v1976, %v1976
      %v2002 = vadd.f32 %v1994, %v1995
      %v2003 = vadd.f32 %v2002, %v1996
      %v2004 = vadd.f32 %v2003, %v1997
      %v2005 = vadd.f32 %v2004, %v1998
      %v2006 = vadd.f32 %v2005, %v1999
      %v2007 = vadd.f32 %v2006, %v2000
      %v2008 = vadd.f32 %v2007, %v2001
      %v2009 = vrot.slane %v2008, 4
      %v2010 = vadd.f32 %v2008, %v2009
      %v2011 = vrot.slane %v2010, 2
      %v2012 = vadd.f32 %v2010, %v2011
      %v2013 = vrot.slane %v2012, 1
      %v2014 = vadd.f32 %v2012, %v2013
      %v2015 = vadd.f32 %v1993, %v2014
      %2016 = vst [vmem:[%s5] sm:$0x1] %v2015
      %p2017 = scmp.lt.s32.totalorder %s17, 1
      %s2018 = scalar_select %p2017, %s17, 1
      %s2019 = smul.addr %s2018, 8
      %s2020 = smul.addr %s2019, 4
      %s2021 = scalar_lea.vmem %s3, %s2020
      // Predicated region
      $region37: #{res_unit_forward.4} parent=31 // pred_check
        %p2022 = pneg %p103
      $region38: #{res_unit_forward.4} parent=31 // pred_check_branch
        %2024 = sbr.rel (%p2022) target = $region40
      $region39: #{res_unit_forward.4} parent=31 // pred_region
        _
      $region40: #{res_unit_forward.4} parent=31 // pred_fallthru
        _
      // Predicated region
      $region41: #{res_unit_forward.4} parent=31 // pred_check
        %p2025 = pneg %p124
      $region42: #{res_unit_forward.4} parent=31 // pred_check_branch
        %2027 = sbr.rel (%p2025) target = $region44
      $region43: #{res_unit_forward.4} parent=31 // pred_region
        _
      $region44: #{res_unit_forward.4} parent=31 // pred_fallthru
        _
      // Predicated region
      $region45: #{res_unit_forward.4} parent=31 // pred_check
        %p2028 = pneg %p145
      $region46: #{res_unit_forward.4} parent=31 // pred_check_branch
        %2030 = sbr.rel (%p2028) target = $region48
      $region47: #{res_unit_forward.4} parent=31 // pred_region
        _
      $region48: #{res_unit_forward.4} parent=31 // pred_fallthru
        _
      // Predicated region
      $region49: #{res_unit_forward.4} parent=31 // pred_check
        %p2031 = pneg %p124
      $region50: #{res_unit_forward.4} parent=31 // pred_check_branch
        %2033 = sbr.rel (%p2031) target = $region52
      $region51: #{res_unit_forward.4} parent=31 // pred_region
        _
      $region52: #{res_unit_forward.4} parent=31 // pred_fallthru
        _
      // Predicated region
      $region53: #{res_unit_forward.4} parent=31 // pred_check
        %p2034 = pneg %p145
      $region54: #{res_unit_forward.4} parent=31 // pred_check_branch
        %2036 = sbr.rel (%p2034) target = $region56
      $region55: #{res_unit_forward.4} parent=31 // pred_region
        _
      $region56: #{res_unit_forward.4} parent=31 // pred_fallthru
        _
    $region32: #{res_unit_forward.4} parent=5 // pred_fallthru
      _
    %p2037 = scmp.le.s32.totalorder 2, %s12
    // Predicated region
    $region57: #{res_unit_forward.4} parent=5 // pred_check
      %p2038 = pneg %p2037
    $region58: #{res_unit_forward.4} parent=5 // pred_check_branch
      %2040 = sbr.rel (%p2038) target = $region60
    $region59: #{res_unit_forward.4} parent=5 // pred_region
      %s2041 = ssub.s32 %s12, 2
      // Predicated region
      $region61: #{res_unit_forward.4} parent=59 // pred_check
        %p2042 = pneg %p109
      $region62: #{res_unit_forward.4} parent=59 // pred_check_branch
        %2044 = sbr.rel (%p2042) target = $region64
      $region63: #{res_unit_forward.4} parent=59 // pred_region
        %p2045 = scmp.lt.s32.totalorder %s18, 1
        %s2046 = scalar_select %p2045, %s18, 1
        %s2047 = smul.addr %s2046, 8
        %s2048 = smul.addr %s2047, 4
        %s2049 = scalar_lea.vmem %s3, %s2048
      $region64: #{res_unit_forward.4} parent=59 // pred_fallthru
        _
    $region60: #{res_unit_forward.4} parent=5 // pred_fallthru
      _
  $region6: #{res_unit_forward.4} parent=0 // loop_footer
    %s16 = sadd.s32 1, %s12
  $region7: #{res_unit_forward.4} parent=0 // loop_footer_branch
    %11 = sbr.rel target = $region3
  $region8: #{res_unit_forward.4} parent=0 // loop_exit
    _

</llo_original>
